<compile_context>
chip_gen: v7x
topology: tpu7x:2x2x1
jax: 0.10.0
libtpu: 0.0.40
codegen_flags: <defaults>
</compile_context>

<pallas_src>
import jax
import jax.numpy as jnp
from jax.experimental import pallas as pl
from jax.experimental.pallas import tpu as pltpu

IN_DIM = 1024
HID_DIM = 1024
OUT_DIM = 399
OUT_PAD = 512   # pad last linear's output to a lane-friendly multiple of 128


def _mlp_kernel(x_ref, w1_ref, s1_ref, b1_ref, w2_ref, s2_ref, b2_ref,
                w3_hbm_ref, s3_ref, b3_ref, o_ref,
                acc_ref, w3_vmem_ref, w3_sem):
    """Grid axis j streams hidden tiles: h1[:, tile] and the matching w2[tile, :]."""
    j = pl.program_id(0)

    @pl.when(j == 0)
    def _():
        acc_ref[...] = jnp.zeros_like(acc_ref)
        # w3 is only read in the last-step epilogue: kick its copy off now so it
        # streams behind the w1/w2 tiles instead of blocking iteration 0.
        pltpu.make_async_copy(w3_hbm_ref, w3_vmem_ref, w3_sem).start()

    # layer 1 (column tile): int8 weights -> bf16 on the fly, f32 MXU accumulate,
    # per-output-channel dequant scale applied with the bias, then ReLU.
    x = x_ref[...]                                            # (B, 1024) bf16
    w1 = w1_ref[...].astype(jnp.bfloat16)                     # (1024, tn)
    h1 = jnp.dot(x, w1, preferred_element_type=jnp.float32) * s1_ref[...] + b1_ref[...]
    h1 = jnp.maximum(h1, 0.0)

    # layer 2 partial product for this hidden tile, accumulated in f32.
    w2 = w2_ref[...].astype(jnp.bfloat16)                     # (tn, 1024)
    acc_ref[...] += jnp.dot(h1.astype(jnp.bfloat16), w2,
                            preferred_element_type=jnp.float32)

    @pl.when(j == pl.num_programs(0) - 1)
    def _():
        # layer 2 dequant scale + bias + ReLU; dropout(p=0.5) in eval mode == identity.
        h2 = jnp.maximum(acc_ref[...] * s2_ref[...] + b2_ref[...], 0.0)
        pltpu.make_async_copy(w3_hbm_ref, w3_vmem_ref, w3_sem).wait()
        w3 = w3_vmem_ref[...].astype(jnp.bfloat16)            # (1024, OUT_PAD)
        logits = (jnp.dot(h2.astype(jnp.bfloat16), w3,
                          preferred_element_type=jnp.float32) * s3_ref[...]
                  + b3_ref[...])
        o_ref[...] = jax.nn.sigmoid(logits).astype(o_ref.dtype)


def _quantize_per_channel(w):
    """Symmetric per-output-channel int8 quantization: w ~= q * scale, q in [-127, 127]."""
    amax = jnp.max(jnp.abs(w), axis=0, keepdims=True)          # (1, out)
    scale = jnp.maximum(amax, 1e-6) / 127.0
    q = jnp.clip(jnp.round(w / scale), -127.0, 127.0).astype(jnp.int8)
    return q, scale.astype(jnp.float32)


def prepare_params(w1, b1, w2, b2, w3, b3):
    """One-time parameter prep (outside the hot path): int8 quantization, w3 pad, bias reshape."""
    w3p = jnp.zeros((HID_DIM, OUT_PAD), jnp.float32).at[:, :OUT_DIM].set(
        w3.astype(jnp.float32))
    w1q, s1 = _quantize_per_channel(w1.astype(jnp.float32))
    w2q, s2 = _quantize_per_channel(w2.astype(jnp.float32))
    w3q, s3 = _quantize_per_channel(w3p)
    b1r = b1.reshape(1, HID_DIM).astype(jnp.float32)
    b2r = b2.reshape(1, HID_DIM).astype(jnp.float32)
    b3p = jnp.zeros((1, OUT_PAD), jnp.float32).at[:, :OUT_DIM].set(
        b3.reshape(1, -1).astype(jnp.float32))
    return w1q, s1, b1r, w2q, s2, b2r, w3q, s3, b3p


def mlp_forward(x, w1q, s1, b1r, w2q, s2, b2r, w3q, s3, b3p):
    """x: (B, 1024). Returns (B, 399) f32."""
    B = x.shape[0]
    xb = x.astype(jnp.bfloat16)

    # Adaptive hidden-dim tiling: at small batch the runtime is pure weight-DMA time,
    # so extra grid steps only add fixed overhead -> run one fused step.  At larger
    # batch, stream two 512-wide tiles so weight DMA overlaps the previous matmul.
    tn = HID_DIM if B <= 64 else 512
    n_tiles = HID_DIM // tn

    flops = 2 * B * (IN_DIM * HID_DIM + HID_DIM * HID_DIM + HID_DIM * OUT_PAD)
    bytes_accessed = (IN_DIM * HID_DIM + HID_DIM * HID_DIM + HID_DIM * OUT_PAD  # int8 weights
                      + 4 * (4 * HID_DIM + 2 * OUT_PAD)                          # scales + biases
                      + 2 * B * IN_DIM + 4 * B * OUT_PAD)                        # x (bf16) + out (f32)

    out_padded = pl.pallas_call(
        _mlp_kernel,
        out_shape=jax.ShapeDtypeStruct((B, OUT_PAD), jnp.float32),
        grid_spec=pltpu.PrefetchScalarGridSpec(
            num_scalar_prefetch=0,
            grid=(n_tiles,),
            in_specs=[
                pl.BlockSpec((B, IN_DIM), lambda j: (0, 0)),         # x (resident)
                pl.BlockSpec((IN_DIM, tn), lambda j: (0, j)),        # w1 column tile (int8)
                pl.BlockSpec((1, tn), lambda j: (0, j)),             # s1 tile
                pl.BlockSpec((1, tn), lambda j: (0, j)),             # b1 tile
                pl.BlockSpec((tn, HID_DIM), lambda j: (j, 0)),       # w2 row tile (int8)
                pl.BlockSpec((1, HID_DIM), lambda j: (0, 0)),        # s2 (resident)
                pl.BlockSpec((1, HID_DIM), lambda j: (0, 0)),        # b2 (resident)
                pl.BlockSpec(memory_space=pl.ANY),                   # w3 (manual DMA)
                pl.BlockSpec((1, OUT_PAD), lambda j: (0, 0)),        # s3 (resident)
                pl.BlockSpec((1, OUT_PAD), lambda j: (0, 0)),        # b3 (resident)
            ],
            out_specs=pl.BlockSpec((B, OUT_PAD), lambda j: (0, 0)),
            scratch_shapes=[
                pltpu.VMEM((B, HID_DIM), jnp.float32),               # layer-2 f32 accumulator
                pltpu.VMEM((HID_DIM, OUT_PAD), jnp.int8),            # w3 staging buffer
                pltpu.SemaphoreType.DMA,                             # w3 copy semaphore
            ]),
        compiler_params=pltpu.CompilerParams(
            dimension_semantics=("arbitrary",)),
        cost_estimate=pl.CostEstimate(
            flops=flops,
            transcendentals=B * OUT_PAD,
            bytes_accessed=bytes_accessed),
    )(xb, w1q, s1, b1r, w2q, s2, b2r, w3q, s3, b3p)

    return out_padded[:, :OUT_DIM]


def init_params(key):
    """Deterministic init mimicking nn.Linear's U(-1/sqrt(fan_in), 1/sqrt(fan_in))."""
    ks = jax.random.split(key, 6)
    s1 = 1.0 / jnp.sqrt(IN_DIM)
    s2 = 1.0 / jnp.sqrt(HID_DIM)
    w1 = jax.random.uniform(ks[0], (IN_DIM, HID_DIM), jnp.float32, -s1, s1)
    b1 = jax.random.uniform(ks[1], (HID_DIM,), jnp.float32, -s1, s1)
    w2 = jax.random.uniform(ks[2], (HID_DIM, HID_DIM), jnp.float32, -s2, s2)
    b2 = jax.random.uniform(ks[3], (HID_DIM,), jnp.float32, -s2, s2)
    w3 = jax.random.uniform(ks[4], (HID_DIM, OUT_DIM), jnp.float32, -s2, s2)
    b3 = jax.random.uniform(ks[5], (OUT_DIM,), jnp.float32, -s2, s2)
    return w1, b1, w2, b2, w3, b3


if __name__ == "__main__":
    key = jax.random.PRNGKey(0)
    k_x, k_p = jax.random.split(key)

    B = 8
    x = jax.random.normal(k_x, (B, IN_DIM), jnp.float32)
    w1, b1, w2, b2, w3, b3 = init_params(k_p)
    prepped = prepare_params(w1, b1, w2, b2, w3, b3)

    out = jax.jit(mlp_forward)(x, *prepped)
    out = jax.block_until_ready(out)

    # sanity: shape and sigmoid range
    assert out.shape == (B, OUT_DIM), out.shape
    assert bool(jnp.all((out >= 0.0) & (out <= 1.0)))

    # cross-check vs a plain-JAX reference using the same int8/bf16 math as the kernel
    w1q, s1, b1r, w2q, s2, b2r, w3q, s3, b3p = prepped
    xb = x.astype(jnp.bfloat16)
    h1 = jnp.maximum(
        jnp.dot(xb, w1q.astype(jnp.bfloat16),
                preferred_element_type=jnp.float32) * s1 + b1r, 0.0)
    h2 = jnp.maximum(
        jnp.dot(h1.astype(jnp.bfloat16), w2q.astype(jnp.bfloat16),
                preferred_element_type=jnp.float32) * s2 + b2r, 0.0)
    ref_q = jax.nn.sigmoid(
        jnp.dot(h2.astype(jnp.bfloat16), w3q.astype(jnp.bfloat16),
                preferred_element_type=jnp.float32) * s3 + b3p)[:, :OUT_DIM]
    assert bool(jnp.allclose(out, ref_q, atol=2e-3, rtol=2e-3))

    # cross-check vs full-f32 reference with quantization-appropriate tolerance
    h1f = jnp.maximum(x @ w1 + b1, 0.0)
    h2f = jnp.maximum(h1f @ w2 + b2, 0.0)
    ref_f32 = jax.nn.sigmoid(h2f @ w3 + b3)
    assert bool(jnp.allclose(out, ref_f32, atol=5e-2, rtol=5e-2))

    print("KERNEL_OK")
</pallas_src>

<mosaic_0001>
module attributes {stable_mosaic.version = 11 : i64} {
  func.func @_mlp_kernel(%arg0: i32, %arg1: memref<8x1024xbf16, #tpu.memory_space<vmem>>, %arg2: memref<1024x1024xi8, #tpu.memory_space<vmem>>, %arg3: memref<1x1024xf32, #tpu.memory_space<vmem>>, %arg4: memref<1x1024xf32, #tpu.memory_space<vmem>>, %arg5: memref<1024x1024xi8, #tpu.memory_space<vmem>>, %arg6: memref<1x1024xf32, #tpu.memory_space<vmem>>, %arg7: memref<1x1024xf32, #tpu.memory_space<vmem>>, %arg8: memref<1024x512xi8, #tpu.memory_space<any>>, %arg9: memref<1x512xf32, #tpu.memory_space<vmem>>, %arg10: memref<1x512xf32, #tpu.memory_space<vmem>>, %arg11: memref<8x512xf32, #tpu.memory_space<vmem>>, %arg12: memref<8x1024xf32, #tpu.memory_space<vmem>>, %arg13: memref<1024x512xi8, #tpu.memory_space<vmem>>, %arg14: memref<!tpu.dma_semaphore, #tpu.memory_space<semaphore_mem>>) attributes {dimension_semantics = [#tpu.dimension_semantics<arbitrary>], iteration_bounds = array<i64: 1>, scalar_prefetch = 0 : i64, scratch_operands = 3 : i64, tpu.core_type = #tpu.core_type<tc>, window_params = [{pipeline_mode = #tpu.pipeline_mode<synchronous>, transform_indices = @transform_0, window_bounds = array<i64: 8, 1024>}, {transform_indices = @transform_1, window_bounds = array<i64: 1024, 1024>}, {transform_indices = @transform_2, window_bounds = array<i64: 1, 1024>}, {transform_indices = @transform_3, window_bounds = array<i64: 1, 1024>}, {transform_indices = @transform_4, window_bounds = array<i64: 1024, 1024>}, {pipeline_mode = #tpu.pipeline_mode<synchronous>, transform_indices = @transform_5, window_bounds = array<i64: 1, 1024>}, {pipeline_mode = #tpu.pipeline_mode<synchronous>, transform_indices = @transform_6, window_bounds = array<i64: 1, 1024>}, {}, {pipeline_mode = #tpu.pipeline_mode<synchronous>, transform_indices = @transform_8, window_bounds = array<i64: 1, 512>}, {pipeline_mode = #tpu.pipeline_mode<synchronous>, transform_indices = @transform_9, window_bounds = array<i64: 1, 512>}, {pipeline_mode = #tpu.pipeline_mode<synchronous>, transform_indices = @transform_10, window_bounds = array<i64: 8, 512>}]} {
    %c0_i32 = arith.constant 0 : i32
    %0 = arith.cmpi eq, %arg0, %c0_i32 : i32
    %1 = arith.extui %0 : i1 to i32
    %c0_i32_0 = arith.constant 0 : i32
    %2 = arith.cmpi ne, %1, %c0_i32_0 : i32
    scf.if %2 {
      %cst_18 = arith.constant 0.000000e+00 : f32
      %25 = vector.broadcast %cst_18 : f32 to vector<8x1024xf32>
      %c0_19 = arith.constant 0 : index
      %c0_20 = arith.constant 0 : index
      %26 = vector.load %arg12[%c0_19, %c0_20] : memref<8x1024xf32, #tpu.memory_space<vmem>>, vector<8x1024xf32>
      tpu.vector_store %arg12[%c0_19, %c0_20], %25 {strides = array<i32>} : memref<8x1024xf32, #tpu.memory_space<vmem>>, vector<8x1024xf32>,
      tpu.enqueue_dma source(%arg8 : memref<1024x512xi8, #tpu.memory_space<any>>) target(%arg13 : memref<1024x512xi8, #tpu.memory_space<vmem>>) target_semaphore(%arg14 : memref<!tpu.dma_semaphore, #tpu.memory_space<semaphore_mem>>)
    } else {
    }
    %c0 = arith.constant 0 : index
    %c0_1 = arith.constant 0 : index
    %3 = vector.load %arg1[%c0, %c0_1] : memref<8x1024xbf16, #tpu.memory_space<vmem>>, vector<8x1024xbf16>
    %c0_2 = arith.constant 0 : index
    %c0_3 = arith.constant 0 : index
    %4 = vector.load %arg2[%c0_2, %c0_3] : memref<1024x1024xi8, #tpu.memory_space<vmem>>, vector<1024x1024xi8>
    %5 = arith.sitofp %4 : vector<1024x1024xi8> to vector<1024x1024xbf16>
    %cst = arith.constant dense<0.000000e+00> : vector<8x1024xf32>
    %6 = tpu.matmul %3, %5, %cst {dimension_numbers = #tpu.dot_dimension_numbers<[1], [0], [0], [1], [0, 0, 1, 1], [], []>} : vector<8x1024xbf16>, vector<1024x1024xbf16>, vector<8x1024xf32> -> vector<8x1024xf32>
    %c0_4 = arith.constant 0 : index
    %c0_5 = arith.constant 0 : index
    %7 = vector.load %arg3[%c0_4, %c0_5] : memref<1x1024xf32, #tpu.memory_space<vmem>>, vector<1x1024xf32>
    %8 = vector.broadcast %7 : vector<1x1024xf32> to vector<8x1024xf32>
    %9 = arith.mulf %6, %8 : vector<8x1024xf32>
    %c0_6 = arith.constant 0 : index
    %c0_7 = arith.constant 0 : index
    %10 = vector.load %arg4[%c0_6, %c0_7] : memref<1x1024xf32, #tpu.memory_space<vmem>>, vector<1x1024xf32>
    %11 = vector.broadcast %10 : vector<1x1024xf32> to vector<8x1024xf32>
    %12 = arith.addf %9, %11 : vector<8x1024xf32>
    %cst_8 = arith.constant 0.000000e+00 : f32
    %13 = vector.broadcast %cst_8 : f32 to vector<8x1024xf32>
    %14 = arith.maximumf %12, %13 : vector<8x1024xf32>
    %c0_9 = arith.constant 0 : index
    %c0_10 = arith.constant 0 : index
    %15 = vector.load %arg5[%c0_9, %c0_10] : memref<1024x1024xi8, #tpu.memory_space<vmem>>, vector<1024x1024xi8>
    %16 = arith.sitofp %15 : vector<1024x1024xi8> to vector<1024x1024xbf16>
    %c0_11 = arith.constant 0 : index
    %c0_12 = arith.constant 0 : index
    %17 = vector.load %arg12[%c0_11, %c0_12] : memref<8x1024xf32, #tpu.memory_space<vmem>>, vector<8x1024xf32>
    %18 = arith.truncf %14 : vector<8x1024xf32> to vector<8x1024xbf16>
    %cst_13 = arith.constant dense<0.000000e+00> : vector<8x1024xf32>
    %19 = tpu.matmul %18, %16, %cst_13 {dimension_numbers = #tpu.dot_dimension_numbers<[1], [0], [0], [1], [0, 0, 1, 1], [], []>} : vector<8x1024xbf16>, vector<1024x1024xbf16>, vector<8x1024xf32> -> vector<8x1024xf32>
    %20 = arith.addf %17, %19 : vector<8x1024xf32>
    %c0_14 = arith.constant 0 : index
    %c0_15 = arith.constant 0 : index
    %21 = vector.load %arg12[%c0_14, %c0_15] : memref<8x1024xf32, #tpu.memory_space<vmem>>, vector<8x1024xf32>
    tpu.vector_store %arg12[%c0_14, %c0_15], %20 {strides = array<i32>} : memref<8x1024xf32, #tpu.memory_space<vmem>>, vector<8x1024xf32>,
    %c0_i32_16 = arith.constant 0 : i32
    %22 = arith.cmpi eq, %arg0, %c0_i32_16 : i32
    %23 = arith.extui %22 : i1 to i32
    %c0_i32_17 = arith.constant 0 : i32
    %24 = arith.cmpi ne, %23, %c0_i32_17 : i32
    scf.if %24 {
      %c0_18 = arith.constant 0 : index
      %c0_19 = arith.constant 0 : index
      %25 = vector.load %arg12[%c0_18, %c0_19] : memref<8x1024xf32, #tpu.memory_space<vmem>>, vector<8x1024xf32>
      %c0_20 = arith.constant 0 : index
      %c0_21 = arith.constant 0 : index
      %26 = vector.load %arg6[%c0_20, %c0_21] : memref<1x1024xf32, #tpu.memory_space<vmem>>, vector<1x1024xf32>
      %27 = vector.broadcast %26 : vector<1x1024xf32> to vector<8x1024xf32>
      %28 = arith.mulf %25, %27 : vector<8x1024xf32>
      %c0_22 = arith.constant 0 : index
      %c0_23 = arith.constant 0 : index
      %29 = vector.load %arg7[%c0_22, %c0_23] : memref<1x1024xf32, #tpu.memory_space<vmem>>, vector<1x1024xf32>
      %30 = vector.broadcast %29 : vector<1x1024xf32> to vector<8x1024xf32>
      %31 = arith.addf %28, %30 : vector<8x1024xf32>
      %cst_24 = arith.constant 0.000000e+00 : f32
      %32 = vector.broadcast %cst_24 : f32 to vector<8x1024xf32>
      %33 = arith.maximumf %31, %32 : vector<8x1024xf32>
      tpu.wait_dma2 semaphore(%arg14 : memref<!tpu.dma_semaphore, #tpu.memory_space<semaphore_mem>>) src(%arg8 : memref<1024x512xi8, #tpu.memory_space<any>>) dst(%arg13 : memref<1024x512xi8, #tpu.memory_space<vmem>>)
      %c0_25 = arith.constant 0 : index
      %c0_26 = arith.constant 0 : index
      %34 = vector.load %arg13[%c0_25, %c0_26] : memref<1024x512xi8, #tpu.memory_space<vmem>>, vector<1024x512xi8>
      %35 = arith.sitofp %34 : vector<1024x512xi8> to vector<1024x512xbf16>
      %36 = arith.truncf %33 : vector<8x1024xf32> to vector<8x1024xbf16>
      %cst_27 = arith.constant dense<0.000000e+00> : vector<8x512xf32>
      %37 = tpu.matmul %36, %35, %cst_27 {dimension_numbers = #tpu.dot_dimension_numbers<[1], [0], [0], [1], [0, 0, 1, 1], [], []>} : vector<8x1024xbf16>, vector<1024x512xbf16>, vector<8x512xf32> -> vector<8x512xf32>
      %c0_28 = arith.constant 0 : index
      %c0_29 = arith.constant 0 : index
      %38 = vector.load %arg9[%c0_28, %c0_29] : memref<1x512xf32, #tpu.memory_space<vmem>>, vector<1x512xf32>
      %39 = vector.broadcast %38 : vector<1x512xf32> to vector<8x512xf32>
      %40 = arith.mulf %37, %39 : vector<8x512xf32>
      %c0_30 = arith.constant 0 : index
      %c0_31 = arith.constant 0 : index
      %41 = vector.load %arg10[%c0_30, %c0_31] : memref<1x512xf32, #tpu.memory_space<vmem>>, vector<1x512xf32>
      %42 = vector.broadcast %41 : vector<1x512xf32> to vector<8x512xf32>
      %43 = arith.addf %40, %42 : vector<8x512xf32>
      %44 = arith.negf %43 : vector<8x512xf32>
      %45 = math.exp %44 : vector<8x512xf32>
      %cst_32 = arith.constant 1.000000e+00 : f32
      %46 = vector.broadcast %cst_32 : f32 to vector<8x512xf32>
      %47 = arith.addf %46, %45 : vector<8x512xf32>
      %48 = arith.divf %46, %47 : vector<8x512xf32>
      %c0_33 = arith.constant 0 : index
      %c0_34 = arith.constant 0 : index
      %49 = vector.load %arg11[%c0_33, %c0_34] : memref<8x512xf32, #tpu.memory_space<vmem>>, vector<8x512xf32>
      tpu.vector_store %arg11[%c0_33, %c0_34], %48 {strides = array<i32>} : memref<8x512xf32, #tpu.memory_space<vmem>>, vector<8x512xf32>,
    } else {
    }
    return
  }
  func.func @transform_0(%arg0: i32) -> (i32, i32) {
    %c0_i32 = arith.constant 0 : i32
    %c0_i32_0 = arith.constant 0 : i32
    %c0_i32_1 = arith.constant 0 : i32
    return %c0_i32, %c0_i32_0 : i32, i32
  }
  func.func @transform_1(%arg0: i32) -> (i32, i32) {
    %c0_i32 = arith.constant 0 : i32
    %c0_i32_0 = arith.constant 0 : i32
    return %c0_i32, %arg0 : i32, i32
  }
  func.func @transform_2(%arg0: i32) -> (i32, i32) {
    %c0_i32 = arith.constant 0 : i32
    %c0_i32_0 = arith.constant 0 : i32
    return %c0_i32, %arg0 : i32, i32
  }
  func.func @transform_3(%arg0: i32) -> (i32, i32) {
    %c0_i32 = arith.constant 0 : i32
    %c0_i32_0 = arith.constant 0 : i32
    return %c0_i32, %arg0 : i32, i32
  }
  func.func @transform_4(%arg0: i32) -> (i32, i32) {
    %c0_i32 = arith.constant 0 : i32
    %c0_i32_0 = arith.constant 0 : i32
    return %arg0, %c0_i32 : i32, i32
  }
  func.func @transform_5(%arg0: i32) -> (i32, i32) {
    %c0_i32 = arith.constant 0 : i32
    %c0_i32_0 = arith.constant 0 : i32
    %c0_i32_1 = arith.constant 0 : i32
    return %c0_i32, %c0_i32_0 : i32, i32
  }
  func.func @transform_6(%arg0: i32) -> (i32, i32) {
    %c0_i32 = arith.constant 0 : i32
    %c0_i32_0 = arith.constant 0 : i32
    %c0_i32_1 = arith.constant 0 : i32
    return %c0_i32, %c0_i32_0 : i32, i32
  }
  func.func @transform_8(%arg0: i32) -> (i32, i32) {
    %c0_i32 = arith.constant 0 : i32
    %c0_i32_0 = arith.constant 0 : i32
    %c0_i32_1 = arith.constant 0 : i32
    return %c0_i32, %c0_i32_0 : i32, i32
  }
  func.func @transform_9(%arg0: i32) -> (i32, i32) {
    %c0_i32 = arith.constant 0 : i32
    %c0_i32_0 = arith.constant 0 : i32
    %c0_i32_1 = arith.constant 0 : i32
    return %c0_i32, %c0_i32_0 : i32, i32
  }
  func.func @transform_10(%arg0: i32) -> (i32, i32) {
    %c0_i32 = arith.constant 0 : i32
    %c0_i32_0 = arith.constant 0 : i32
    %c0_i32_1 = arith.constant 0 : i32
    return %c0_i32, %c0_i32_0 : i32, i32
  }
}

</mosaic_0001>

<llo_original>
// kernel: mlp_forward.1
$region0: #{mlp_forward.1}
  #allocation0 [shape = 'u32[]', space=smem, size = 0x4, offset = 0x4, fixed_abs, tag = 'smem constant byte address 0x4 - core index']
  #allocation1 [shape = 'u32[144,128]{1,0:T(1,128)}', space=vmem, size = 0x12000, scoped, tag = 'internal scratch']
  #allocation2 [shape = 'f32[8,1024]{1,0:T(8,128)}', space=vmem, size = 0x8000, scoped, tag = 'scratch operand']
  #allocation3 [shape = 's8[1024,512]{1,0:T(32,128)(4,1)}', space=vmem, size = 0x80000, scoped, tag = 'scratch operand']
  #allocation4 [shape = 's32[1]{0}', space=sflag, size = 0x4, scoped, tag = 'scratch operand']
  #allocation11 [shape = 's32[]', space=sflag, size = 0x4, offset = 0, fixed_abs, tag = 'sflag constant byte address 0x0 - dummy sync flag']
  #allocation12 [shape = 's32[]', space=sflag, size = 0x4, offset = 0, fixed_abs, tag = 'sflag constant byte address 0x0 - dummy sync flag']
  #allocation13 [shape = 'u32[]', space=smem, size = 0x4, offset = 0x44, fixed_abs, tag = 'smem constant byte address 0x44 - assertion arg 0']
  #allocation14 [shape = 'u32[]', space=smem, size = 0x4, offset = 0x48, fixed_abs, tag = 'smem constant byte address 0x48 - assertion arg 1']
  %s0 = inlined_call_operand.vmem [shape: bf16[8,1024], index: 0, kind: input, shape index: {}]
  %s1 = inlined_call_operand.hbm [shape: s8[1024,1024], index: 1, kind: input, shape index: {}]
  %s2 = inlined_call_operand.vmem [shape: f32[1,1024], index: 2, kind: input, shape index: {}]
  %s3 = inlined_call_operand.vmem [shape: f32[1,1024], index: 3, kind: input, shape index: {}]
  %s4 = inlined_call_operand.hbm [shape: s8[1024,1024], index: 4, kind: input, shape index: {}]
  %s5 = inlined_call_operand.vmem [shape: f32[1,1024], index: 5, kind: input, shape index: {}]
  %s6 = inlined_call_operand.vmem [shape: f32[1,1024], index: 6, kind: input, shape index: {}]
  %s7 = inlined_call_operand.hbm [shape: s8[1024,512], index: 7, kind: input, shape index: {}]
  %s8 = inlined_call_operand.vmem [shape: f32[1,512], index: 8, kind: input, shape index: {}]
  %s9 = inlined_call_operand.vmem [shape: f32[1,512], index: 9, kind: input, shape index: {}]
  %s10 = inlined_call_operand.hbm [shape: f32[8,512], index: 10, kind: output, shape index: {}]
  %s11 = sld [smem:[#allocation0]]
  $region66: #{mlp_forward.1} parent=0
    _
  %s13 = ssub.s32 1, %s11
  %s14 = scalar_select 0, %s13, %s11
  $region1: #{mlp_forward.1} parent=0
    #allocation5 [shape = 'u8[1048576]{0}', space=vmem, size = 0x100000, scoped, tag = 'input window, operand 1, single buffered']
    #allocation6 [shape = 's32[1]{0}', space=sflag, size = 0x4, scoped, tag = 'scoped memory for mlp_forward.1']
    #allocation7 [shape = 's32[1]{0}', space=sflag, size = 0x4, scoped, tag = 'scoped memory for mlp_forward.1']
    #allocation8 [shape = 'u8[1048576]{0}', space=vmem, size = 0x100000, scoped, tag = 'input window, operand 4, single buffered']
    #allocation9 [shape = 's32[1]{0}', space=sflag, size = 0x4, scoped, tag = 'scoped memory for mlp_forward.1']
    #allocation10 [shape = 'u8[16384]{0}', space=vmem, size = 0x4000, scoped, tag = 'output window, operand 0, single buffered']
    %15 = vsyncpa [#allocation6], 0
    %16 = vsyncpa [#allocation9], 0
    %17 = vsyncpa [#allocation7], 0
    // Predicated region
    $region2: #{mlp_forward.1} parent=1 // pred_check
      _
    $region3: #{mlp_forward.1} parent=1 // pred_check_branch
      %19 = sbr.rel (0) target = $region5
    $region4: #{mlp_forward.1} parent=1 // pred_region
      _
    $region5: #{mlp_forward.1} parent=1 // pred_fallthru
      _
    // Predicated region
    $region6: #{mlp_forward.1} parent=1 // pred_check
      _
    $region7: #{mlp_forward.1} parent=1 // pred_check_branch
      %21 = sbr.rel (0) target = $region9
    $region8: #{mlp_forward.1} parent=1 // pred_region
      %s23 = ssub.s32 32768, 32768
      %24 = vsyncadd [#allocation6], %s23
      %s25 = sshll.u32 [#allocation5], 4
      %s26 = int_to_ptr.vmem [resolvable:$true] %s25
      %31 = dma.hbm_to_vmem [thread:$0]  %s1, 32768, %s26, [#allocation6], 1024, 1024, 64
    $region9: #{mlp_forward.1} parent=1 // pred_fallthru
      _
    // Predicated region
    $region10: #{mlp_forward.1} parent=1 // pred_check
      _
    $region11: #{mlp_forward.1} parent=1 // pred_check_branch
      %33 = sbr.rel (0) target = $region13
    $region12: #{mlp_forward.1} parent=1 // pred_region
      _
    $region13: #{mlp_forward.1} parent=1 // pred_fallthru
      _
    // Predicated region
    $region14: #{mlp_forward.1} parent=1 // pred_check
      _
    $region15: #{mlp_forward.1} parent=1 // pred_check_branch
      %35 = sbr.rel (0) target = $region17
    $region16: #{mlp_forward.1} parent=1 // pred_region
      _
    $region17: #{mlp_forward.1} parent=1 // pred_fallthru
      _
    // Predicated region
    $region18: #{mlp_forward.1} parent=1 // pred_check
      _
    $region19: #{mlp_forward.1} parent=1 // pred_check_branch
      %37 = sbr.rel (0) target = $region21
    $region20: #{mlp_forward.1} parent=1 // pred_region
      %s39 = ssub.s32 32768, 32768
      %40 = vsyncadd [#allocation9], %s39
      %s41 = sshll.u32 [#allocation8], 4
      %s42 = int_to_ptr.vmem [resolvable:$true] %s41
      %47 = dma.hbm_to_vmem [thread:$0]  %s4, 32768, %s42, [#allocation9], 1024, 1024, 64
    $region21: #{mlp_forward.1} parent=1 // pred_fallthru
      _
    // Predicated region
    $region22: #{mlp_forward.1} parent=1 // pred_check
      _
    $region23: #{mlp_forward.1} parent=1 // pred_check_branch
      %49 = sbr.rel (0) target = $region25
    $region24: #{mlp_forward.1} parent=1 // pred_region
      _
    $region25: #{mlp_forward.1} parent=1 // pred_fallthru
      _
    // Predicated region
    $region26: #{mlp_forward.1} parent=1 // pred_check
      _
    $region27: #{mlp_forward.1} parent=1 // pred_check_branch
      %51 = sbr.rel (0) target = $region29
    $region28: #{mlp_forward.1} parent=1 // pred_region
      _
    $region29: #{mlp_forward.1} parent=1 // pred_fallthru
      _
    // Predicated region
    $region30: #{mlp_forward.1} parent=1 // pred_check
      _
    $region31: #{mlp_forward.1} parent=1 // pred_check_branch
      %53 = sbr.rel (0) target = $region33
    $region32: #{mlp_forward.1} parent=1 // pred_region
      _
    $region33: #{mlp_forward.1} parent=1 // pred_fallthru
      _
    // Predicated region
    $region34: #{mlp_forward.1} parent=1 // pred_check
      _
    $region35: #{mlp_forward.1} parent=1 // pred_check_branch
      %55 = sbr.rel (0) target = $region37
    $region36: #{mlp_forward.1} parent=1 // pred_region
      _
    $region37: #{mlp_forward.1} parent=1 // pred_fallthru
      _
    // Predicated region
    $region38: #{mlp_forward.1} parent=1 // pred_check
      _
    $region39: #{mlp_forward.1} parent=1 // pred_check_branch
      %57 = sbr.rel (0) target = $region41
    $region40: #{mlp_forward.1} parent=1 // pred_region
      %58 = dma.done [#allocation6], 32768
    $region41: #{mlp_forward.1} parent=1 // pred_fallthru
      _
    // Predicated region
    $region42: #{mlp_forward.1} parent=1 // pred_check
      _
    $region43: #{mlp_forward.1} parent=1 // pred_check_branch
      %60 = sbr.rel (0) target = $region45
    $region44: #{mlp_forward.1} parent=1 // pred_region
      %61 = dma.done [#allocation9], 32768
    $region45: #{mlp_forward.1} parent=1 // pred_fallthru
      _
    %p62 = scmp.eq.s32.totalorder 0, 0
    // Predicated region
    $region46: #{mlp_forward.1} parent=1 // pred_check
      %p63 = pneg %p62
    $region47: #{mlp_forward.1} parent=1 // pred_check_branch
      %65 = sbr.rel (%p63) target = $region49
    $region48: #{mlp_forward.1} parent=1 // pred_region
      %66 = vst [vmem:[#allocation2] sm:$0xff] 0.0
      %67 = vst [vmem:[#allocation2 + $0x8] sm:$0xff] 0.0
      %68 = vst [vmem:[#allocation2 + $0x10] sm:$0xff] 0.0
      %69 = vst [vmem:[#allocation2 + $0x18] sm:$0xff] 0.0
      %70 = vst [vmem:[#allocation2 + $0x20] sm:$0xff] 0.0
      %71 = vst [vmem:[#allocation2 + $0x28] sm:$0xff] 0.0
      %72 = vst [vmem:[#allocation2 + $0x30] sm:$0xff] 0.0
      %73 = vst [vmem:[#allocation2 + $0x38] sm:$0xff] 0.0
      // Predicated region
      $region50: #{mlp_forward.1} parent=48 // pred_check
        _
      $region51: #{mlp_forward.1} parent=48 // pred_check_branch
        %75 = sbr.rel target = $region53
      $region52: #{mlp_forward.1} parent=48 // pred_region
        %76 = sst [smem:[#allocation13]] [#allocation12]
        %77 = sst [smem:[#allocation14]] [#allocation11]
      $region53: #{mlp_forward.1} parent=48 // pred_fallthru
        _
      %79 = shalt.err (0)
      %s81 = sshll.u32 [#allocation3], 4
      %s82 = int_to_ptr.vmem [resolvable:$true] %s81
      %84 = dma.hbm_to_vmem [thread:$0]  %s7, 16384, %s82, [#allocation4]
    $region49: #{mlp_forward.1} parent=1 // pred_fallthru
      _
    %v85 = vld [vmem:[%s0] sm:$0xff]
    %v86 = vld [vmem:[%s0 + $0x8] sm:$0xff]
    %v87 = vld [vmem:[%s0 + $0x10] sm:$0xff]
    %v88 = vld [vmem:[%s0 + $0x18] sm:$0xff]
    %v89 = vld [vmem:[#allocation5] sm:$0xff]
    %v90 = vld [vmem:[#allocation5 + $0x8] sm:$0xff]
    %v91 = vld [vmem:[#allocation5 + $0x10] sm:$0xff]
    %v92 = vld [vmem:[#allocation5 + $0x18] sm:$0xff]
    %v93 = vld [vmem:[#allocation5 + $0x20] sm:$0xff]
    %v94 = vld [vmem:[#allocation5 + $0x28] sm:$0xff]
    %v95 = vld [vmem:[#allocation5 + $0x30] sm:$0xff]
    %v96 = vld [vmem:[#allocation5 + $0x38] sm:$0xff]
    %v97 = vld [vmem:[#allocation5 + $0x40] sm:$0xff]
    %v98 = vld [vmem:[#allocation5 + $0x48] sm:$0xff]
    %v99 = vld [vmem:[#allocation5 + $0x50] sm:$0xff]
    %v100 = vld [vmem:[#allocation5 + $0x58] sm:$0xff]
    %v101 = vld [vmem:[#allocation5 + $0x60] sm:$0xff]
    %v102 = vld [vmem:[#allocation5 + $0x68] sm:$0xff]
    %v103 = vld [vmem:[#allocation5 + $0x70] sm:$0xff]
    %v104 = vld [vmem:[#allocation5 + $0x78] sm:$0xff]
    %v105 = vld [vmem:[#allocation5 + $0x80] sm:$0xff]
    %v106 = vld [vmem:[#allocation5 + $0x88] sm:$0xff]
    %v107 = vld [vmem:[#allocation5 + $0x90] sm:$0xff]
    %v108 = vld [vmem:[#allocation5 + $0x98] sm:$0xff]
    %v109 = vld [vmem:[#allocation5 + $0xa0] sm:$0xff]
    %v110 = vld [vmem:[#allocation5 + $0xa8] sm:$0xff]
    %v111 = vld [vmem:[#allocation5 + $0xb0] sm:$0xff]
    %v112 = vld [vmem:[#allocation5 + $0xb8] sm:$0xff]
    %v113 = vld [vmem:[#allocation5 + $0xc0] sm:$0xff]
    %v114 = vld [vmem:[#allocation5 + $0xc8] sm:$0xff]
    %v115 = vld [vmem:[#allocation5 + $0xd0] sm:$0xff]
    %v116 = vld [vmem:[#allocation5 + $0xd8] sm:$0xff]
    %v117 = vld [vmem:[#allocation5 + $0xe0] sm:$0xff]
    %v118 = vld [vmem:[#allocation5 + $0xe8] sm:$0xff]
    %v119 = vld [vmem:[#allocation5 + $0xf0] sm:$0xff]
    %v120 = vld [vmem:[#allocation5 + $0xf8] sm:$0xff]
    %v121 = vld [vmem:[#allocation5 + $0x100] sm:$0xff]
    %v122 = vld [vmem:[#allocation5 + $0x108] sm:$0xff]
    %v123 = vld [vmem:[#allocation5 + $0x110] sm:$0xff]
    %v124 = vld [vmem:[#allocation5 + $0x118] sm:$0xff]
    %v125 = vld [vmem:[#allocation5 + $0x120] sm:$0xff]
    %v126 = vld [vmem:[#allocation5 + $0x128] sm:$0xff]
    %v127 = vld [vmem:[#allocation5 + $0x130] sm:$0xff]
    %v128 = vld [vmem:[#allocation5 + $0x138] sm:$0xff]
    %v129 = vld [vmem:[#allocation5 + $0x140] sm:$0xff]
    %v130 = vld [vmem:[#allocation5 + $0x148] sm:$0xff]
    %v131 = vld [vmem:[#allocation5 + $0x150] sm:$0xff]
    %v132 = vld [vmem:[#allocation5 + $0x158] sm:$0xff]
    %v133 = vld [vmem:[#allocation5 + $0x160] sm:$0xff]
    %v134 = vld [vmem:[#allocation5 + $0x168] sm:$0xff]
    %v135 = vld [vmem:[#allocation5 + $0x170] sm:$0xff]
    %v136 = vld [vmem:[#allocation5 + $0x178] sm:$0xff]
    %v137 = vld [vmem:[#allocation5 + $0x180] sm:$0xff]
    %v138 = vld [vmem:[#allocation5 + $0x188] sm:$0xff]
    %v139 = vld [vmem:[#allocation5 + $0x190] sm:$0xff]
    %v140 = vld [vmem:[#allocation5 + $0x198] sm:$0xff]
    %v141 = vld [vmem:[#allocation5 + $0x1a0] sm:$0xff]
    %v142 = vld [vmem:[#allocation5 + $0x1a8] sm:$0xff]
    %v143 = vld [vmem:[#allocation5 + $0x1b0] sm:$0xff]
    %v144 = vld [vmem:[#allocation5 + $0x1b8] sm:$0xff]
    %v145 = vld [vmem:[#allocation5 + $0x1c0] sm:$0xff]
    %v146 = vld [vmem:[#allocation5 + $0x1c8] sm:$0xff]
    %v147 = vld [vmem:[#allocation5 + $0x1d0] sm:$0xff]
    %v148 = vld [vmem:[#allocation5 + $0x1d8] sm:$0xff]
    %v149 = vld [vmem:[#allocation5 + $0x1e0] sm:$0xff]
    %v150 = vld [vmem:[#allocation5 + $0x1e8] sm:$0xff]
    %v151 = vld [vmem:[#allocation5 + $0x1f0] sm:$0xff]
    %v152 = vld [vmem:[#allocation5 + $0x1f8] sm:$0xff]
    %v153 = vld [vmem:[#allocation5 + $0x200] sm:$0xff]
    %v154 = vld [vmem:[#allocation5 + $0x208] sm:$0xff]
    %v155 = vld [vmem:[#allocation5 + $0x210] sm:$0xff]
    %v156 = vld [vmem:[#allocation5 + $0x218] sm:$0xff]
    %v157 = vld [vmem:[#allocation5 + $0x220] sm:$0xff]
    %v158 = vld [vmem:[#allocation5 + $0x228] sm:$0xff]
    %v159 = vld [vmem:[#allocation5 + $0x230] sm:$0xff]
    %v160 = vld [vmem:[#allocation5 + $0x238] sm:$0xff]
    %v161 = vld [vmem:[#allocation5 + $0x240] sm:$0xff]
    %v162 = vld [vmem:[#allocation5 + $0x248] sm:$0xff]
    %v163 = vld [vmem:[#allocation5 + $0x250] sm:$0xff]
    %v164 = vld [vmem:[#allocation5 + $0x258] sm:$0xff]
    %v165 = vld [vmem:[#allocation5 + $0x260] sm:$0xff]
    %v166 = vld [vmem:[#allocation5 + $0x268] sm:$0xff]
    %v167 = vld [vmem:[#allocation5 + $0x270] sm:$0xff]
    %v168 = vld [vmem:[#allocation5 + $0x278] sm:$0xff]
    %v169 = vld [vmem:[#allocation5 + $0x280] sm:$0xff]
    %v170 = vld [vmem:[#allocation5 + $0x288] sm:$0xff]
    %v171 = vld [vmem:[#allocation5 + $0x290] sm:$0xff]
    %v172 = vld [vmem:[#allocation5 + $0x298] sm:$0xff]
    %v173 = vld [vmem:[#allocation5 + $0x2a0] sm:$0xff]
    %v174 = vld [vmem:[#allocation5 + $0x2a8] sm:$0xff]
    %v175 = vld [vmem:[#allocation5 + $0x2b0] sm:$0xff]
    %v176 = vld [vmem:[#allocation5 + $0x2b8] sm:$0xff]
    %v177 = vld [vmem:[#allocation5 + $0x2c0] sm:$0xff]
    %v178 = vld [vmem:[#allocation5 + $0x2c8] sm:$0xff]
    %v179 = vld [vmem:[#allocation5 + $0x2d0] sm:$0xff]
    %v180 = vld [vmem:[#allocation5 + $0x2d8] sm:$0xff]
    %v181 = vld [vmem:[#allocation5 + $0x2e0] sm:$0xff]
    %v182 = vld [vmem:[#allocation5 + $0x2e8] sm:$0xff]
    %v183 = vld [vmem:[#allocation5 + $0x2f0] sm:$0xff]
    %v184 = vld [vmem:[#allocation5 + $0x2f8] sm:$0xff]
    %v185 = vld [vmem:[#allocation5 + $0x300] sm:$0xff]
    %v186 = vld [vmem:[#allocation5 + $0x308] sm:$0xff]
    %v187 = vld [vmem:[#allocation5 + $0x310] sm:$0xff]
    %v188 = vld [vmem:[#allocation5 + $0x318] sm:$0xff]
    %v189 = vld [vmem:[#allocation5 + $0x320] sm:$0xff]
    %v190 = vld [vmem:[#allocation5 + $0x328] sm:$0xff]
    %v191 = vld [vmem:[#allocation5 + $0x330] sm:$0xff]
    %v192 = vld [vmem:[#allocation5 + $0x338] sm:$0xff]
    %v193 = vld [vmem:[#allocation5 + $0x340] sm:$0xff]
    %v194 = vld [vmem:[#allocation5 + $0x348] sm:$0xff]
    %v195 = vld [vmem:[#allocation5 + $0x350] sm:$0xff]
    %v196 = vld [vmem:[#allocation5 + $0x358] sm:$0xff]
    %v197 = vld [vmem:[#allocation5 + $0x360] sm:$0xff]
    %v198 = vld [vmem:[#allocation5 + $0x368] sm:$0xff]
    %v199 = vld [vmem:[#allocation5 + $0x370] sm:$0xff]
    %v200 = vld [vmem:[#allocation5 + $0x378] sm:$0xff]
    %v201 = vld [vmem:[#allocation5 + $0x380] sm:$0xff]
    %v202 = vld [vmem:[#allocation5 + $0x388] sm:$0xff]
    %v203 = vld [vmem:[#allocation5 + $0x390] sm:$0xff]
    %v204 = vld [vmem:[#allocation5 + $0x398] sm:$0xff]
    %v205 = vld [vmem:[#allocation5 + $0x3a0] sm:$0xff]
    %v206 = vld [vmem:[#allocation5 + $0x3a8] sm:$0xff]
    %v207 = vld [vmem:[#allocation5 + $0x3b0] sm:$0xff]
    %v208 = vld [vmem:[#allocation5 + $0x3b8] sm:$0xff]
    %v209 = vld [vmem:[#allocation5 + $0x3c0] sm:$0xff]
    %v210 = vld [vmem:[#allocation5 + $0x3c8] sm:$0xff]
    %v211 = vld [vmem:[#allocation5 + $0x3d0] sm:$0xff]
    %v212 = vld [vmem:[#allocation5 + $0x3d8] sm:$0xff]
    %v213 = vld [vmem:[#allocation5 + $0x3e0] sm:$0xff]
    %v214 = vld [vmem:[#allocation5 + $0x3e8] sm:$0xff]
    %v215 = vld [vmem:[#allocation5 + $0x3f0] sm:$0xff]
    %v216 = vld [vmem:[#allocation5 + $0x3f8] sm:$0xff]
    %v217 = vld [vmem:[#allocation5 + $0x400] sm:$0xff]
    %v218 = vld [vmem:[#allocation5 + $0x408] sm:$0xff]
    %v219 = vld [vmem:[#allocation5 + $0x410] sm:$0xff]
    %v220 = vld [vmem:[#allocation5 + $0x418] sm:$0xff]
    %v221 = vld [vmem:[#allocation5 + $0x420] sm:$0xff]
    %v222 = vld [vmem:[#allocation5 + $0x428] sm:$0xff]
    %v223 = vld [vmem:[#allocation5 + $0x430] sm:$0xff]
    %v224 = vld [vmem:[#allocation5 + $0x438] sm:$0xff]
    %v225 = vld [vmem:[#allocation5 + $0x440] sm:$0xff]
    %v226 = vld [vmem:[#allocation5 + $0x448] sm:$0xff]
    %v227 = vld [vmem:[#allocation5 + $0x450] sm:$0xff]
    %v228 = vld [vmem:[#allocation5 + $0x458] sm:$0xff]
    %v229 = vld [vmem:[#allocation5 + $0x460] sm:$0xff]
    %v230 = vld [vmem:[#allocation5 + $0x468] sm:$0xff]
    %v231 = vld [vmem:[#allocation5 + $0x470] sm:$0xff]
    %v232 = vld [vmem:[#allocation5 + $0x478] sm:$0xff]
    %v233 = vld [vmem:[#allocation5 + $0x480] sm:$0xff]
    %v234 = vld [vmem:[#allocation5 + $0x488] sm:$0xff]
    %v235 = vld [vmem:[#allocation5 + $0x490] sm:$0xff]
    %v236 = vld [vmem:[#allocation5 + $0x498] sm:$0xff]
    %v237 = vld [vmem:[#allocation5 + $0x4a0] sm:$0xff]
    %v238 = vld [vmem:[#allocation5 + $0x4a8] sm:$0xff]
    %v239 = vld [vmem:[#allocation5 + $0x4b0] sm:$0xff]
    %v240 = vld [vmem:[#allocation5 + $0x4b8] sm:$0xff]
    %v241 = vld [vmem:[#allocation5 + $0x4c0] sm:$0xff]
    %v242 = vld [vmem:[#allocation5 + $0x4c8] sm:$0xff]
    %v243 = vld [vmem:[#allocation5 + $0x4d0] sm:$0xff]
    %v244 = vld [vmem:[#allocation5 + $0x4d8] sm:$0xff]
    %v245 = vld [vmem:[#allocation5 + $0x4e0] sm:$0xff]
    %v246 = vld [vmem:[#allocation5 + $0x4e8] sm:$0xff]
    %v247 = vld [vmem:[#allocation5 + $0x4f0] sm:$0xff]
    %v248 = vld [vmem:[#allocation5 + $0x4f8] sm:$0xff]
    %v249 = vld [vmem:[#allocation5 + $0x500] sm:$0xff]
    %v250 = vld [vmem:[#allocation5 + $0x508] sm:$0xff]
    %v251 = vld [vmem:[#allocation5 + $0x510] sm:$0xff]
    %v252 = vld [vmem:[#allocation5 + $0x518] sm:$0xff]
    %v253 = vld [vmem:[#allocation5 + $0x520] sm:$0xff]
    %v254 = vld [vmem:[#allocation5 + $0x528] sm:$0xff]
    %v255 = vld [vmem:[#allocation5 + $0x530] sm:$0xff]
    %v256 = vld [vmem:[#allocation5 + $0x538] sm:$0xff]
    %v257 = vld [vmem:[#allocation5 + $0x540] sm:$0xff]
    %v258 = vld [vmem:[#allocation5 + $0x548] sm:$0xff]
    %v259 = vld [vmem:[#allocation5 + $0x550] sm:$0xff]
    %v260 = vld [vmem:[#allocation5 + $0x558] sm:$0xff]
    %v261 = vld [vmem:[#allocation5 + $0x560] sm:$0xff]
    %v262 = vld [vmem:[#allocation5 + $0x568] sm:$0xff]
    %v263 = vld [vmem:[#allocation5 + $0x570] sm:$0xff]
    %v264 = vld [vmem:[#allocation5 + $0x578] sm:$0xff]
    %v265 = vld [vmem:[#allocation5 + $0x580] sm:$0xff]
    %v266 = vld [vmem:[#allocation5 + $0x588] sm:$0xff]
    %v267 = vld [vmem:[#allocation5 + $0x590] sm:$0xff]
    %v268 = vld [vmem:[#allocation5 + $0x598] sm:$0xff]
    %v269 = vld [vmem:[#allocation5 + $0x5a0] sm:$0xff]
    %v270 = vld [vmem:[#allocation5 + $0x5a8] sm:$0xff]
    %v271 = vld [vmem:[#allocation5 + $0x5b0] sm:$0xff]
    %v272 = vld [vmem:[#allocation5 + $0x5b8] sm:$0xff]
    %v273 = vld [vmem:[#allocation5 + $0x5c0] sm:$0xff]
    %v274 = vld [vmem:[#allocation5 + $0x5c8] sm:$0xff]
    %v275 = vld [vmem:[#allocation5 + $0x5d0] sm:$0xff]
    %v276 = vld [vmem:[#allocation5 + $0x5d8] sm:$0xff]
    %v277 = vld [vmem:[#allocation5 + $0x5e0] sm:$0xff]
    %v278 = vld [vmem:[#allocation5 + $0x5e8] sm:$0xff]
    %v279 = vld [vmem:[#allocation5 + $0x5f0] sm:$0xff]
    %v280 = vld [vmem:[#allocation5 + $0x5f8] sm:$0xff]
    %v281 = vld [vmem:[#allocation5 + $0x600] sm:$0xff]
    %v282 = vld [vmem:[#allocation5 + $0x608] sm:$0xff]
    %v283 = vld [vmem:[#allocation5 + $0x610] sm:$0xff]
    %v284 = vld [vmem:[#allocation5 + $0x618] sm:$0xff]
    %v285 = vld [vmem:[#allocation5 + $0x620] sm:$0xff]
    %v286 = vld [vmem:[#allocation5 + $0x628] sm:$0xff]
    %v287 = vld [vmem:[#allocation5 + $0x630] sm:$0xff]
    %v288 = vld [vmem:[#allocation5 + $0x638] sm:$0xff]
    %v289 = vld [vmem:[#allocation5 + $0x640] sm:$0xff]
    %v290 = vld [vmem:[#allocation5 + $0x648] sm:$0xff]
    %v291 = vld [vmem:[#allocation5 + $0x650] sm:$0xff]
    %v292 = vld [vmem:[#allocation5 + $0x658] sm:$0xff]
    %v293 = vld [vmem:[#allocation5 + $0x660] sm:$0xff]
    %v294 = vld [vmem:[#allocation5 + $0x668] sm:$0xff]
    %v295 = vld [vmem:[#allocation5 + $0x670] sm:$0xff]
    %v296 = vld [vmem:[#allocation5 + $0x678] sm:$0xff]
    %v297 = vld [vmem:[#allocation5 + $0x680] sm:$0xff]
    %v298 = vld [vmem:[#allocation5 + $0x688] sm:$0xff]
    %v299 = vld [vmem:[#allocation5 + $0x690] sm:$0xff]
    %v300 = vld [vmem:[#allocation5 + $0x698] sm:$0xff]
    %v301 = vld [vmem:[#allocation5 + $0x6a0] sm:$0xff]
    %v302 = vld [vmem:[#allocation5 + $0x6a8] sm:$0xff]
    %v303 = vld [vmem:[#allocation5 + $0x6b0] sm:$0xff]
    %v304 = vld [vmem:[#allocation5 + $0x6b8] sm:$0xff]
    %v305 = vld [vmem:[#allocation5 + $0x6c0] sm:$0xff]
    %v306 = vld [vmem:[#allocation5 + $0x6c8] sm:$0xff]
    %v307 = vld [vmem:[#allocation5 + $0x6d0] sm:$0xff]
    %v308 = vld [vmem:[#allocation5 + $0x6d8] sm:$0xff]
    %v309 = vld [vmem:[#allocation5 + $0x6e0] sm:$0xff]
    %v310 = vld [vmem:[#allocation5 + $0x6e8] sm:$0xff]
    %v311 = vld [vmem:[#allocation5 + $0x6f0] sm:$0xff]
    %v312 = vld [vmem:[#allocation5 + $0x6f8] sm:$0xff]
    %v313 = vld [vmem:[#allocation5 + $0x700] sm:$0xff]
    %v314 = vld [vmem:[#allocation5 + $0x708] sm:$0xff]
    %v315 = vld [vmem:[#allocation5 + $0x710] sm:$0xff]
    %v316 = vld [vmem:[#allocation5 + $0x718] sm:$0xff]
    %v317 = vld [vmem:[#allocation5 + $0x720] sm:$0xff]
    %v318 = vld [vmem:[#allocation5 + $0x728] sm:$0xff]
    %v319 = vld [vmem:[#allocation5 + $0x730] sm:$0xff]
    %v320 = vld [vmem:[#allocation5 + $0x738] sm:$0xff]
    %v321 = vld [vmem:[#allocation5 + $0x740] sm:$0xff]
    %v322 = vld [vmem:[#allocation5 + $0x748] sm:$0xff]
    %v323 = vld [vmem:[#allocation5 + $0x750] sm:$0xff]
    %v324 = vld [vmem:[#allocation5 + $0x758] sm:$0xff]
    %v325 = vld [vmem:[#allocation5 + $0x760] sm:$0xff]
    %v326 = vld [vmem:[#allocation5 + $0x768] sm:$0xff]
    %v327 = vld [vmem:[#allocation5 + $0x770] sm:$0xff]
    %v328 = vld [vmem:[#allocation5 + $0x778] sm:$0xff]
    %v329 = vld [vmem:[#allocation5 + $0x780] sm:$0xff]
    %v330 = vld [vmem:[#allocation5 + $0x788] sm:$0xff]
    %v331 = vld [vmem:[#allocation5 + $0x790] sm:$0xff]
    %v332 = vld [vmem:[#allocation5 + $0x798] sm:$0xff]
    %v333 = vld [vmem:[#allocation5 + $0x7a0] sm:$0xff]
    %v334 = vld [vmem:[#allocation5 + $0x7a8] sm:$0xff]
    %v335 = vld [vmem:[#allocation5 + $0x7b0] sm:$0xff]
    %v336 = vld [vmem:[#allocation5 + $0x7b8] sm:$0xff]
    %v337 = vld [vmem:[#allocation5 + $0x7c0] sm:$0xff]
    %v338 = vld [vmem:[#allocation5 + $0x7c8] sm:$0xff]
    %v339 = vld [vmem:[#allocation5 + $0x7d0] sm:$0xff]
    %v340 = vld [vmem:[#allocation5 + $0x7d8] sm:$0xff]
    %v341 = vld [vmem:[#allocation5 + $0x7e0] sm:$0xff]
    %v342 = vld [vmem:[#allocation5 + $0x7e8] sm:$0xff]
    %v343 = vld [vmem:[#allocation5 + $0x7f0] sm:$0xff]
    %v344 = vld [vmem:[#allocation5 + $0x7f8] sm:$0xff]
    %v345 = vunpack.c.l.s8.bf16 %v89
    %v346 = vunpack.c.l.s8.bf16 %v90
    %v347 = vunpack.c.l.s8.bf16 %v91
    %v348 = vunpack.c.l.s8.bf16 %v92
    %v349 = vunpack.c.l.s8.bf16 %v93
    %v350 = vunpack.c.l.s8.bf16 %v94
    %v351 = vunpack.c.l.s8.bf16 %v95
    %v352 = vunpack.c.l.s8.bf16 %v96
    %v353 = vunpack.c.h.s8.bf16 %v89
    %v354 = vunpack.c.h.s8.bf16 %v90
    %v355 = vunpack.c.h.s8.bf16 %v91
    %v356 = vunpack.c.h.s8.bf16 %v92
    %v357 = vunpack.c.h.s8.bf16 %v93
    %v358 = vunpack.c.h.s8.bf16 %v94
    %v359 = vunpack.c.h.s8.bf16 %v95
    %v360 = vunpack.c.h.s8.bf16 %v96
    %v361 = vunpack.c.l.s8.bf16 %v97
    %v362 = vunpack.c.l.s8.bf16 %v98
    %v363 = vunpack.c.l.s8.bf16 %v99
    %v364 = vunpack.c.l.s8.bf16 %v100
    %v365 = vunpack.c.l.s8.bf16 %v101
    %v366 = vunpack.c.l.s8.bf16 %v102
    %v367 = vunpack.c.l.s8.bf16 %v103
    %v368 = vunpack.c.l.s8.bf16 %v104
    %v369 = vunpack.c.h.s8.bf16 %v97
    %v370 = vunpack.c.h.s8.bf16 %v98
    %v371 = vunpack.c.h.s8.bf16 %v99
    %v372 = vunpack.c.h.s8.bf16 %v100
    %v373 = vunpack.c.h.s8.bf16 %v101
    %v374 = vunpack.c.h.s8.bf16 %v102
    %v375 = vunpack.c.h.s8.bf16 %v103
    %v376 = vunpack.c.h.s8.bf16 %v104
    %v377 = vunpack.c.l.s8.bf16 %v105
    %v378 = vunpack.c.l.s8.bf16 %v106
    %v379 = vunpack.c.l.s8.bf16 %v107
    %v380 = vunpack.c.l.s8.bf16 %v108
    %v381 = vunpack.c.l.s8.bf16 %v109
    %v382 = vunpack.c.l.s8.bf16 %v110
    %v383 = vunpack.c.l.s8.bf16 %v111
    %v384 = vunpack.c.l.s8.bf16 %v112
    %v385 = vunpack.c.h.s8.bf16 %v105
    %v386 = vunpack.c.h.s8.bf16 %v106
    %v387 = vunpack.c.h.s8.bf16 %v107
    %v388 = vunpack.c.h.s8.bf16 %v108
    %v389 = vunpack.c.h.s8.bf16 %v109
    %v390 = vunpack.c.h.s8.bf16 %v110
    %v391 = vunpack.c.h.s8.bf16 %v111
    %v392 = vunpack.c.h.s8.bf16 %v112
    %v393 = vunpack.c.l.s8.bf16 %v113
    %v394 = vunpack.c.l.s8.bf16 %v114
    %v395 = vunpack.c.l.s8.bf16 %v115
    %v396 = vunpack.c.l.s8.bf16 %v116
    %v397 = vunpack.c.l.s8.bf16 %v117
    %v398 = vunpack.c.l.s8.bf16 %v118
    %v399 = vunpack.c.l.s8.bf16 %v119
    %v400 = vunpack.c.l.s8.bf16 %v120
    %v401 = vunpack.c.h.s8.bf16 %v113
    %v402 = vunpack.c.h.s8.bf16 %v114
    %v403 = vunpack.c.h.s8.bf16 %v115
    %v404 = vunpack.c.h.s8.bf16 %v116
    %v405 = vunpack.c.h.s8.bf16 %v117
    %v406 = vunpack.c.h.s8.bf16 %v118
    %v407 = vunpack.c.h.s8.bf16 %v119
    %v408 = vunpack.c.h.s8.bf16 %v120
    %v409 = vunpack.c.l.s8.bf16 %v121
    %v410 = vunpack.c.l.s8.bf16 %v122
    %v411 = vunpack.c.l.s8.bf16 %v123
    %v412 = vunpack.c.l.s8.bf16 %v124
    %v413 = vunpack.c.l.s8.bf16 %v125
    %v414 = vunpack.c.l.s8.bf16 %v126
    %v415 = vunpack.c.l.s8.bf16 %v127
    %v416 = vunpack.c.l.s8.bf16 %v128
    %v417 = vunpack.c.h.s8.bf16 %v121
    %v418 = vunpack.c.h.s8.bf16 %v122
    %v419 = vunpack.c.h.s8.bf16 %v123
    %v420 = vunpack.c.h.s8.bf16 %v124
    %v421 = vunpack.c.h.s8.bf16 %v125
    %v422 = vunpack.c.h.s8.bf16 %v126
    %v423 = vunpack.c.h.s8.bf16 %v127
    %v424 = vunpack.c.h.s8.bf16 %v128
    %v425 = vunpack.c.l.s8.bf16 %v129
    %v426 = vunpack.c.l.s8.bf16 %v130
    %v427 = vunpack.c.l.s8.bf16 %v131
    %v428 = vunpack.c.l.s8.bf16 %v132
    %v429 = vunpack.c.l.s8.bf16 %v133
    %v430 = vunpack.c.l.s8.bf16 %v134
    %v431 = vunpack.c.l.s8.bf16 %v135
    %v432 = vunpack.c.l.s8.bf16 %v136
    %v433 = vunpack.c.h.s8.bf16 %v129
    %v434 = vunpack.c.h.s8.bf16 %v130
    %v435 = vunpack.c.h.s8.bf16 %v131
    %v436 = vunpack.c.h.s8.bf16 %v132
    %v437 = vunpack.c.h.s8.bf16 %v133
    %v438 = vunpack.c.h.s8.bf16 %v134
    %v439 = vunpack.c.h.s8.bf16 %v135
    %v440 = vunpack.c.h.s8.bf16 %v136
    %v441 = vunpack.c.l.s8.bf16 %v137
    %v442 = vunpack.c.l.s8.bf16 %v138
    %v443 = vunpack.c.l.s8.bf16 %v139
    %v444 = vunpack.c.l.s8.bf16 %v140
    %v445 = vunpack.c.l.s8.bf16 %v141
    %v446 = vunpack.c.l.s8.bf16 %v142
    %v447 = vunpack.c.l.s8.bf16 %v143
    %v448 = vunpack.c.l.s8.bf16 %v144
    %v449 = vunpack.c.h.s8.bf16 %v137
    %v450 = vunpack.c.h.s8.bf16 %v138
    %v451 = vunpack.c.h.s8.bf16 %v139
    %v452 = vunpack.c.h.s8.bf16 %v140
    %v453 = vunpack.c.h.s8.bf16 %v141
    %v454 = vunpack.c.h.s8.bf16 %v142
    %v455 = vunpack.c.h.s8.bf16 %v143
    %v456 = vunpack.c.h.s8.bf16 %v144
    %v457 = vunpack.c.l.s8.bf16 %v145
    %v458 = vunpack.c.l.s8.bf16 %v146
    %v459 = vunpack.c.l.s8.bf16 %v147
    %v460 = vunpack.c.l.s8.bf16 %v148
    %v461 = vunpack.c.l.s8.bf16 %v149
    %v462 = vunpack.c.l.s8.bf16 %v150
    %v463 = vunpack.c.l.s8.bf16 %v151
    %v464 = vunpack.c.l.s8.bf16 %v152
    %v465 = vunpack.c.h.s8.bf16 %v145
    %v466 = vunpack.c.h.s8.bf16 %v146
    %v467 = vunpack.c.h.s8.bf16 %v147
    %v468 = vunpack.c.h.s8.bf16 %v148
    %v469 = vunpack.c.h.s8.bf16 %v149
    %v470 = vunpack.c.h.s8.bf16 %v150
    %v471 = vunpack.c.h.s8.bf16 %v151
    %v472 = vunpack.c.h.s8.bf16 %v152
    %v473 = vunpack.c.l.s8.bf16 %v153
    %v474 = vunpack.c.l.s8.bf16 %v154
    %v475 = vunpack.c.l.s8.bf16 %v155
    %v476 = vunpack.c.l.s8.bf16 %v156
    %v477 = vunpack.c.l.s8.bf16 %v157
    %v478 = vunpack.c.l.s8.bf16 %v158
    %v479 = vunpack.c.l.s8.bf16 %v159
    %v480 = vunpack.c.l.s8.bf16 %v160
    %v481 = vunpack.c.h.s8.bf16 %v153
    %v482 = vunpack.c.h.s8.bf16 %v154
    %v483 = vunpack.c.h.s8.bf16 %v155
    %v484 = vunpack.c.h.s8.bf16 %v156
    %v485 = vunpack.c.h.s8.bf16 %v157
    %v486 = vunpack.c.h.s8.bf16 %v158
    %v487 = vunpack.c.h.s8.bf16 %v159
    %v488 = vunpack.c.h.s8.bf16 %v160
    %v489 = vunpack.c.l.s8.bf16 %v161
    %v490 = vunpack.c.l.s8.bf16 %v162
    %v491 = vunpack.c.l.s8.bf16 %v163
    %v492 = vunpack.c.l.s8.bf16 %v164
    %v493 = vunpack.c.l.s8.bf16 %v165
    %v494 = vunpack.c.l.s8.bf16 %v166
    %v495 = vunpack.c.l.s8.bf16 %v167
    %v496 = vunpack.c.l.s8.bf16 %v168
    %v497 = vunpack.c.h.s8.bf16 %v161
    %v498 = vunpack.c.h.s8.bf16 %v162
    %v499 = vunpack.c.h.s8.bf16 %v163
    %v500 = vunpack.c.h.s8.bf16 %v164
    %v501 = vunpack.c.h.s8.bf16 %v165
    %v502 = vunpack.c.h.s8.bf16 %v166
    %v503 = vunpack.c.h.s8.bf16 %v167
    %v504 = vunpack.c.h.s8.bf16 %v168
    %v505 = vunpack.c.l.s8.bf16 %v169
    %v506 = vunpack.c.l.s8.bf16 %v170
    %v507 = vunpack.c.l.s8.bf16 %v171
    %v508 = vunpack.c.l.s8.bf16 %v172
    %v509 = vunpack.c.l.s8.bf16 %v173
    %v510 = vunpack.c.l.s8.bf16 %v174
    %v511 = vunpack.c.l.s8.bf16 %v175
    %v512 = vunpack.c.l.s8.bf16 %v176
    %v513 = vunpack.c.h.s8.bf16 %v169
    %v514 = vunpack.c.h.s8.bf16 %v170
    %v515 = vunpack.c.h.s8.bf16 %v171
    %v516 = vunpack.c.h.s8.bf16 %v172
    %v517 = vunpack.c.h.s8.bf16 %v173
    %v518 = vunpack.c.h.s8.bf16 %v174
    %v519 = vunpack.c.h.s8.bf16 %v175
    %v520 = vunpack.c.h.s8.bf16 %v176
    %v521 = vunpack.c.l.s8.bf16 %v177
    %v522 = vunpack.c.l.s8.bf16 %v178
    %v523 = vunpack.c.l.s8.bf16 %v179
    %v524 = vunpack.c.l.s8.bf16 %v180
    %v525 = vunpack.c.l.s8.bf16 %v181
    %v526 = vunpack.c.l.s8.bf16 %v182
    %v527 = vunpack.c.l.s8.bf16 %v183
    %v528 = vunpack.c.l.s8.bf16 %v184
    %v529 = vunpack.c.h.s8.bf16 %v177
    %v530 = vunpack.c.h.s8.bf16 %v178
    %v531 = vunpack.c.h.s8.bf16 %v179
    %v532 = vunpack.c.h.s8.bf16 %v180
    %v533 = vunpack.c.h.s8.bf16 %v181
    %v534 = vunpack.c.h.s8.bf16 %v182
    %v535 = vunpack.c.h.s8.bf16 %v183
    %v536 = vunpack.c.h.s8.bf16 %v184
    %v537 = vunpack.c.l.s8.bf16 %v185
    %v538 = vunpack.c.l.s8.bf16 %v186
    %v539 = vunpack.c.l.s8.bf16 %v187
    %v540 = vunpack.c.l.s8.bf16 %v188
    %v541 = vunpack.c.l.s8.bf16 %v189
    %v542 = vunpack.c.l.s8.bf16 %v190
    %v543 = vunpack.c.l.s8.bf16 %v191
    %v544 = vunpack.c.l.s8.bf16 %v192
    %v545 = vunpack.c.h.s8.bf16 %v185
    %v546 = vunpack.c.h.s8.bf16 %v186
    %v547 = vunpack.c.h.s8.bf16 %v187
    %v548 = vunpack.c.h.s8.bf16 %v188
    %v549 = vunpack.c.h.s8.bf16 %v189
    %v550 = vunpack.c.h.s8.bf16 %v190
    %v551 = vunpack.c.h.s8.bf16 %v191
    %v552 = vunpack.c.h.s8.bf16 %v192
    %v553 = vunpack.c.l.s8.bf16 %v193
    %v554 = vunpack.c.l.s8.bf16 %v194
    %v555 = vunpack.c.l.s8.bf16 %v195
    %v556 = vunpack.c.l.s8.bf16 %v196
    %v557 = vunpack.c.l.s8.bf16 %v197
    %v558 = vunpack.c.l.s8.bf16 %v198
    %v559 = vunpack.c.l.s8.bf16 %v199
    %v560 = vunpack.c.l.s8.bf16 %v200
    %v561 = vunpack.c.h.s8.bf16 %v193
    %v562 = vunpack.c.h.s8.bf16 %v194
    %v563 = vunpack.c.h.s8.bf16 %v195
    %v564 = vunpack.c.h.s8.bf16 %v196
    %v565 = vunpack.c.h.s8.bf16 %v197
    %v566 = vunpack.c.h.s8.bf16 %v198
    %v567 = vunpack.c.h.s8.bf16 %v199
    %v568 = vunpack.c.h.s8.bf16 %v200
    %v569 = vunpack.c.l.s8.bf16 %v201
    %v570 = vunpack.c.l.s8.bf16 %v202
    %v571 = vunpack.c.l.s8.bf16 %v203
    %v572 = vunpack.c.l.s8.bf16 %v204
    %v573 = vunpack.c.l.s8.bf16 %v205
    %v574 = vunpack.c.l.s8.bf16 %v206
    %v575 = vunpack.c.l.s8.bf16 %v207
    %v576 = vunpack.c.l.s8.bf16 %v208
    %v577 = vunpack.c.h.s8.bf16 %v201
    %v578 = vunpack.c.h.s8.bf16 %v202
    %v579 = vunpack.c.h.s8.bf16 %v203
    %v580 = vunpack.c.h.s8.bf16 %v204
    %v581 = vunpack.c.h.s8.bf16 %v205
    %v582 = vunpack.c.h.s8.bf16 %v206
    %v583 = vunpack.c.h.s8.bf16 %v207
    %v584 = vunpack.c.h.s8.bf16 %v208
    %v585 = vunpack.c.l.s8.bf16 %v209
    %v586 = vunpack.c.l.s8.bf16 %v210
    %v587 = vunpack.c.l.s8.bf16 %v211
    %v588 = vunpack.c.l.s8.bf16 %v212
    %v589 = vunpack.c.l.s8.bf16 %v213
    %v590 = vunpack.c.l.s8.bf16 %v214
    %v591 = vunpack.c.l.s8.bf16 %v215
    %v592 = vunpack.c.l.s8.bf16 %v216
    %v593 = vunpack.c.h.s8.bf16 %v209
    %v594 = vunpack.c.h.s8.bf16 %v210
    %v595 = vunpack.c.h.s8.bf16 %v211
    %v596 = vunpack.c.h.s8.bf16 %v212
    %v597 = vunpack.c.h.s8.bf16 %v213
    %v598 = vunpack.c.h.s8.bf16 %v214
    %v599 = vunpack.c.h.s8.bf16 %v215
    %v600 = vunpack.c.h.s8.bf16 %v216
    %v601 = vunpack.c.l.s8.bf16 %v217
    %v602 = vunpack.c.l.s8.bf16 %v218
    %v603 = vunpack.c.l.s8.bf16 %v219
    %v604 = vunpack.c.l.s8.bf16 %v220
    %v605 = vunpack.c.l.s8.bf16 %v221
    %v606 = vunpack.c.l.s8.bf16 %v222
    %v607 = vunpack.c.l.s8.bf16 %v223
    %v608 = vunpack.c.l.s8.bf16 %v224
    %v609 = vunpack.c.h.s8.bf16 %v217
    %v610 = vunpack.c.h.s8.bf16 %v218
    %v611 = vunpack.c.h.s8.bf16 %v219
    %v612 = vunpack.c.h.s8.bf16 %v220
    %v613 = vunpack.c.h.s8.bf16 %v221
    %v614 = vunpack.c.h.s8.bf16 %v222
    %v615 = vunpack.c.h.s8.bf16 %v223
    %v616 = vunpack.c.h.s8.bf16 %v224
    %v617 = vunpack.c.l.s8.bf16 %v225
    %v618 = vunpack.c.l.s8.bf16 %v226
    %v619 = vunpack.c.l.s8.bf16 %v227
    %v620 = vunpack.c.l.s8.bf16 %v228
    %v621 = vunpack.c.l.s8.bf16 %v229
    %v622 = vunpack.c.l.s8.bf16 %v230
    %v623 = vunpack.c.l.s8.bf16 %v231
    %v624 = vunpack.c.l.s8.bf16 %v232
    %v625 = vunpack.c.h.s8.bf16 %v225
    %v626 = vunpack.c.h.s8.bf16 %v226
    %v627 = vunpack.c.h.s8.bf16 %v227
    %v628 = vunpack.c.h.s8.bf16 %v228
    %v629 = vunpack.c.h.s8.bf16 %v229
    %v630 = vunpack.c.h.s8.bf16 %v230
    %v631 = vunpack.c.h.s8.bf16 %v231
    %v632 = vunpack.c.h.s8.bf16 %v232
    %v633 = vunpack.c.l.s8.bf16 %v233
    %v634 = vunpack.c.l.s8.bf16 %v234
    %v635 = vunpack.c.l.s8.bf16 %v235
    %v636 = vunpack.c.l.s8.bf16 %v236
    %v637 = vunpack.c.l.s8.bf16 %v237
    %v638 = vunpack.c.l.s8.bf16 %v238
    %v639 = vunpack.c.l.s8.bf16 %v239
    %v640 = vunpack.c.l.s8.bf16 %v240
    %v641 = vunpack.c.h.s8.bf16 %v233
    %v642 = vunpack.c.h.s8.bf16 %v234
    %v643 = vunpack.c.h.s8.bf16 %v235
    %v644 = vunpack.c.h.s8.bf16 %v236
    %v645 = vunpack.c.h.s8.bf16 %v237
    %v646 = vunpack.c.h.s8.bf16 %v238
    %v647 = vunpack.c.h.s8.bf16 %v239
    %v648 = vunpack.c.h.s8.bf16 %v240
    %v649 = vunpack.c.l.s8.bf16 %v241
    %v650 = vunpack.c.l.s8.bf16 %v242
    %v651 = vunpack.c.l.s8.bf16 %v243
    %v652 = vunpack.c.l.s8.bf16 %v244
    %v653 = vunpack.c.l.s8.bf16 %v245
    %v654 = vunpack.c.l.s8.bf16 %v246
    %v655 = vunpack.c.l.s8.bf16 %v247
    %v656 = vunpack.c.l.s8.bf16 %v248
    %v657 = vunpack.c.h.s8.bf16 %v241
    %v658 = vunpack.c.h.s8.bf16 %v242
    %v659 = vunpack.c.h.s8.bf16 %v243
    %v660 = vunpack.c.h.s8.bf16 %v244
    %v661 = vunpack.c.h.s8.bf16 %v245
    %v662 = vunpack.c.h.s8.bf16 %v246
    %v663 = vunpack.c.h.s8.bf16 %v247
    %v664 = vunpack.c.h.s8.bf16 %v248
    %v665 = vunpack.c.l.s8.bf16 %v249
    %v666 = vunpack.c.l.s8.bf16 %v250
    %v667 = vunpack.c.l.s8.bf16 %v251
    %v668 = vunpack.c.l.s8.bf16 %v252
    %v669 = vunpack.c.l.s8.bf16 %v253
    %v670 = vunpack.c.l.s8.bf16 %v254
    %v671 = vunpack.c.l.s8.bf16 %v255
    %v672 = vunpack.c.l.s8.bf16 %v256
    %v673 = vunpack.c.h.s8.bf16 %v249
    %v674 = vunpack.c.h.s8.bf16 %v250
    %v675 = vunpack.c.h.s8.bf16 %v251
    %v676 = vunpack.c.h.s8.bf16 %v252
    %v677 = vunpack.c.h.s8.bf16 %v253
    %v678 = vunpack.c.h.s8.bf16 %v254
    %v679 = vunpack.c.h.s8.bf16 %v255
    %v680 = vunpack.c.h.s8.bf16 %v256
    %v681 = vunpack.c.l.s8.bf16 %v257
    %v682 = vunpack.c.l.s8.bf16 %v258
    %v683 = vunpack.c.l.s8.bf16 %v259
    %v684 = vunpack.c.l.s8.bf16 %v260
    %v685 = vunpack.c.l.s8.bf16 %v261
    %v686 = vunpack.c.l.s8.bf16 %v262
    %v687 = vunpack.c.l.s8.bf16 %v263
    %v688 = vunpack.c.l.s8.bf16 %v264
    %v689 = vunpack.c.h.s8.bf16 %v257
    %v690 = vunpack.c.h.s8.bf16 %v258
    %v691 = vunpack.c.h.s8.bf16 %v259
    %v692 = vunpack.c.h.s8.bf16 %v260
    %v693 = vunpack.c.h.s8.bf16 %v261
    %v694 = vunpack.c.h.s8.bf16 %v262
    %v695 = vunpack.c.h.s8.bf16 %v263
    %v696 = vunpack.c.h.s8.bf16 %v264
    %v697 = vunpack.c.l.s8.bf16 %v265
    %v698 = vunpack.c.l.s8.bf16 %v266
    %v699 = vunpack.c.l.s8.bf16 %v267
    %v700 = vunpack.c.l.s8.bf16 %v268
    %v701 = vunpack.c.l.s8.bf16 %v269
    %v702 = vunpack.c.l.s8.bf16 %v270
    %v703 = vunpack.c.l.s8.bf16 %v271
    %v704 = vunpack.c.l.s8.bf16 %v272
    %v705 = vunpack.c.h.s8.bf16 %v265
    %v706 = vunpack.c.h.s8.bf16 %v266
    %v707 = vunpack.c.h.s8.bf16 %v267
    %v708 = vunpack.c.h.s8.bf16 %v268
    %v709 = vunpack.c.h.s8.bf16 %v269
    %v710 = vunpack.c.h.s8.bf16 %v270
    %v711 = vunpack.c.h.s8.bf16 %v271
    %v712 = vunpack.c.h.s8.bf16 %v272
    %v713 = vunpack.c.l.s8.bf16 %v273
    %v714 = vunpack.c.l.s8.bf16 %v274
    %v715 = vunpack.c.l.s8.bf16 %v275
    %v716 = vunpack.c.l.s8.bf16 %v276
    %v717 = vunpack.c.l.s8.bf16 %v277
    %v718 = vunpack.c.l.s8.bf16 %v278
    %v719 = vunpack.c.l.s8.bf16 %v279
    %v720 = vunpack.c.l.s8.bf16 %v280
    %v721 = vunpack.c.h.s8.bf16 %v273
    %v722 = vunpack.c.h.s8.bf16 %v274
    %v723 = vunpack.c.h.s8.bf16 %v275
    %v724 = vunpack.c.h.s8.bf16 %v276
    %v725 = vunpack.c.h.s8.bf16 %v277
    %v726 = vunpack.c.h.s8.bf16 %v278
    %v727 = vunpack.c.h.s8.bf16 %v279
    %v728 = vunpack.c.h.s8.bf16 %v280
    %v729 = vunpack.c.l.s8.bf16 %v281
    %v730 = vunpack.c.l.s8.bf16 %v282
    %v731 = vunpack.c.l.s8.bf16 %v283
    %v732 = vunpack.c.l.s8.bf16 %v284
    %v733 = vunpack.c.l.s8.bf16 %v285
    %v734 = vunpack.c.l.s8.bf16 %v286
    %v735 = vunpack.c.l.s8.bf16 %v287
    %v736 = vunpack.c.l.s8.bf16 %v288
    %v737 = vunpack.c.h.s8.bf16 %v281
    %v738 = vunpack.c.h.s8.bf16 %v282
    %v739 = vunpack.c.h.s8.bf16 %v283
    %v740 = vunpack.c.h.s8.bf16 %v284
    %v741 = vunpack.c.h.s8.bf16 %v285
    %v742 = vunpack.c.h.s8.bf16 %v286
    %v743 = vunpack.c.h.s8.bf16 %v287
    %v744 = vunpack.c.h.s8.bf16 %v288
    %v745 = vunpack.c.l.s8.bf16 %v289
    %v746 = vunpack.c.l.s8.bf16 %v290
    %v747 = vunpack.c.l.s8.bf16 %v291
    %v748 = vunpack.c.l.s8.bf16 %v292
    %v749 = vunpack.c.l.s8.bf16 %v293
    %v750 = vunpack.c.l.s8.bf16 %v294
    %v751 = vunpack.c.l.s8.bf16 %v295
    %v752 = vunpack.c.l.s8.bf16 %v296
    %v753 = vunpack.c.h.s8.bf16 %v289
    %v754 = vunpack.c.h.s8.bf16 %v290
    %v755 = vunpack.c.h.s8.bf16 %v291
    %v756 = vunpack.c.h.s8.bf16 %v292
    %v757 = vunpack.c.h.s8.bf16 %v293
    %v758 = vunpack.c.h.s8.bf16 %v294
    %v759 = vunpack.c.h.s8.bf16 %v295
    %v760 = vunpack.c.h.s8.bf16 %v296
    %v761 = vunpack.c.l.s8.bf16 %v297
    %v762 = vunpack.c.l.s8.bf16 %v298
    %v763 = vunpack.c.l.s8.bf16 %v299
    %v764 = vunpack.c.l.s8.bf16 %v300
    %v765 = vunpack.c.l.s8.bf16 %v301
    %v766 = vunpack.c.l.s8.bf16 %v302
    %v767 = vunpack.c.l.s8.bf16 %v303
    %v768 = vunpack.c.l.s8.bf16 %v304
    %v769 = vunpack.c.h.s8.bf16 %v297
    %v770 = vunpack.c.h.s8.bf16 %v298
    %v771 = vunpack.c.h.s8.bf16 %v299
    %v772 = vunpack.c.h.s8.bf16 %v300
    %v773 = vunpack.c.h.s8.bf16 %v301
    %v774 = vunpack.c.h.s8.bf16 %v302
    %v775 = vunpack.c.h.s8.bf16 %v303
    %v776 = vunpack.c.h.s8.bf16 %v304
    %v777 = vunpack.c.l.s8.bf16 %v305
    %v778 = vunpack.c.l.s8.bf16 %v306
    %v779 = vunpack.c.l.s8.bf16 %v307
    %v780 = vunpack.c.l.s8.bf16 %v308
    %v781 = vunpack.c.l.s8.bf16 %v309
    %v782 = vunpack.c.l.s8.bf16 %v310
    %v783 = vunpack.c.l.s8.bf16 %v311
    %v784 = vunpack.c.l.s8.bf16 %v312
    %v785 = vunpack.c.h.s8.bf16 %v305
    %v786 = vunpack.c.h.s8.bf16 %v306
    %v787 = vunpack.c.h.s8.bf16 %v307
    %v788 = vunpack.c.h.s8.bf16 %v308
    %v789 = vunpack.c.h.s8.bf16 %v309
    %v790 = vunpack.c.h.s8.bf16 %v310
    %v791 = vunpack.c.h.s8.bf16 %v311
    %v792 = vunpack.c.h.s8.bf16 %v312
    %v793 = vunpack.c.l.s8.bf16 %v313
    %v794 = vunpack.c.l.s8.bf16 %v314
    %v795 = vunpack.c.l.s8.bf16 %v315
    %v796 = vunpack.c.l.s8.bf16 %v316
    %v797 = vunpack.c.l.s8.bf16 %v317
    %v798 = vunpack.c.l.s8.bf16 %v318
    %v799 = vunpack.c.l.s8.bf16 %v319
    %v800 = vunpack.c.l.s8.bf16 %v320
    %v801 = vunpack.c.h.s8.bf16 %v313
    %v802 = vunpack.c.h.s8.bf16 %v314
    %v803 = vunpack.c.h.s8.bf16 %v315
    %v804 = vunpack.c.h.s8.bf16 %v316
    %v805 = vunpack.c.h.s8.bf16 %v317
    %v806 = vunpack.c.h.s8.bf16 %v318
    %v807 = vunpack.c.h.s8.bf16 %v319
    %v808 = vunpack.c.h.s8.bf16 %v320
    %v809 = vunpack.c.l.s8.bf16 %v321
    %v810 = vunpack.c.l.s8.bf16 %v322
    %v811 = vunpack.c.l.s8.bf16 %v323
    %v812 = vunpack.c.l.s8.bf16 %v324
    %v813 = vunpack.c.l.s8.bf16 %v325
    %v814 = vunpack.c.l.s8.bf16 %v326
    %v815 = vunpack.c.l.s8.bf16 %v327
    %v816 = vunpack.c.l.s8.bf16 %v328
    %v817 = vunpack.c.h.s8.bf16 %v321
    %v818 = vunpack.c.h.s8.bf16 %v322
    %v819 = vunpack.c.h.s8.bf16 %v323
    %v820 = vunpack.c.h.s8.bf16 %v324
    %v821 = vunpack.c.h.s8.bf16 %v325
    %v822 = vunpack.c.h.s8.bf16 %v326
    %v823 = vunpack.c.h.s8.bf16 %v327
    %v824 = vunpack.c.h.s8.bf16 %v328
    %v825 = vunpack.c.l.s8.bf16 %v329
    %v826 = vunpack.c.l.s8.bf16 %v330
    %v827 = vunpack.c.l.s8.bf16 %v331
    %v828 = vunpack.c.l.s8.bf16 %v332
    %v829 = vunpack.c.l.s8.bf16 %v333
    %v830 = vunpack.c.l.s8.bf16 %v334
    %v831 = vunpack.c.l.s8.bf16 %v335
    %v832 = vunpack.c.l.s8.bf16 %v336
    %v833 = vunpack.c.h.s8.bf16 %v329
    %v834 = vunpack.c.h.s8.bf16 %v330
    %v835 = vunpack.c.h.s8.bf16 %v331
    %v836 = vunpack.c.h.s8.bf16 %v332
    %v837 = vunpack.c.h.s8.bf16 %v333
    %v838 = vunpack.c.h.s8.bf16 %v334
    %v839 = vunpack.c.h.s8.bf16 %v335
    %v840 = vunpack.c.h.s8.bf16 %v336
    %v841 = vunpack.c.l.s8.bf16 %v337
    %v842 = vunpack.c.l.s8.bf16 %v338
    %v843 = vunpack.c.l.s8.bf16 %v339
    %v844 = vunpack.c.l.s8.bf16 %v340
    %v845 = vunpack.c.l.s8.bf16 %v341
    %v846 = vunpack.c.l.s8.bf16 %v342
    %v847 = vunpack.c.l.s8.bf16 %v343
    %v848 = vunpack.c.l.s8.bf16 %v344
    %v849 = vunpack.c.h.s8.bf16 %v337
    %v850 = vunpack.c.h.s8.bf16 %v338
    %v851 = vunpack.c.h.s8.bf16 %v339
    %v852 = vunpack.c.h.s8.bf16 %v340
    %v853 = vunpack.c.h.s8.bf16 %v341
    %v854 = vunpack.c.h.s8.bf16 %v342
    %v855 = vunpack.c.h.s8.bf16 %v343
    %v856 = vunpack.c.h.s8.bf16 %v344
    %v861 = vunpack.c.l.b16 %v85
    %v862 = vunpack.c.h.b16 %v85
    %v863 = vunpack.c.l.b16 %v86
    %v864 = vunpack.c.h.b16 %v86
    %v865 = vunpack.c.l.b16 %v87
    %v866 = vunpack.c.h.b16 %v87
    %v867 = vunpack.c.l.b16 %v88
    %v868 = vunpack.c.h.b16 %v88
    %v869 = vpack.c.b16 %v861, %v861
    %v870 = vpack.c.b16 %v862, %v862
    %v871 = vpack.c.b16 %v863, %v863
    %v872 = vpack.c.b16 %v864, %v864
    %v873 = vpack.c.b16 %v865, %v865
    %v874 = vpack.c.b16 %v866, %v866
    %v875 = vpack.c.b16 %v867, %v867
    %v876 = vpack.c.b16 %v868, %v868
    %885 = vmatprep.subr.bf16.mxu0 %v346
    %886 = vmatpush1.bf16.msra.mxu0 %v345
    %887 = vmatprep.subr.bf16.mxu0 %v354
    %888 = vmatpush1.bf16.msra.mxu0 %v353
    %889 = vmatprep.subr.bf16.mxu0 %v362
    %890 = vmatpush1.bf16.msra.mxu0 %v361
    %891 = vmatprep.subr.bf16.mxu0 %v370
    %892 = vmatpush1.bf16.msra.mxu0 %v369
    %893 = vmatprep.subr.bf16.mxu0 %v378
    %894 = vmatpush1.bf16.msra.mxu0 %v377
    %895 = vmatprep.subr.bf16.mxu0 %v386
    %896 = vmatpush1.bf16.msra.mxu0 %v385
    %897 = vmatprep.subr.bf16.mxu0 %v394
    %898 = vmatpush1.bf16.msra.mxu0 %v393
    %899 = vmatprep.subr.bf16.mxu0 %v402
    %900 = vmatpush1.bf16.msra.mxu0 %v401
    %901 = vmatprep.subr.bf16.mxu0 %v410
    %902 = vmatpush1.bf16.msra.mxu0 %v409
    %903 = vmatprep.subr.bf16.mxu0 %v418
    %904 = vmatpush1.bf16.msra.mxu0 %v417
    %905 = vmatprep.subr.bf16.mxu0 %v426
    %906 = vmatpush1.bf16.msra.mxu0 %v425
    %907 = vmatprep.subr.bf16.mxu0 %v434
    %908 = vmatpush1.bf16.msra.mxu0 %v433
    %909 = vmatprep.subr.bf16.mxu0 %v442
    %910 = vmatpush1.bf16.msra.mxu0 %v441
    %911 = vmatprep.subr.bf16.mxu0 %v450
    %912 = vmatpush1.bf16.msra.mxu0 %v449
    %913 = vmatprep.subr.bf16.mxu0 %v458
    %914 = vmatpush1.bf16.msra.mxu0 %v457
    %915 = vmatprep.subr.bf16.mxu0 %v466
    %916 = vmatpush1.bf16.msra.mxu0 %v465
    %917 = vmatprep.mubr.bf16.mxu0 %v870
    %918 = vmatmul.mubr.bf16.gmra.mrb[0].mxu0 %v869
    %v919 = vpop.f32.mrb[0].mxu0
    %v920 = vadd.f32 0.0, %v919
    %v921 = vpop.f32.mrb[0].mxu0
    %v922 = vadd.f32 0.0, %v921
    %v923 = vpop.f32.mrb[0].mxu0
    %v924 = vpop.f32.mrb[0].mxu0
    %925 = vdwg.mxu0
    %926 = vmatprep.subr.bf16.mxu0 %v474
    %927 = vmatpush1.bf16.msra.mxu0 %v473
    %928 = vmatprep.subr.bf16.mxu0 %v482
    %929 = vmatpush1.bf16.msra.mxu0 %v481
    %930 = vmatprep.subr.bf16.mxu0 %v490
    %931 = vmatpush1.bf16.msra.mxu0 %v489
    %932 = vmatprep.subr.bf16.mxu0 %v498
    %933 = vmatpush1.bf16.msra.mxu0 %v497
    %934 = vmatprep.subr.bf16.mxu0 %v506
    %935 = vmatpush1.bf16.msra.mxu0 %v505
    %936 = vmatprep.subr.bf16.mxu0 %v514
    %937 = vmatpush1.bf16.msra.mxu0 %v513
    %938 = vmatprep.subr.bf16.mxu0 %v522
    %939 = vmatpush1.bf16.msra.mxu0 %v521
    %940 = vmatprep.subr.bf16.mxu0 %v530
    %941 = vmatpush1.bf16.msra.mxu0 %v529
    %942 = vmatprep.subr.bf16.mxu0 %v538
    %943 = vmatpush1.bf16.msra.mxu0 %v537
    %944 = vmatprep.subr.bf16.mxu0 %v546
    %945 = vmatpush1.bf16.msra.mxu0 %v545
    %946 = vmatprep.subr.bf16.mxu0 %v554
    %947 = vmatpush1.bf16.msra.mxu0 %v553
    %948 = vmatprep.subr.bf16.mxu0 %v562
    %949 = vmatpush1.bf16.msra.mxu0 %v561
    %950 = vmatprep.subr.bf16.mxu0 %v570
    %951 = vmatpush1.bf16.msra.mxu0 %v569
    %952 = vmatprep.subr.bf16.mxu0 %v578
    %953 = vmatpush1.bf16.msra.mxu0 %v577
    %954 = vmatprep.subr.bf16.mxu0 %v586
    %955 = vmatpush1.bf16.msra.mxu0 %v585
    %956 = vmatprep.subr.bf16.mxu0 %v594
    %957 = vmatpush1.bf16.msra.mxu0 %v593
    %958 = vmatprep.mubr.bf16.mxu0 %v872
    %959 = vmatmul.mubr.bf16.gmra.mrb[0].mxu0 %v871
    %v960 = vpop.f32.mrb[0].mxu0
    %v961 = vadd.f32 %v920, %v960
    %v962 = vpop.f32.mrb[0].mxu0
    %v963 = vadd.f32 %v922, %v962
    %v964 = vpop.f32.mrb[0].mxu0
    %v965 = vpop.f32.mrb[0].mxu0
    %966 = vdwg.mxu0
    %967 = vmatprep.subr.bf16.mxu0 %v602
    %968 = vmatpush1.bf16.msra.mxu0 %v601
    %969 = vmatprep.subr.bf16.mxu0 %v610
    %970 = vmatpush1.bf16.msra.mxu0 %v609
    %971 = vmatprep.subr.bf16.mxu0 %v618
    %972 = vmatpush1.bf16.msra.mxu0 %v617
    %973 = vmatprep.subr.bf16.mxu0 %v626
    %974 = vmatpush1.bf16.msra.mxu0 %v625
    %975 = vmatprep.subr.bf16.mxu0 %v634
    %976 = vmatpush1.bf16.msra.mxu0 %v633
    %977 = vmatprep.subr.bf16.mxu0 %v642
    %978 = vmatpush1.bf16.msra.mxu0 %v641
    %979 = vmatprep.subr.bf16.mxu0 %v650
    %980 = vmatpush1.bf16.msra.mxu0 %v649
    %981 = vmatprep.subr.bf16.mxu0 %v658
    %982 = vmatpush1.bf16.msra.mxu0 %v657
    %983 = vmatprep.subr.bf16.mxu0 %v666
    %984 = vmatpush1.bf16.msra.mxu0 %v665
    %985 = vmatprep.subr.bf16.mxu0 %v674
    %986 = vmatpush1.bf16.msra.mxu0 %v673
    %987 = vmatprep.subr.bf16.mxu0 %v682
    %988 = vmatpush1.bf16.msra.mxu0 %v681
    %989 = vmatprep.subr.bf16.mxu0 %v690
    %990 = vmatpush1.bf16.msra.mxu0 %v689
    %991 = vmatprep.subr.bf16.mxu0 %v698
    %992 = vmatpush1.bf16.msra.mxu0 %v697
    %993 = vmatprep.subr.bf16.mxu0 %v706
    %994 = vmatpush1.bf16.msra.mxu0 %v705
    %995 = vmatprep.subr.bf16.mxu0 %v714
    %996 = vmatpush1.bf16.msra.mxu0 %v713
    %997 = vmatprep.subr.bf16.mxu0 %v722
    %998 = vmatpush1.bf16.msra.mxu0 %v721
    %999 = vmatprep.mubr.bf16.mxu0 %v874
    %1000 = vmatmul.mubr.bf16.gmra.mrb[0].mxu0 %v873
    %v1001 = vpop.f32.mrb[0].mxu0
    %v1002 = vadd.f32 %v961, %v1001
    %v1003 = vpop.f32.mrb[0].mxu0
    %v1004 = vadd.f32 %v963, %v1003
    %v1005 = vpop.f32.mrb[0].mxu0
    %v1006 = vpop.f32.mrb[0].mxu0
    %1007 = vdwg.mxu0
    %1008 = vmatprep.subr.bf16.mxu0 %v730
    %1009 = vmatpush1.bf16.msra.mxu0 %v729
    %1010 = vmatprep.subr.bf16.mxu0 %v738
    %1011 = vmatpush1.bf16.msra.mxu0 %v737
    %1012 = vmatprep.subr.bf16.mxu0 %v746
    %1013 = vmatpush1.bf16.msra.mxu0 %v745
    %1014 = vmatprep.subr.bf16.mxu0 %v754
    %1015 = vmatpush1.bf16.msra.mxu0 %v753
    %1016 = vmatprep.subr.bf16.mxu0 %v762
    %1017 = vmatpush1.bf16.msra.mxu0 %v761
    %1018 = vmatprep.subr.bf16.mxu0 %v770
    %1019 = vmatpush1.bf16.msra.mxu0 %v769
    %1020 = vmatprep.subr.bf16.mxu0 %v778
    %1021 = vmatpush1.bf16.msra.mxu0 %v777
    %1022 = vmatprep.subr.bf16.mxu0 %v786
    %1023 = vmatpush1.bf16.msra.mxu0 %v785
    %1024 = vmatprep.subr.bf16.mxu0 %v794
    %1025 = vmatpush1.bf16.msra.mxu0 %v793
    %1026 = vmatprep.subr.bf16.mxu0 %v802
    %1027 = vmatpush1.bf16.msra.mxu0 %v801
    %1028 = vmatprep.subr.bf16.mxu0 %v810
    %1029 = vmatpush1.bf16.msra.mxu0 %v809
    %1030 = vmatprep.subr.bf16.mxu0 %v818
    %1031 = vmatpush1.bf16.msra.mxu0 %v817
    %1032 = vmatprep.subr.bf16.mxu0 %v826
    %1033 = vmatpush1.bf16.msra.mxu0 %v825
    %1034 = vmatprep.subr.bf16.mxu0 %v834
    %1035 = vmatpush1.bf16.msra.mxu0 %v833
    %1036 = vmatprep.subr.bf16.mxu0 %v842
    %1037 = vmatpush1.bf16.msra.mxu0 %v841
    %1038 = vmatprep.subr.bf16.mxu0 %v850
    %1039 = vmatpush1.bf16.msra.mxu0 %v849
    %1040 = vmatprep.mubr.bf16.mxu0 %v876
    %1041 = vmatmul.mubr.bf16.gmra.mrb[0].mxu0 %v875
    %v1042 = vpop.f32.mrb[0].mxu0
    %v1043 = vadd.f32 %v1002, %v1042
    %v1044 = vpop.f32.mrb[0].mxu0
    %v1045 = vadd.f32 %v1004, %v1044
    %v1046 = vpop.f32.mrb[0].mxu0
    %v1047 = vpop.f32.mrb[0].mxu0
    %1048 = vdwg.mxu0
    %1049 = vmatprep.subr.bf16.mxu0 %v348
    %1050 = vmatpush1.bf16.msra.mxu0 %v347
    %1051 = vmatprep.subr.bf16.mxu0 %v356
    %1052 = vmatpush1.bf16.msra.mxu0 %v355
    %1053 = vmatprep.subr.bf16.mxu0 %v364
    %1054 = vmatpush1.bf16.msra.mxu0 %v363
    %1055 = vmatprep.subr.bf16.mxu0 %v372
    %1056 = vmatpush1.bf16.msra.mxu0 %v371
    %1057 = vmatprep.subr.bf16.mxu0 %v380
    %1058 = vmatpush1.bf16.msra.mxu0 %v379
    %1059 = vmatprep.subr.bf16.mxu0 %v388
    %1060 = vmatpush1.bf16.msra.mxu0 %v387
    %1061 = vmatprep.subr.bf16.mxu0 %v396
    %1062 = vmatpush1.bf16.msra.mxu0 %v395
    %1063 = vmatprep.subr.bf16.mxu0 %v404
    %1064 = vmatpush1.bf16.msra.mxu0 %v403
    %1065 = vmatprep.subr.bf16.mxu0 %v412
    %1066 = vmatpush1.bf16.msra.mxu0 %v411
    %1067 = vmatprep.subr.bf16.mxu0 %v420
    %1068 = vmatpush1.bf16.msra.mxu0 %v419
    %1069 = vmatprep.subr.bf16.mxu0 %v428
    %1070 = vmatpush1.bf16.msra.mxu0 %v427
    %1071 = vmatprep.subr.bf16.mxu0 %v436
    %1072 = vmatpush1.bf16.msra.mxu0 %v435
    %1073 = vmatprep.subr.bf16.mxu0 %v444
    %1074 = vmatpush1.bf16.msra.mxu0 %v443
    %1075 = vmatprep.subr.bf16.mxu0 %v452
    %1076 = vmatpush1.bf16.msra.mxu0 %v451
    %1077 = vmatprep.subr.bf16.mxu0 %v460
    %1078 = vmatpush1.bf16.msra.mxu0 %v459
    %1079 = vmatprep.subr.bf16.mxu0 %v468
    %1080 = vmatpush1.bf16.msra.mxu0 %v467
    %1081 = vmatprep.mubr.bf16.mxu0 %v870
    %1082 = vmatmul.mubr.bf16.gmra.mrb[0].mxu0 %v869
    %v1083 = vpop.f32.mrb[0].mxu0
    %v1084 = vadd.f32 0.0, %v1083
    %v1085 = vpop.f32.mrb[0].mxu0
    %v1086 = vadd.f32 0.0, %v1085
    %v1087 = vpop.f32.mrb[0].mxu0
    %v1088 = vpop.f32.mrb[0].mxu0
    %1089 = vdwg.mxu0
    %1090 = vmatprep.subr.bf16.mxu0 %v476
    %1091 = vmatpush1.bf16.msra.mxu0 %v475
    %1092 = vmatprep.subr.bf16.mxu0 %v484
    %1093 = vmatpush1.bf16.msra.mxu0 %v483
    %1094 = vmatprep.subr.bf16.mxu0 %v492
    %1095 = vmatpush1.bf16.msra.mxu0 %v491
    %1096 = vmatprep.subr.bf16.mxu0 %v500
    %1097 = vmatpush1.bf16.msra.mxu0 %v499
    %1098 = vmatprep.subr.bf16.mxu0 %v508
    %1099 = vmatpush1.bf16.msra.mxu0 %v507
    %1100 = vmatprep.subr.bf16.mxu0 %v516
    %1101 = vmatpush1.bf16.msra.mxu0 %v515
    %1102 = vmatprep.subr.bf16.mxu0 %v524
    %1103 = vmatpush1.bf16.msra.mxu0 %v523
    %1104 = vmatprep.subr.bf16.mxu0 %v532
    %1105 = vmatpush1.bf16.msra.mxu0 %v531
    %1106 = vmatprep.subr.bf16.mxu0 %v540
    %1107 = vmatpush1.bf16.msra.mxu0 %v539
    %1108 = vmatprep.subr.bf16.mxu0 %v548
    %1109 = vmatpush1.bf16.msra.mxu0 %v547
    %1110 = vmatprep.subr.bf16.mxu0 %v556
    %1111 = vmatpush1.bf16.msra.mxu0 %v555
    %1112 = vmatprep.subr.bf16.mxu0 %v564
    %1113 = vmatpush1.bf16.msra.mxu0 %v563
    %1114 = vmatprep.subr.bf16.mxu0 %v572
    %1115 = vmatpush1.bf16.msra.mxu0 %v571
    %1116 = vmatprep.subr.bf16.mxu0 %v580
    %1117 = vmatpush1.bf16.msra.mxu0 %v579
    %1118 = vmatprep.subr.bf16.mxu0 %v588
    %1119 = vmatpush1.bf16.msra.mxu0 %v587
    %1120 = vmatprep.subr.bf16.mxu0 %v596
    %1121 = vmatpush1.bf16.msra.mxu0 %v595
    %1122 = vmatprep.mubr.bf16.mxu0 %v872
    %1123 = vmatmul.mubr.bf16.gmra.mrb[0].mxu0 %v871
    %v1124 = vpop.f32.mrb[0].mxu0
    %v1125 = vadd.f32 %v1084, %v1124
    %v1126 = vpop.f32.mrb[0].mxu0
    %v1127 = vadd.f32 %v1086, %v1126
    %v1128 = vpop.f32.mrb[0].mxu0
    %v1129 = vpop.f32.mrb[0].mxu0
    %1130 = vdwg.mxu0
    %1131 = vmatprep.subr.bf16.mxu0 %v604
    %1132 = vmatpush1.bf16.msra.mxu0 %v603
    %1133 = vmatprep.subr.bf16.mxu0 %v612
    %1134 = vmatpush1.bf16.msra.mxu0 %v611
    %1135 = vmatprep.subr.bf16.mxu0 %v620
    %1136 = vmatpush1.bf16.msra.mxu0 %v619
    %1137 = vmatprep.subr.bf16.mxu0 %v628
    %1138 = vmatpush1.bf16.msra.mxu0 %v627
    %1139 = vmatprep.subr.bf16.mxu0 %v636
    %1140 = vmatpush1.bf16.msra.mxu0 %v635
    %1141 = vmatprep.subr.bf16.mxu0 %v644
    %1142 = vmatpush1.bf16.msra.mxu0 %v643
    %1143 = vmatprep.subr.bf16.mxu0 %v652
    %1144 = vmatpush1.bf16.msra.mxu0 %v651
    %1145 = vmatprep.subr.bf16.mxu0 %v660
    %1146 = vmatpush1.bf16.msra.mxu0 %v659
    %1147 = vmatprep.subr.bf16.mxu0 %v668
    %1148 = vmatpush1.bf16.msra.mxu0 %v667
    %1149 = vmatprep.subr.bf16.mxu0 %v676
    %1150 = vmatpush1.bf16.msra.mxu0 %v675
    %1151 = vmatprep.subr.bf16.mxu0 %v684
    %1152 = vmatpush1.bf16.msra.mxu0 %v683
    %1153 = vmatprep.subr.bf16.mxu0 %v692
    %1154 = vmatpush1.bf16.msra.mxu0 %v691
    %1155 = vmatprep.subr.bf16.mxu0 %v700
    %1156 = vmatpush1.bf16.msra.mxu0 %v699
    %1157 = vmatprep.subr.bf16.mxu0 %v708
    %1158 = vmatpush1.bf16.msra.mxu0 %v707
    %1159 = vmatprep.subr.bf16.mxu0 %v716
    %1160 = vmatpush1.bf16.msra.mxu0 %v715
    %1161 = vmatprep.subr.bf16.mxu0 %v724
    %1162 = vmatpush1.bf16.msra.mxu0 %v723
    %1163 = vmatprep.mubr.bf16.mxu0 %v874
    %1164 = vmatmul.mubr.bf16.gmra.mrb[0].mxu0 %v873
    %v1165 = vpop.f32.mrb[0].mxu0
    %v1166 = vadd.f32 %v1125, %v1165
    %v1167 = vpop.f32.mrb[0].mxu0
    %v1168 = vadd.f32 %v1127, %v1167
    %v1169 = vpop.f32.mrb[0].mxu0
    %v1170 = vpop.f32.mrb[0].mxu0
    %1171 = vdwg.mxu0
    %1172 = vmatprep.subr.bf16.mxu0 %v732
    %1173 = vmatpush1.bf16.msra.mxu0 %v731
    %1174 = vmatprep.subr.bf16.mxu0 %v740
    %1175 = vmatpush1.bf16.msra.mxu0 %v739
    %1176 = vmatprep.subr.bf16.mxu0 %v748
    %1177 = vmatpush1.bf16.msra.mxu0 %v747
    %1178 = vmatprep.subr.bf16.mxu0 %v756
    %1179 = vmatpush1.bf16.msra.mxu0 %v755
    %1180 = vmatprep.subr.bf16.mxu0 %v764
    %1181 = vmatpush1.bf16.msra.mxu0 %v763
    %1182 = vmatprep.subr.bf16.mxu0 %v772
    %1183 = vmatpush1.bf16.msra.mxu0 %v771
    %1184 = vmatprep.subr.bf16.mxu0 %v780
    %1185 = vmatpush1.bf16.msra.mxu0 %v779
    %1186 = vmatprep.subr.bf16.mxu0 %v788
    %1187 = vmatpush1.bf16.msra.mxu0 %v787
    %1188 = vmatprep.subr.bf16.mxu0 %v796
    %1189 = vmatpush1.bf16.msra.mxu0 %v795
    %1190 = vmatprep.subr.bf16.mxu0 %v804
    %1191 = vmatpush1.bf16.msra.mxu0 %v803
    %1192 = vmatprep.subr.bf16.mxu0 %v812
    %1193 = vmatpush1.bf16.msra.mxu0 %v811
    %1194 = vmatprep.subr.bf16.mxu0 %v820
    %1195 = vmatpush1.bf16.msra.mxu0 %v819
    %1196 = vmatprep.subr.bf16.mxu0 %v828
    %1197 = vmatpush1.bf16.msra.mxu0 %v827
    %1198 = vmatprep.subr.bf16.mxu0 %v836
    %1199 = vmatpush1.bf16.msra.mxu0 %v835
    %1200 = vmatprep.subr.bf16.mxu0 %v844
    %1201 = vmatpush1.bf16.msra.mxu0 %v843
    %1202 = vmatprep.subr.bf16.mxu0 %v852
    %1203 = vmatpush1.bf16.msra.mxu0 %v851
    %1204 = vmatprep.mubr.bf16.mxu0 %v876
    %1205 = vmatmul.mubr.bf16.gmra.mrb[0].mxu0 %v875
    %v1206 = vpop.f32.mrb[0].mxu0
    %v1207 = vadd.f32 %v1166, %v1206
    %v1208 = vpop.f32.mrb[0].mxu0
    %v1209 = vadd.f32 %v1168, %v1208
    %v1210 = vpop.f32.mrb[0].mxu0
    %v1211 = vpop.f32.mrb[0].mxu0
    %1212 = vdwg.mxu0
    %1213 = vmatprep.subr.bf16.mxu0 %v350
    %1214 = vmatpush1.bf16.msra.mxu0 %v349
    %1215 = vmatprep.subr.bf16.mxu0 %v358
    %1216 = vmatpush1.bf16.msra.mxu0 %v357
    %1217 = vmatprep.subr.bf16.mxu0 %v366
    %1218 = vmatpush1.bf16.msra.mxu0 %v365
    %1219 = vmatprep.subr.bf16.mxu0 %v374
    %1220 = vmatpush1.bf16.msra.mxu0 %v373
    %1221 = vmatprep.subr.bf16.mxu0 %v382
    %1222 = vmatpush1.bf16.msra.mxu0 %v381
    %1223 = vmatprep.subr.bf16.mxu0 %v390
    %1224 = vmatpush1.bf16.msra.mxu0 %v389
    %1225 = vmatprep.subr.bf16.mxu0 %v398
    %1226 = vmatpush1.bf16.msra.mxu0 %v397
    %1227 = vmatprep.subr.bf16.mxu0 %v406
    %1228 = vmatpush1.bf16.msra.mxu0 %v405
    %1229 = vmatprep.subr.bf16.mxu0 %v414
    %1230 = vmatpush1.bf16.msra.mxu0 %v413
    %1231 = vmatprep.subr.bf16.mxu0 %v422
    %1232 = vmatpush1.bf16.msra.mxu0 %v421
    %1233 = vmatprep.subr.bf16.mxu0 %v430
    %1234 = vmatpush1.bf16.msra.mxu0 %v429
    %1235 = vmatprep.subr.bf16.mxu0 %v438
    %1236 = vmatpush1.bf16.msra.mxu0 %v437
    %1237 = vmatprep.subr.bf16.mxu0 %v446
    %1238 = vmatpush1.bf16.msra.mxu0 %v445
    %1239 = vmatprep.subr.bf16.mxu0 %v454
    %1240 = vmatpush1.bf16.msra.mxu0 %v453
    %1241 = vmatprep.subr.bf16.mxu0 %v462
    %1242 = vmatpush1.bf16.msra.mxu0 %v461
    %1243 = vmatprep.subr.bf16.mxu0 %v470
    %1244 = vmatpush1.bf16.msra.mxu0 %v469
    %1245 = vmatprep.mubr.bf16.mxu0 %v870
    %1246 = vmatmul.mubr.bf16.gmra.mrb[0].mxu0 %v869
    %v1247 = vpop.f32.mrb[0].mxu0
    %v1248 = vadd.f32 0.0, %v1247
    %v1249 = vpop.f32.mrb[0].mxu0
    %v1250 = vadd.f32 0.0, %v1249
    %v1251 = vpop.f32.mrb[0].mxu0
    %v1252 = vpop.f32.mrb[0].mxu0
    %1253 = vdwg.mxu0
    %1254 = vmatprep.subr.bf16.mxu0 %v478
    %1255 = vmatpush1.bf16.msra.mxu0 %v477
    %1256 = vmatprep.subr.bf16.mxu0 %v486
    %1257 = vmatpush1.bf16.msra.mxu0 %v485
    %1258 = vmatprep.subr.bf16.mxu0 %v494
    %1259 = vmatpush1.bf16.msra.mxu0 %v493
    %1260 = vmatprep.subr.bf16.mxu0 %v502
    %1261 = vmatpush1.bf16.msra.mxu0 %v501
    %1262 = vmatprep.subr.bf16.mxu0 %v510
    %1263 = vmatpush1.bf16.msra.mxu0 %v509
    %1264 = vmatprep.subr.bf16.mxu0 %v518
    %1265 = vmatpush1.bf16.msra.mxu0 %v517
    %1266 = vmatprep.subr.bf16.mxu0 %v526
    %1267 = vmatpush1.bf16.msra.mxu0 %v525
    %1268 = vmatprep.subr.bf16.mxu0 %v534
    %1269 = vmatpush1.bf16.msra.mxu0 %v533
    %1270 = vmatprep.subr.bf16.mxu0 %v542
    %1271 = vmatpush1.bf16.msra.mxu0 %v541
    %1272 = vmatprep.subr.bf16.mxu0 %v550
    %1273 = vmatpush1.bf16.msra.mxu0 %v549
    %1274 = vmatprep.subr.bf16.mxu0 %v558
    %1275 = vmatpush1.bf16.msra.mxu0 %v557
    %1276 = vmatprep.subr.bf16.mxu0 %v566
    %1277 = vmatpush1.bf16.msra.mxu0 %v565
    %1278 = vmatprep.subr.bf16.mxu0 %v574
    %1279 = vmatpush1.bf16.msra.mxu0 %v573
    %1280 = vmatprep.subr.bf16.mxu0 %v582
    %1281 = vmatpush1.bf16.msra.mxu0 %v581
    %1282 = vmatprep.subr.bf16.mxu0 %v590
    %1283 = vmatpush1.bf16.msra.mxu0 %v589
    %1284 = vmatprep.subr.bf16.mxu0 %v598
    %1285 = vmatpush1.bf16.msra.mxu0 %v597
    %1286 = vmatprep.mubr.bf16.mxu0 %v872
    %1287 = vmatmul.mubr.bf16.gmra.mrb[0].mxu0 %v871
    %v1288 = vpop.f32.mrb[0].mxu0
    %v1289 = vadd.f32 %v1248, %v1288
    %v1290 = vpop.f32.mrb[0].mxu0
    %v1291 = vadd.f32 %v1250, %v1290
    %v1292 = vpop.f32.mrb[0].mxu0
    %v1293 = vpop.f32.mrb[0].mxu0
    %1294 = vdwg.mxu0
    %1295 = vmatprep.subr.bf16.mxu0 %v606
    %1296 = vmatpush1.bf16.msra.mxu0 %v605
    %1297 = vmatprep.subr.bf16.mxu0 %v614
    %1298 = vmatpush1.bf16.msra.mxu0 %v613
    %1299 = vmatprep.subr.bf16.mxu0 %v622
    %1300 = vmatpush1.bf16.msra.mxu0 %v621
    %1301 = vmatprep.subr.bf16.mxu0 %v630
    %1302 = vmatpush1.bf16.msra.mxu0 %v629
    %1303 = vmatprep.subr.bf16.mxu0 %v638
    %1304 = vmatpush1.bf16.msra.mxu0 %v637
    %1305 = vmatprep.subr.bf16.mxu0 %v646
    %1306 = vmatpush1.bf16.msra.mxu0 %v645
    %1307 = vmatprep.subr.bf16.mxu0 %v654
    %1308 = vmatpush1.bf16.msra.mxu0 %v653
    %1309 = vmatprep.subr.bf16.mxu0 %v662
    %1310 = vmatpush1.bf16.msra.mxu0 %v661
    %1311 = vmatprep.subr.bf16.mxu0 %v670
    %1312 = vmatpush1.bf16.msra.mxu0 %v669
    %1313 = vmatprep.subr.bf16.mxu0 %v678
    %1314 = vmatpush1.bf16.msra.mxu0 %v677
    %1315 = vmatprep.subr.bf16.mxu0 %v686
    %1316 = vmatpush1.bf16.msra.mxu0 %v685
    %1317 = vmatprep.subr.bf16.mxu0 %v694
    %1318 = vmatpush1.bf16.msra.mxu0 %v693
    %1319 = vmatprep.subr.bf16.mxu0 %v702
    %1320 = vmatpush1.bf16.msra.mxu0 %v701
    %1321 = vmatprep.subr.bf16.mxu0 %v710
    %1322 = vmatpush1.bf16.msra.mxu0 %v709
    %1323 = vmatprep.subr.bf16.mxu0 %v718
    %1324 = vmatpush1.bf16.msra.mxu0 %v717
    %1325 = vmatprep.subr.bf16.mxu0 %v726
    %1326 = vmatpush1.bf16.msra.mxu0 %v725
    %1327 = vmatprep.mubr.bf16.mxu0 %v874
    %1328 = vmatmul.mubr.bf16.gmra.mrb[0].mxu0 %v873
    %v1329 = vpop.f32.mrb[0].mxu0
    %v1330 = vadd.f32 %v1289, %v1329
    %v1331 = vpop.f32.mrb[0].mxu0
    %v1332 = vadd.f32 %v1291, %v1331
    %v1333 = vpop.f32.mrb[0].mxu0
    %v1334 = vpop.f32.mrb[0].mxu0
    %1335 = vdwg.mxu0
    %1336 = vmatprep.subr.bf16.mxu0 %v734
    %1337 = vmatpush1.bf16.msra.mxu0 %v733
    %1338 = vmatprep.subr.bf16.mxu0 %v742
    %1339 = vmatpush1.bf16.msra.mxu0 %v741
    %1340 = vmatprep.subr.bf16.mxu0 %v750
    %1341 = vmatpush1.bf16.msra.mxu0 %v749
    %1342 = vmatprep.subr.bf16.mxu0 %v758
    %1343 = vmatpush1.bf16.msra.mxu0 %v757
    %1344 = vmatprep.subr.bf16.mxu0 %v766
    %1345 = vmatpush1.bf16.msra.mxu0 %v765
    %1346 = vmatprep.subr.bf16.mxu0 %v774
    %1347 = vmatpush1.bf16.msra.mxu0 %v773
    %1348 = vmatprep.subr.bf16.mxu0 %v782
    %1349 = vmatpush1.bf16.msra.mxu0 %v781
    %1350 = vmatprep.subr.bf16.mxu0 %v790
    %1351 = vmatpush1.bf16.msra.mxu0 %v789
    %1352 = vmatprep.subr.bf16.mxu0 %v798
    %1353 = vmatpush1.bf16.msra.mxu0 %v797
    %1354 = vmatprep.subr.bf16.mxu0 %v806
    %1355 = vmatpush1.bf16.msra.mxu0 %v805
    %1356 = vmatprep.subr.bf16.mxu0 %v814
    %1357 = vmatpush1.bf16.msra.mxu0 %v813
    %1358 = vmatprep.subr.bf16.mxu0 %v822
    %1359 = vmatpush1.bf16.msra.mxu0 %v821
    %1360 = vmatprep.subr.bf16.mxu0 %v830
    %1361 = vmatpush1.bf16.msra.mxu0 %v829
    %1362 = vmatprep.subr.bf16.mxu0 %v838
    %1363 = vmatpush1.bf16.msra.mxu0 %v837
    %1364 = vmatprep.subr.bf16.mxu0 %v846
    %1365 = vmatpush1.bf16.msra.mxu0 %v845
    %1366 = vmatprep.subr.bf16.mxu0 %v854
    %1367 = vmatpush1.bf16.msra.mxu0 %v853
    %1368 = vmatprep.mubr.bf16.mxu0 %v876
    %1369 = vmatmul.mubr.bf16.gmra.mrb[0].mxu0 %v875
    %v1370 = vpop.f32.mrb[0].mxu0
    %v1371 = vadd.f32 %v1330, %v1370
    %v1372 = vpop.f32.mrb[0].mxu0
    %v1373 = vadd.f32 %v1332, %v1372
    %v1374 = vpop.f32.mrb[0].mxu0
    %v1375 = vpop.f32.mrb[0].mxu0
    %1376 = vdwg.mxu0
    %1377 = vmatprep.subr.bf16.mxu0 %v352
    %1378 = vmatpush1.bf16.msra.mxu0 %v351
    %1379 = vmatprep.subr.bf16.mxu0 %v360
    %1380 = vmatpush1.bf16.msra.mxu0 %v359
    %1381 = vmatprep.subr.bf16.mxu0 %v368
    %1382 = vmatpush1.bf16.msra.mxu0 %v367
    %1383 = vmatprep.subr.bf16.mxu0 %v376
    %1384 = vmatpush1.bf16.msra.mxu0 %v375
    %1385 = vmatprep.subr.bf16.mxu0 %v384
    %1386 = vmatpush1.bf16.msra.mxu0 %v383
    %1387 = vmatprep.subr.bf16.mxu0 %v392
    %1388 = vmatpush1.bf16.msra.mxu0 %v391
    %1389 = vmatprep.subr.bf16.mxu0 %v400
    %1390 = vmatpush1.bf16.msra.mxu0 %v399
    %1391 = vmatprep.subr.bf16.mxu0 %v408
    %1392 = vmatpush1.bf16.msra.mxu0 %v407
    %1393 = vmatprep.subr.bf16.mxu0 %v416
    %1394 = vmatpush1.bf16.msra.mxu0 %v415
    %1395 = vmatprep.subr.bf16.mxu0 %v424
    %1396 = vmatpush1.bf16.msra.mxu0 %v423
    %1397 = vmatprep.subr.bf16.mxu0 %v432
    %1398 = vmatpush1.bf16.msra.mxu0 %v431
    %1399 = vmatprep.subr.bf16.mxu0 %v440
    %1400 = vmatpush1.bf16.msra.mxu0 %v439
    %1401 = vmatprep.subr.bf16.mxu0 %v448
    %1402 = vmatpush1.bf16.msra.mxu0 %v447
    %1403 = vmatprep.subr.bf16.mxu0 %v456
    %1404 = vmatpush1.bf16.msra.mxu0 %v455
    %1405 = vmatprep.subr.bf16.mxu0 %v464
    %1406 = vmatpush1.bf16.msra.mxu0 %v463
    %1407 = vmatprep.subr.bf16.mxu0 %v472
    %1408 = vmatpush1.bf16.msra.mxu0 %v471
    %1409 = vmatprep.mubr.bf16.mxu0 %v870
    %1410 = vmatmul.mubr.bf16.gmra.mrb[0].mxu0 %v869
    %v1411 = vpop.f32.mrb[0].mxu0
    %v1412 = vadd.f32 0.0, %v1411
    %v1413 = vpop.f32.mrb[0].mxu0
    %v1414 = vadd.f32 0.0, %v1413
    %v1415 = vpop.f32.mrb[0].mxu0
    %v1416 = vpop.f32.mrb[0].mxu0
    %1417 = vdwg.mxu0
    %1418 = vmatprep.subr.bf16.mxu0 %v480
    %1419 = vmatpush1.bf16.msra.mxu0 %v479
    %1420 = vmatprep.subr.bf16.mxu0 %v488
    %1421 = vmatpush1.bf16.msra.mxu0 %v487
    %1422 = vmatprep.subr.bf16.mxu0 %v496
    %1423 = vmatpush1.bf16.msra.mxu0 %v495
    %1424 = vmatprep.subr.bf16.mxu0 %v504
    %1425 = vmatpush1.bf16.msra.mxu0 %v503
    %1426 = vmatprep.subr.bf16.mxu0 %v512
    %1427 = vmatpush1.bf16.msra.mxu0 %v511
    %1428 = vmatprep.subr.bf16.mxu0 %v520
    %1429 = vmatpush1.bf16.msra.mxu0 %v519
    %1430 = vmatprep.subr.bf16.mxu0 %v528
    %1431 = vmatpush1.bf16.msra.mxu0 %v527
    %1432 = vmatprep.subr.bf16.mxu0 %v536
    %1433 = vmatpush1.bf16.msra.mxu0 %v535
    %1434 = vmatprep.subr.bf16.mxu0 %v544
    %1435 = vmatpush1.bf16.msra.mxu0 %v543
    %1436 = vmatprep.subr.bf16.mxu0 %v552
    %1437 = vmatpush1.bf16.msra.mxu0 %v551
    %1438 = vmatprep.subr.bf16.mxu0 %v560
    %1439 = vmatpush1.bf16.msra.mxu0 %v559
    %1440 = vmatprep.subr.bf16.mxu0 %v568
    %1441 = vmatpush1.bf16.msra.mxu0 %v567
    %1442 = vmatprep.subr.bf16.mxu0 %v576
    %1443 = vmatpush1.bf16.msra.mxu0 %v575
    %1444 = vmatprep.subr.bf16.mxu0 %v584
    %1445 = vmatpush1.bf16.msra.mxu0 %v583
    %1446 = vmatprep.subr.bf16.mxu0 %v592
    %1447 = vmatpush1.bf16.msra.mxu0 %v591
    %1448 = vmatprep.subr.bf16.mxu0 %v600
    %1449 = vmatpush1.bf16.msra.mxu0 %v599
    %1450 = vmatprep.mubr.bf16.mxu0 %v872
    %1451 = vmatmul.mubr.bf16.gmra.mrb[0].mxu0 %v871
    %v1452 = vpop.f32.mrb[0].mxu0
    %v1453 = vadd.f32 %v1412, %v1452
    %v1454 = vpop.f32.mrb[0].mxu0
    %v1455 = vadd.f32 %v1414, %v1454
    %v1456 = vpop.f32.mrb[0].mxu0
    %v1457 = vpop.f32.mrb[0].mxu0
    %1458 = vdwg.mxu0
    %1459 = vmatprep.subr.bf16.mxu0 %v608
    %1460 = vmatpush1.bf16.msra.mxu0 %v607
    %1461 = vmatprep.subr.bf16.mxu0 %v616
    %1462 = vmatpush1.bf16.msra.mxu0 %v615
    %1463 = vmatprep.subr.bf16.mxu0 %v624
    %1464 = vmatpush1.bf16.msra.mxu0 %v623
    %1465 = vmatprep.subr.bf16.mxu0 %v632
    %1466 = vmatpush1.bf16.msra.mxu0 %v631
    %1467 = vmatprep.subr.bf16.mxu0 %v640
    %1468 = vmatpush1.bf16.msra.mxu0 %v639
    %1469 = vmatprep.subr.bf16.mxu0 %v648
    %1470 = vmatpush1.bf16.msra.mxu0 %v647
    %1471 = vmatprep.subr.bf16.mxu0 %v656
    %1472 = vmatpush1.bf16.msra.mxu0 %v655
    %1473 = vmatprep.subr.bf16.mxu0 %v664
    %1474 = vmatpush1.bf16.msra.mxu0 %v663
    %1475 = vmatprep.subr.bf16.mxu0 %v672
    %1476 = vmatpush1.bf16.msra.mxu0 %v671
    %1477 = vmatprep.subr.bf16.mxu0 %v680
    %1478 = vmatpush1.bf16.msra.mxu0 %v679
    %1479 = vmatprep.subr.bf16.mxu0 %v688
    %1480 = vmatpush1.bf16.msra.mxu0 %v687
    %1481 = vmatprep.subr.bf16.mxu0 %v696
    %1482 = vmatpush1.bf16.msra.mxu0 %v695
    %1483 = vmatprep.subr.bf16.mxu0 %v704
    %1484 = vmatpush1.bf16.msra.mxu0 %v703
    %1485 = vmatprep.subr.bf16.mxu0 %v712
    %1486 = vmatpush1.bf16.msra.mxu0 %v711
    %1487 = vmatprep.subr.bf16.mxu0 %v720
    %1488 = vmatpush1.bf16.msra.mxu0 %v719
    %1489 = vmatprep.subr.bf16.mxu0 %v728
    %1490 = vmatpush1.bf16.msra.mxu0 %v727
    %1491 = vmatprep.mubr.bf16.mxu0 %v874
    %1492 = vmatmul.mubr.bf16.gmra.mrb[0].mxu0 %v873
    %v1493 = vpop.f32.mrb[0].mxu0
    %v1494 = vadd.f32 %v1453, %v1493
    %v1495 = vpop.f32.mrb[0].mxu0
    %v1496 = vadd.f32 %v1455, %v1495
    %v1497 = vpop.f32.mrb[0].mxu0
    %v1498 = vpop.f32.mrb[0].mxu0
    %1499 = vdwg.mxu0
    %1500 = vmatprep.subr.bf16.mxu0 %v736
    %1501 = vmatpush1.bf16.msra.mxu0 %v735
    %1502 = vmatprep.subr.bf16.mxu0 %v744
    %1503 = vmatpush1.bf16.msra.mxu0 %v743
    %1504 = vmatprep.subr.bf16.mxu0 %v752
    %1505 = vmatpush1.bf16.msra.mxu0 %v751
    %1506 = vmatprep.subr.bf16.mxu0 %v760
    %1507 = vmatpush1.bf16.msra.mxu0 %v759
    %1508 = vmatprep.subr.bf16.mxu0 %v768
    %1509 = vmatpush1.bf16.msra.mxu0 %v767
    %1510 = vmatprep.subr.bf16.mxu0 %v776
    %1511 = vmatpush1.bf16.msra.mxu0 %v775
    %1512 = vmatprep.subr.bf16.mxu0 %v784
    %1513 = vmatpush1.bf16.msra.mxu0 %v783
    %1514 = vmatprep.subr.bf16.mxu0 %v792
    %1515 = vmatpush1.bf16.msra.mxu0 %v791
    %1516 = vmatprep.subr.bf16.mxu0 %v800
    %1517 = vmatpush1.bf16.msra.mxu0 %v799
    %1518 = vmatprep.subr.bf16.mxu0 %v808
    %1519 = vmatpush1.bf16.msra.mxu0 %v807
    %1520 = vmatprep.subr.bf16.mxu0 %v816
    %1521 = vmatpush1.bf16.msra.mxu0 %v815
    %1522 = vmatprep.subr.bf16.mxu0 %v824
    %1523 = vmatpush1.bf16.msra.mxu0 %v823
    %1524 = vmatprep.subr.bf16.mxu0 %v832
    %1525 = vmatpush1.bf16.msra.mxu0 %v831
    %1526 = vmatprep.subr.bf16.mxu0 %v840
    %1527 = vmatpush1.bf16.msra.mxu0 %v839
    %1528 = vmatprep.subr.bf16.mxu0 %v848
    %1529 = vmatpush1.bf16.msra.mxu0 %v847
    %1530 = vmatprep.subr.bf16.mxu0 %v856
    %1531 = vmatpush1.bf16.msra.mxu0 %v855
    %1532 = vmatprep.mubr.bf16.mxu0 %v876
    %1533 = vmatmul.mubr.bf16.gmra.mrb[0].mxu0 %v875
    %v1534 = vpop.f32.mrb[0].mxu0
    %v1535 = vadd.f32 %v1494, %v1534
    %v1536 = vpop.f32.mrb[0].mxu0
    %v1537 = vadd.f32 %v1496, %v1536
    %v1538 = vpop.f32.mrb[0].mxu0
    %v1539 = vpop.f32.mrb[0].mxu0
    %1540 = vdwg.mxu0
    %v1541 = vld [vmem:[%s2] sm:$0xff]
    %v1543 = vlaneseq
    %v1544 = vshrl.u32 %v1543, 7
    %v1545 = vsub.s32 0, %v1544
    %v1546 = vrot.slane %v1541, %v1545
    %v1547 = vlaneseq
    %v1548 = vshrl.u32 %v1547, 7
    %v1549 = vsub.s32 1, %v1548
    %v1550 = vrot.slane %v1541, %v1549
    %v1551 = vlaneseq
    %v1552 = vshrl.u32 %v1551, 7
    %v1553 = vsub.s32 2, %v1552
    %v1554 = vrot.slane %v1541, %v1553
    %v1555 = vlaneseq
    %v1556 = vshrl.u32 %v1555, 7
    %v1557 = vsub.s32 3, %v1556
    %v1558 = vrot.slane %v1541, %v1557
    %v1559 = vlaneseq
    %v1560 = vshrl.u32 %v1559, 7
    %v1561 = vsub.s32 4, %v1560
    %v1562 = vrot.slane %v1541, %v1561
    %v1563 = vlaneseq
    %v1564 = vshrl.u32 %v1563, 7
    %v1565 = vsub.s32 5, %v1564
    %v1566 = vrot.slane %v1541, %v1565
    %v1567 = vlaneseq
    %v1568 = vshrl.u32 %v1567, 7
    %v1569 = vsub.s32 6, %v1568
    %v1570 = vrot.slane %v1541, %v1569
    %v1571 = vlaneseq
    %v1572 = vshrl.u32 %v1571, 7
    %v1573 = vsub.s32 7, %v1572
    %v1574 = vrot.slane %v1541, %v1573
    %v1583 = vmul.f32 %v1043, %v1546
    %v1584 = vmul.f32 %v1045, %v1550
    %v1585 = vmul.f32 %v1207, %v1554
    %v1586 = vmul.f32 %v1209, %v1558
    %v1587 = vmul.f32 %v1371, %v1562
    %v1588 = vmul.f32 %v1373, %v1566
    %v1589 = vmul.f32 %v1535, %v1570
    %v1590 = vmul.f32 %v1537, %v1574
    %v1591 = vld [vmem:[%s3] sm:$0xff]
    %v1593 = vlaneseq
    %v1594 = vshrl.u32 %v1593, 7
    %v1595 = vsub.s32 0, %v1594
    %v1596 = vrot.slane %v1591, %v1595
    %v1597 = vlaneseq
    %v1598 = vshrl.u32 %v1597, 7
    %v1599 = vsub.s32 1, %v1598
    %v1600 = vrot.slane %v1591, %v1599
    %v1601 = vlaneseq
    %v1602 = vshrl.u32 %v1601, 7
    %v1603 = vsub.s32 2, %v1602
    %v1604 = vrot.slane %v1591, %v1603
    %v1605 = vlaneseq
    %v1606 = vshrl.u32 %v1605, 7
    %v1607 = vsub.s32 3, %v1606
    %v1608 = vrot.slane %v1591, %v1607
    %v1609 = vlaneseq
    %v1610 = vshrl.u32 %v1609, 7
    %v1611 = vsub.s32 4, %v1610
    %v1612 = vrot.slane %v1591, %v1611
    %v1613 = vlaneseq
    %v1614 = vshrl.u32 %v1613, 7
    %v1615 = vsub.s32 5, %v1614
    %v1616 = vrot.slane %v1591, %v1615
    %v1617 = vlaneseq
    %v1618 = vshrl.u32 %v1617, 7
    %v1619 = vsub.s32 6, %v1618
    %v1620 = vrot.slane %v1591, %v1619
    %v1621 = vlaneseq
    %v1622 = vshrl.u32 %v1621, 7
    %v1623 = vsub.s32 7, %v1622
    %v1624 = vrot.slane %v1591, %v1623
    %v1633 = vadd.f32 %v1583, %v1596
    %v1634 = vadd.f32 %v1584, %v1600
    %v1635 = vadd.f32 %v1585, %v1604
    %v1636 = vadd.f32 %v1586, %v1608
    %v1637 = vadd.f32 %v1587, %v1612
    %v1638 = vadd.f32 %v1588, %v1616
    %v1639 = vadd.f32 %v1589, %v1620
    %v1640 = vadd.f32 %v1590, %v1624
    %v1641 = vmax.f32 %v1633, 0.0
    %v1642 = vmax.f32 %v1634, 0.0
    %v1643 = vmax.f32 %v1635, 0.0
    %v1644 = vmax.f32 %v1636, 0.0
    %v1645 = vmax.f32 %v1637, 0.0
    %v1646 = vmax.f32 %v1638, 0.0
    %v1647 = vmax.f32 %v1639, 0.0
    %v1648 = vmax.f32 %v1640, 0.0
    %v1649 = vld [vmem:[#allocation8] sm:$0xff]
    %v1650 = vld [vmem:[#allocation8 + $0x8] sm:$0xff]
    %v1651 = vld [vmem:[#allocation8 + $0x10] sm:$0xff]
    %v1652 = vld [vmem:[#allocation8 + $0x18] sm:$0xff]
    %v1653 = vld [vmem:[#allocation8 + $0x20] sm:$0xff]
    %v1654 = vld [vmem:[#allocation8 + $0x28] sm:$0xff]
    %v1655 = vld [vmem:[#allocation8 + $0x30] sm:$0xff]
    %v1656 = vld [vmem:[#allocation8 + $0x38] sm:$0xff]
    %v1657 = vld [vmem:[#allocation8 + $0x40] sm:$0xff]
    %v1658 = vld [vmem:[#allocation8 + $0x48] sm:$0xff]
    %v1659 = vld [vmem:[#allocation8 + $0x50] sm:$0xff]
    %v1660 = vld [vmem:[#allocation8 + $0x58] sm:$0xff]
    %v1661 = vld [vmem:[#allocation8 + $0x60] sm:$0xff]
    %v1662 = vld [vmem:[#allocation8 + $0x68] sm:$0xff]
    %v1663 = vld [vmem:[#allocation8 + $0x70] sm:$0xff]
    %v1664 = vld [vmem:[#allocation8 + $0x78] sm:$0xff]
    %v1665 = vld [vmem:[#allocation8 + $0x80] sm:$0xff]
    %v1666 = vld [vmem:[#allocation8 + $0x88] sm:$0xff]
    %v1667 = vld [vmem:[#allocation8 + $0x90] sm:$0xff]
    %v1668 = vld [vmem:[#allocation8 + $0x98] sm:$0xff]
    %v1669 = vld [vmem:[#allocation8 + $0xa0] sm:$0xff]
    %v1670 = vld [vmem:[#allocation8 + $0xa8] sm:$0xff]
    %v1671 = vld [vmem:[#allocation8 + $0xb0] sm:$0xff]
    %v1672 = vld [vmem:[#allocation8 + $0xb8] sm:$0xff]
    %v1673 = vld [vmem:[#allocation8 + $0xc0] sm:$0xff]
    %v1674 = vld [vmem:[#allocation8 + $0xc8] sm:$0xff]
    %v1675 = vld [vmem:[#allocation8 + $0xd0] sm:$0xff]
    %v1676 = vld [vmem:[#allocation8 + $0xd8] sm:$0xff]
    %v1677 = vld [vmem:[#allocation8 + $0xe0] sm:$0xff]
    %v1678 = vld [vmem:[#allocation8 + $0xe8] sm:$0xff]
    %v1679 = vld [vmem:[#allocation8 + $0xf0] sm:$0xff]
    %v1680 = vld [vmem:[#allocation8 + $0xf8] sm:$0xff]
    %v1681 = vld [vmem:[#allocation8 + $0x100] sm:$0xff]
    %v1682 = vld [vmem:[#allocation8 + $0x108] sm:$0xff]
    %v1683 = vld [vmem:[#allocation8 + $0x110] sm:$0xff]
    %v1684 = vld [vmem:[#allocation8 + $0x118] sm:$0xff]
    %v1685 = vld [vmem:[#allocation8 + $0x120] sm:$0xff]
    %v1686 = vld [vmem:[#allocation8 + $0x128] sm:$0xff]
    %v1687 = vld [vmem:[#allocation8 + $0x130] sm:$0xff]
    %v1688 = vld [vmem:[#allocation8 + $0x138] sm:$0xff]
    %v1689 = vld [vmem:[#allocation8 + $0x140] sm:$0xff]
    %v1690 = vld [vmem:[#allocation8 + $0x148] sm:$0xff]
    %v1691 = vld [vmem:[#allocation8 + $0x150] sm:$0xff]
    %v1692 = vld [vmem:[#allocation8 + $0x158] sm:$0xff]
    %v1693 = vld [vmem:[#allocation8 + $0x160] sm:$0xff]
    %v1694 = vld [vmem:[#allocation8 + $0x168] sm:$0xff]
    %v1695 = vld [vmem:[#allocation8 + $0x170] sm:$0xff]
    %v1696 = vld [vmem:[#allocation8 + $0x178] sm:$0xff]
    %v1697 = vld [vmem:[#allocation8 + $0x180] sm:$0xff]
    %v1698 = vld [vmem:[#allocation8 + $0x188] sm:$0xff]
    %v1699 = vld [vmem:[#allocation8 + $0x190] sm:$0xff]
    %v1700 = vld [vmem:[#allocation8 + $0x198] sm:$0xff]
    %v1701 = vld [vmem:[#allocation8 + $0x1a0] sm:$0xff]
    %v1702 = vld [vmem:[#allocation8 + $0x1a8] sm:$0xff]
    %v1703 = vld [vmem:[#allocation8 + $0x1b0] sm:$0xff]
    %v1704 = vld [vmem:[#allocation8 + $0x1b8] sm:$0xff]
    %v1705 = vld [vmem:[#allocation8 + $0x1c0] sm:$0xff]
    %v1706 = vld [vmem:[#allocation8 + $0x1c8] sm:$0xff]
    %v1707 = vld [vmem:[#allocation8 + $0x1d0] sm:$0xff]
    %v1708 = vld [vmem:[#allocation8 + $0x1d8] sm:$0xff]
    %v1709 = vld [vmem:[#allocation8 + $0x1e0] sm:$0xff]
    %v1710 = vld [vmem:[#allocation8 + $0x1e8] sm:$0xff]
    %v1711 = vld [vmem:[#allocation8 + $0x1f0] sm:$0xff]
    %v1712 = vld [vmem:[#allocation8 + $0x1f8] sm:$0xff]
    %v1713 = vld [vmem:[#allocation8 + $0x200] sm:$0xff]
    %v1714 = vld [vmem:[#allocation8 + $0x208] sm:$0xff]
    %v1715 = vld [vmem:[#allocation8 + $0x210] sm:$0xff]
    %v1716 = vld [vmem:[#allocation8 + $0x218] sm:$0xff]
    %v1717 = vld [vmem:[#allocation8 + $0x220] sm:$0xff]
    %v1718 = vld [vmem:[#allocation8 + $0x228] sm:$0xff]
    %v1719 = vld [vmem:[#allocation8 + $0x230] sm:$0xff]
    %v1720 = vld [vmem:[#allocation8 + $0x238] sm:$0xff]
    %v1721 = vld [vmem:[#allocation8 + $0x240] sm:$0xff]
    %v1722 = vld [vmem:[#allocation8 + $0x248] sm:$0xff]
    %v1723 = vld [vmem:[#allocation8 + $0x250] sm:$0xff]
    %v1724 = vld [vmem:[#allocation8 + $0x258] sm:$0xff]
    %v1725 = vld [vmem:[#allocation8 + $0x260] sm:$0xff]
    %v1726 = vld [vmem:[#allocation8 + $0x268] sm:$0xff]
    %v1727 = vld [vmem:[#allocation8 + $0x270] sm:$0xff]
    %v1728 = vld [vmem:[#allocation8 + $0x278] sm:$0xff]
    %v1729 = vld [vmem:[#allocation8 + $0x280] sm:$0xff]
    %v1730 = vld [vmem:[#allocation8 + $0x288] sm:$0xff]
    %v1731 = vld [vmem:[#allocation8 + $0x290] sm:$0xff]
    %v1732 = vld [vmem:[#allocation8 + $0x298] sm:$0xff]
    %v1733 = vld [vmem:[#allocation8 + $0x2a0] sm:$0xff]
    %v1734 = vld [vmem:[#allocation8 + $0x2a8] sm:$0xff]
    %v1735 = vld [vmem:[#allocation8 + $0x2b0] sm:$0xff]
    %v1736 = vld [vmem:[#allocation8 + $0x2b8] sm:$0xff]
    %v1737 = vld [vmem:[#allocation8 + $0x2c0] sm:$0xff]
    %v1738 = vld [vmem:[#allocation8 + $0x2c8] sm:$0xff]
    %v1739 = vld [vmem:[#allocation8 + $0x2d0] sm:$0xff]
    %v1740 = vld [vmem:[#allocation8 + $0x2d8] sm:$0xff]
    %v1741 = vld [vmem:[#allocation8 + $0x2e0] sm:$0xff]
    %v1742 = vld [vmem:[#allocation8 + $0x2e8] sm:$0xff]
    %v1743 = vld [vmem:[#allocation8 + $0x2f0] sm:$0xff]
    %v1744 = vld [vmem:[#allocation8 + $0x2f8] sm:$0xff]
    %v1745 = vld [vmem:[#allocation8 + $0x300] sm:$0xff]
    %v1746 = vld [vmem:[#allocation8 + $0x308] sm:$0xff]
    %v1747 = vld [vmem:[#allocation8 + $0x310] sm:$0xff]
    %v1748 = vld [vmem:[#allocation8 + $0x318] sm:$0xff]
    %v1749 = vld [vmem:[#allocation8 + $0x320] sm:$0xff]
    %v1750 = vld [vmem:[#allocation8 + $0x328] sm:$0xff]
    %v1751 = vld [vmem:[#allocation8 + $0x330] sm:$0xff]
    %v1752 = vld [vmem:[#allocation8 + $0x338] sm:$0xff]
    %v1753 = vld [vmem:[#allocation8 + $0x340] sm:$0xff]
    %v1754 = vld [vmem:[#allocation8 + $0x348] sm:$0xff]
    %v1755 = vld [vmem:[#allocation8 + $0x350] sm:$0xff]
    %v1756 = vld [vmem:[#allocation8 + $0x358] sm:$0xff]
    %v1757 = vld [vmem:[#allocation8 + $0x360] sm:$0xff]
    %v1758 = vld [vmem:[#allocation8 + $0x368] sm:$0xff]
    %v1759 = vld [vmem:[#allocation8 + $0x370] sm:$0xff]
    %v1760 = vld [vmem:[#allocation8 + $0x378] sm:$0xff]
    %v1761 = vld [vmem:[#allocation8 + $0x380] sm:$0xff]
    %v1762 = vld [vmem:[#allocation8 + $0x388] sm:$0xff]
    %v1763 = vld [vmem:[#allocation8 + $0x390] sm:$0xff]
    %v1764 = vld [vmem:[#allocation8 + $0x398] sm:$0xff]
    %v1765 = vld [vmem:[#allocation8 + $0x3a0] sm:$0xff]
    %v1766 = vld [vmem:[#allocation8 + $0x3a8] sm:$0xff]
    %v1767 = vld [vmem:[#allocation8 + $0x3b0] sm:$0xff]
    %v1768 = vld [vmem:[#allocation8 + $0x3b8] sm:$0xff]
    %v1769 = vld [vmem:[#allocation8 + $0x3c0] sm:$0xff]
    %v1770 = vld [vmem:[#allocation8 + $0x3c8] sm:$0xff]
    %v1771 = vld [vmem:[#allocation8 + $0x3d0] sm:$0xff]
    %v1772 = vld [vmem:[#allocation8 + $0x3d8] sm:$0xff]
    %v1773 = vld [vmem:[#allocation8 + $0x3e0] sm:$0xff]
    %v1774 = vld [vmem:[#allocation8 + $0x3e8] sm:$0xff]
    %v1775 = vld [vmem:[#allocation8 + $0x3f0] sm:$0xff]
    %v1776 = vld [vmem:[#allocation8 + $0x3f8] sm:$0xff]
    %v1777 = vld [vmem:[#allocation8 + $0x400] sm:$0xff]
    %v1778 = vld [vmem:[#allocation8 + $0x408] sm:$0xff]
    %v1779 = vld [vmem:[#allocation8 + $0x410] sm:$0xff]
    %v1780 = vld [vmem:[#allocation8 + $0x418] sm:$0xff]
    %v1781 = vld [vmem:[#allocation8 + $0x420] sm:$0xff]
    %v1782 = vld [vmem:[#allocation8 + $0x428] sm:$0xff]
    %v1783 = vld [vmem:[#allocation8 + $0x430] sm:$0xff]
    %v1784 = vld [vmem:[#allocation8 + $0x438] sm:$0xff]
    %v1785 = vld [vmem:[#allocation8 + $0x440] sm:$0xff]
    %v1786 = vld [vmem:[#allocation8 + $0x448] sm:$0xff]
    %v1787 = vld [vmem:[#allocation8 + $0x450] sm:$0xff]
    %v1788 = vld [vmem:[#allocation8 + $0x458] sm:$0xff]
    %v1789 = vld [vmem:[#allocation8 + $0x460] sm:$0xff]
    %v1790 = vld [vmem:[#allocation8 + $0x468] sm:$0xff]
    %v1791 = vld [vmem:[#allocation8 + $0x470] sm:$0xff]
    %v1792 = vld [vmem:[#allocation8 + $0x478] sm:$0xff]
    %v1793 = vld [vmem:[#allocation8 + $0x480] sm:$0xff]
    %v1794 = vld [vmem:[#allocation8 + $0x488] sm:$0xff]
    %v1795 = vld [vmem:[#allocation8 + $0x490] sm:$0xff]
    %v1796 = vld [vmem:[#allocation8 + $0x498] sm:$0xff]
    %v1797 = vld [vmem:[#allocation8 + $0x4a0] sm:$0xff]
    %v1798 = vld [vmem:[#allocation8 + $0x4a8] sm:$0xff]
    %v1799 = vld [vmem:[#allocation8 + $0x4b0] sm:$0xff]
    %v1800 = vld [vmem:[#allocation8 + $0x4b8] sm:$0xff]
    %v1801 = vld [vmem:[#allocation8 + $0x4c0] sm:$0xff]
    %v1802 = vld [vmem:[#allocation8 + $0x4c8] sm:$0xff]
    %v1803 = vld [vmem:[#allocation8 + $0x4d0] sm:$0xff]
    %v1804 = vld [vmem:[#allocation8 + $0x4d8] sm:$0xff]
    %v1805 = vld [vmem:[#allocation8 + $0x4e0] sm:$0xff]
    %v1806 = vld [vmem:[#allocation8 + $0x4e8] sm:$0xff]
    %v1807 = vld [vmem:[#allocation8 + $0x4f0] sm:$0xff]
    %v1808 = vld [vmem:[#allocation8 + $0x4f8] sm:$0xff]
    %v1809 = vld [vmem:[#allocation8 + $0x500] sm:$0xff]
    %v1810 = vld [vmem:[#allocation8 + $0x508] sm:$0xff]
    %v1811 = vld [vmem:[#allocation8 + $0x510] sm:$0xff]
    %v1812 = vld [vmem:[#allocation8 + $0x518] sm:$0xff]
    %v1813 = vld [vmem:[#allocation8 + $0x520] sm:$0xff]
    %v1814 = vld [vmem:[#allocation8 + $0x528] sm:$0xff]
    %v1815 = vld [vmem:[#allocation8 + $0x530] sm:$0xff]
    %v1816 = vld [vmem:[#allocation8 + $0x538] sm:$0xff]
    %v1817 = vld [vmem:[#allocation8 + $0x540] sm:$0xff]
    %v1818 = vld [vmem:[#allocation8 + $0x548] sm:$0xff]
    %v1819 = vld [vmem:[#allocation8 + $0x550] sm:$0xff]
    %v1820 = vld [vmem:[#allocation8 + $0x558] sm:$0xff]
    %v1821 = vld [vmem:[#allocation8 + $0x560] sm:$0xff]
    %v1822 = vld [vmem:[#allocation8 + $0x568] sm:$0xff]
    %v1823 = vld [vmem:[#allocation8 + $0x570] sm:$0xff]
    %v1824 = vld [vmem:[#allocation8 + $0x578] sm:$0xff]
    %v1825 = vld [vmem:[#allocation8 + $0x580] sm:$0xff]
    %v1826 = vld [vmem:[#allocation8 + $0x588] sm:$0xff]
    %v1827 = vld [vmem:[#allocation8 + $0x590] sm:$0xff]
    %v1828 = vld [vmem:[#allocation8 + $0x598] sm:$0xff]
    %v1829 = vld [vmem:[#allocation8 + $0x5a0] sm:$0xff]
    %v1830 = vld [vmem:[#allocation8 + $0x5a8] sm:$0xff]
    %v1831 = vld [vmem:[#allocation8 + $0x5b0] sm:$0xff]
    %v1832 = vld [vmem:[#allocation8 + $0x5b8] sm:$0xff]
    %v1833 = vld [vmem:[#allocation8 + $0x5c0] sm:$0xff]
    %v1834 = vld [vmem:[#allocation8 + $0x5c8] sm:$0xff]
    %v1835 = vld [vmem:[#allocation8 + $0x5d0] sm:$0xff]
    %v1836 = vld [vmem:[#allocation8 + $0x5d8] sm:$0xff]
    %v1837 = vld [vmem:[#allocation8 + $0x5e0] sm:$0xff]
    %v1838 = vld [vmem:[#allocation8 + $0x5e8] sm:$0xff]
    %v1839 = vld [vmem:[#allocation8 + $0x5f0] sm:$0xff]
    %v1840 = vld [vmem:[#allocation8 + $0x5f8] sm:$0xff]
    %v1841 = vld [vmem:[#allocation8 + $0x600] sm:$0xff]
    %v1842 = vld [vmem:[#allocation8 + $0x608] sm:$0xff]
    %v1843 = vld [vmem:[#allocation8 + $0x610] sm:$0xff]
    %v1844 = vld [vmem:[#allocation8 + $0x618] sm:$0xff]
    %v1845 = vld [vmem:[#allocation8 + $0x620] sm:$0xff]
    %v1846 = vld [vmem:[#allocation8 + $0x628] sm:$0xff]
    %v1847 = vld [vmem:[#allocation8 + $0x630] sm:$0xff]
    %v1848 = vld [vmem:[#allocation8 + $0x638] sm:$0xff]
    %v1849 = vld [vmem:[#allocation8 + $0x640] sm:$0xff]
    %v1850 = vld [vmem:[#allocation8 + $0x648] sm:$0xff]
    %v1851 = vld [vmem:[#allocation8 + $0x650] sm:$0xff]
    %v1852 = vld [vmem:[#allocation8 + $0x658] sm:$0xff]
    %v1853 = vld [vmem:[#allocation8 + $0x660] sm:$0xff]
    %v1854 = vld [vmem:[#allocation8 + $0x668] sm:$0xff]
    %v1855 = vld [vmem:[#allocation8 + $0x670] sm:$0xff]
    %v1856 = vld [vmem:[#allocation8 + $0x678] sm:$0xff]
    %v1857 = vld [vmem:[#allocation8 + $0x680] sm:$0xff]
    %v1858 = vld [vmem:[#allocation8 + $0x688] sm:$0xff]
    %v1859 = vld [vmem:[#allocation8 + $0x690] sm:$0xff]
    %v1860 = vld [vmem:[#allocation8 + $0x698] sm:$0xff]
    %v1861 = vld [vmem:[#allocation8 + $0x6a0] sm:$0xff]
    %v1862 = vld [vmem:[#allocation8 + $0x6a8] sm:$0xff]
    %v1863 = vld [vmem:[#allocation8 + $0x6b0] sm:$0xff]
    %v1864 = vld [vmem:[#allocation8 + $0x6b8] sm:$0xff]
    %v1865 = vld [vmem:[#allocation8 + $0x6c0] sm:$0xff]
    %v1866 = vld [vmem:[#allocation8 + $0x6c8] sm:$0xff]
    %v1867 = vld [vmem:[#allocation8 + $0x6d0] sm:$0xff]
    %v1868 = vld [vmem:[#allocation8 + $0x6d8] sm:$0xff]
    %v1869 = vld [vmem:[#allocation8 + $0x6e0] sm:$0xff]
    %v1870 = vld [vmem:[#allocation8 + $0x6e8] sm:$0xff]
    %v1871 = vld [vmem:[#allocation8 + $0x6f0] sm:$0xff]
    %v1872 = vld [vmem:[#allocation8 + $0x6f8] sm:$0xff]
    %v1873 = vld [vmem:[#allocation8 + $0x700] sm:$0xff]
    %v1874 = vld [vmem:[#allocation8 + $0x708] sm:$0xff]
    %v1875 = vld [vmem:[#allocation8 + $0x710] sm:$0xff]
    %v1876 = vld [vmem:[#allocation8 + $0x718] sm:$0xff]
    %v1877 = vld [vmem:[#allocation8 + $0x720] sm:$0xff]
    %v1878 = vld [vmem:[#allocation8 + $0x728] sm:$0xff]
    %v1879 = vld [vmem:[#allocation8 + $0x730] sm:$0xff]
    %v1880 = vld [vmem:[#allocation8 + $0x738] sm:$0xff]
    %v1881 = vld [vmem:[#allocation8 + $0x740] sm:$0xff]
    %v1882 = vld [vmem:[#allocation8 + $0x748] sm:$0xff]
    %v1883 = vld [vmem:[#allocation8 + $0x750] sm:$0xff]
    %v1884 = vld [vmem:[#allocation8 + $0x758] sm:$0xff]
    %v1885 = vld [vmem:[#allocation8 + $0x760] sm:$0xff]
    %v1886 = vld [vmem:[#allocation8 + $0x768] sm:$0xff]
    %v1887 = vld [vmem:[#allocation8 + $0x770] sm:$0xff]
    %v1888 = vld [vmem:[#allocation8 + $0x778] sm:$0xff]
    %v1889 = vld [vmem:[#allocation8 + $0x780] sm:$0xff]
    %v1890 = vld [vmem:[#allocation8 + $0x788] sm:$0xff]
    %v1891 = vld [vmem:[#allocation8 + $0x790] sm:$0xff]
    %v1892 = vld [vmem:[#allocation8 + $0x798] sm:$0xff]
    %v1893 = vld [vmem:[#allocation8 + $0x7a0] sm:$0xff]
    %v1894 = vld [vmem:[#allocation8 + $0x7a8] sm:$0xff]
    %v1895 = vld [vmem:[#allocation8 + $0x7b0] sm:$0xff]
    %v1896 = vld [vmem:[#allocation8 + $0x7b8] sm:$0xff]
    %v1897 = vld [vmem:[#allocation8 + $0x7c0] sm:$0xff]
    %v1898 = vld [vmem:[#allocation8 + $0x7c8] sm:$0xff]
    %v1899 = vld [vmem:[#allocation8 + $0x7d0] sm:$0xff]
    %v1900 = vld [vmem:[#allocation8 + $0x7d8] sm:$0xff]
    %v1901 = vld [vmem:[#allocation8 + $0x7e0] sm:$0xff]
    %v1902 = vld [vmem:[#allocation8 + $0x7e8] sm:$0xff]
    %v1903 = vld [vmem:[#allocation8 + $0x7f0] sm:$0xff]
    %v1904 = vld [vmem:[#allocation8 + $0x7f8] sm:$0xff]
    %v1905 = vunpack.c.l.s8.bf16 %v1649
    %v1906 = vunpack.c.l.s8.bf16 %v1650
    %v1907 = vunpack.c.l.s8.bf16 %v1651
    %v1908 = vunpack.c.l.s8.bf16 %v1652
    %v1909 = vunpack.c.l.s8.bf16 %v1653
    %v1910 = vunpack.c.l.s8.bf16 %v1654
    %v1911 = vunpack.c.l.s8.bf16 %v1655
    %v1912 = vunpack.c.l.s8.bf16 %v1656
    %v1913 = vunpack.c.h.s8.bf16 %v1649
    %v1914 = vunpack.c.h.s8.bf16 %v1650
    %v1915 = vunpack.c.h.s8.bf16 %v1651
    %v1916 = vunpack.c.h.s8.bf16 %v1652
    %v1917 = vunpack.c.h.s8.bf16 %v1653
    %v1918 = vunpack.c.h.s8.bf16 %v1654
    %v1919 = vunpack.c.h.s8.bf16 %v1655
    %v1920 = vunpack.c.h.s8.bf16 %v1656
    %v1921 = vunpack.c.l.s8.bf16 %v1657
    %v1922 = vunpack.c.l.s8.bf16 %v1658
    %v1923 = vunpack.c.l.s8.bf16 %v1659
    %v1924 = vunpack.c.l.s8.bf16 %v1660
    %v1925 = vunpack.c.l.s8.bf16 %v1661
    %v1926 = vunpack.c.l.s8.bf16 %v1662
    %v1927 = vunpack.c.l.s8.bf16 %v1663
    %v1928 = vunpack.c.l.s8.bf16 %v1664
    %v1929 = vunpack.c.h.s8.bf16 %v1657
    %v1930 = vunpack.c.h.s8.bf16 %v1658
    %v1931 = vunpack.c.h.s8.bf16 %v1659
    %v1932 = vunpack.c.h.s8.bf16 %v1660
    %v1933 = vunpack.c.h.s8.bf16 %v1661
    %v1934 = vunpack.c.h.s8.bf16 %v1662
    %v1935 = vunpack.c.h.s8.bf16 %v1663
    %v1936 = vunpack.c.h.s8.bf16 %v1664
    %v1937 = vunpack.c.l.s8.bf16 %v1665
    %v1938 = vunpack.c.l.s8.bf16 %v1666
    %v1939 = vunpack.c.l.s8.bf16 %v1667
    %v1940 = vunpack.c.l.s8.bf16 %v1668
    %v1941 = vunpack.c.l.s8.bf16 %v1669
    %v1942 = vunpack.c.l.s8.bf16 %v1670
    %v1943 = vunpack.c.l.s8.bf16 %v1671
    %v1944 = vunpack.c.l.s8.bf16 %v1672
    %v1945 = vunpack.c.h.s8.bf16 %v1665
    %v1946 = vunpack.c.h.s8.bf16 %v1666
    %v1947 = vunpack.c.h.s8.bf16 %v1667
    %v1948 = vunpack.c.h.s8.bf16 %v1668
    %v1949 = vunpack.c.h.s8.bf16 %v1669
    %v1950 = vunpack.c.h.s8.bf16 %v1670
    %v1951 = vunpack.c.h.s8.bf16 %v1671
    %v1952 = vunpack.c.h.s8.bf16 %v1672
    %v1953 = vunpack.c.l.s8.bf16 %v1673
    %v1954 = vunpack.c.l.s8.bf16 %v1674
    %v1955 = vunpack.c.l.s8.bf16 %v1675
    %v1956 = vunpack.c.l.s8.bf16 %v1676
    %v1957 = vunpack.c.l.s8.bf16 %v1677
    %v1958 = vunpack.c.l.s8.bf16 %v1678
    %v1959 = vunpack.c.l.s8.bf16 %v1679
    %v1960 = vunpack.c.l.s8.bf16 %v1680
    %v1961 = vunpack.c.h.s8.bf16 %v1673
    %v1962 = vunpack.c.h.s8.bf16 %v1674
    %v1963 = vunpack.c.h.s8.bf16 %v1675
    %v1964 = vunpack.c.h.s8.bf16 %v1676
    %v1965 = vunpack.c.h.s8.bf16 %v1677
    %v1966 = vunpack.c.h.s8.bf16 %v1678
    %v1967 = vunpack.c.h.s8.bf16 %v1679
    %v1968 = vunpack.c.h.s8.bf16 %v1680
    %v1969 = vunpack.c.l.s8.bf16 %v1681
    %v1970 = vunpack.c.l.s8.bf16 %v1682
    %v1971 = vunpack.c.l.s8.bf16 %v1683
    %v1972 = vunpack.c.l.s8.bf16 %v1684
    %v1973 = vunpack.c.l.s8.bf16 %v1685
    %v1974 = vunpack.c.l.s8.bf16 %v1686
    %v1975 = vunpack.c.l.s8.bf16 %v1687
    %v1976 = vunpack.c.l.s8.bf16 %v1688
    %v1977 = vunpack.c.h.s8.bf16 %v1681
    %v1978 = vunpack.c.h.s8.bf16 %v1682
    %v1979 = vunpack.c.h.s8.bf16 %v1683
    %v1980 = vunpack.c.h.s8.bf16 %v1684
    %v1981 = vunpack.c.h.s8.bf16 %v1685
    %v1982 = vunpack.c.h.s8.bf16 %v1686
    %v1983 = vunpack.c.h.s8.bf16 %v1687
    %v1984 = vunpack.c.h.s8.bf16 %v1688
    %v1985 = vunpack.c.l.s8.bf16 %v1689
    %v1986 = vunpack.c.l.s8.bf16 %v1690
    %v1987 = vunpack.c.l.s8.bf16 %v1691
    %v1988 = vunpack.c.l.s8.bf16 %v1692
    %v1989 = vunpack.c.l.s8.bf16 %v1693
    %v1990 = vunpack.c.l.s8.bf16 %v1694
    %v1991 = vunpack.c.l.s8.bf16 %v1695
    %v1992 = vunpack.c.l.s8.bf16 %v1696
    %v1993 = vunpack.c.h.s8.bf16 %v1689
    %v1994 = vunpack.c.h.s8.bf16 %v1690
    %v1995 = vunpack.c.h.s8.bf16 %v1691
    %v1996 = vunpack.c.h.s8.bf16 %v1692
    %v1997 = vunpack.c.h.s8.bf16 %v1693
    %v1998 = vunpack.c.h.s8.bf16 %v1694
    %v1999 = vunpack.c.h.s8.bf16 %v1695
    %v2000 = vunpack.c.h.s8.bf16 %v1696
    %v2001 = vunpack.c.l.s8.bf16 %v1697
    %v2002 = vunpack.c.l.s8.bf16 %v1698
    %v2003 = vunpack.c.l.s8.bf16 %v1699
    %v2004 = vunpack.c.l.s8.bf16 %v1700
    %v2005 = vunpack.c.l.s8.bf16 %v1701
    %v2006 = vunpack.c.l.s8.bf16 %v1702
    %v2007 = vunpack.c.l.s8.bf16 %v1703
    %v2008 = vunpack.c.l.s8.bf16 %v1704
    %v2009 = vunpack.c.h.s8.bf16 %v1697
    %v2010 = vunpack.c.h.s8.bf16 %v1698
    %v2011 = vunpack.c.h.s8.bf16 %v1699
    %v2012 = vunpack.c.h.s8.bf16 %v1700
    %v2013 = vunpack.c.h.s8.bf16 %v1701
    %v2014 = vunpack.c.h.s8.bf16 %v1702
    %v2015 = vunpack.c.h.s8.bf16 %v1703
    %v2016 = vunpack.c.h.s8.bf16 %v1704
    %v2017 = vunpack.c.l.s8.bf16 %v1705
    %v2018 = vunpack.c.l.s8.bf16 %v1706
    %v2019 = vunpack.c.l.s8.bf16 %v1707
    %v2020 = vunpack.c.l.s8.bf16 %v1708
    %v2021 = vunpack.c.l.s8.bf16 %v1709
    %v2022 = vunpack.c.l.s8.bf16 %v1710
    %v2023 = vunpack.c.l.s8.bf16 %v1711
    %v2024 = vunpack.c.l.s8.bf16 %v1712
    %v2025 = vunpack.c.h.s8.bf16 %v1705
    %v2026 = vunpack.c.h.s8.bf16 %v1706
    %v2027 = vunpack.c.h.s8.bf16 %v1707
    %v2028 = vunpack.c.h.s8.bf16 %v1708
    %v2029 = vunpack.c.h.s8.bf16 %v1709
    %v2030 = vunpack.c.h.s8.bf16 %v1710
    %v2031 = vunpack.c.h.s8.bf16 %v1711
    %v2032 = vunpack.c.h.s8.bf16 %v1712
    %v2033 = vunpack.c.l.s8.bf16 %v1713
    %v2034 = vunpack.c.l.s8.bf16 %v1714
    %v2035 = vunpack.c.l.s8.bf16 %v1715
    %v2036 = vunpack.c.l.s8.bf16 %v1716
    %v2037 = vunpack.c.l.s8.bf16 %v1717
    %v2038 = vunpack.c.l.s8.bf16 %v1718
    %v2039 = vunpack.c.l.s8.bf16 %v1719
    %v2040 = vunpack.c.l.s8.bf16 %v1720
    %v2041 = vunpack.c.h.s8.bf16 %v1713
    %v2042 = vunpack.c.h.s8.bf16 %v1714
    %v2043 = vunpack.c.h.s8.bf16 %v1715
    %v2044 = vunpack.c.h.s8.bf16 %v1716
    %v2045 = vunpack.c.h.s8.bf16 %v1717
    %v2046 = vunpack.c.h.s8.bf16 %v1718
    %v2047 = vunpack.c.h.s8.bf16 %v1719
    %v2048 = vunpack.c.h.s8.bf16 %v1720
    %v2049 = vunpack.c.l.s8.bf16 %v1721
    %v2050 = vunpack.c.l.s8.bf16 %v1722
    %v2051 = vunpack.c.l.s8.bf16 %v1723
    %v2052 = vunpack.c.l.s8.bf16 %v1724
    %v2053 = vunpack.c.l.s8.bf16 %v1725
    %v2054 = vunpack.c.l.s8.bf16 %v1726
    %v2055 = vunpack.c.l.s8.bf16 %v1727
    %v2056 = vunpack.c.l.s8.bf16 %v1728
    %v2057 = vunpack.c.h.s8.bf16 %v1721
    %v2058 = vunpack.c.h.s8.bf16 %v1722
    %v2059 = vunpack.c.h.s8.bf16 %v1723
    %v2060 = vunpack.c.h.s8.bf16 %v1724
    %v2061 = vunpack.c.h.s8.bf16 %v1725
    %v2062 = vunpack.c.h.s8.bf16 %v1726
    %v2063 = vunpack.c.h.s8.bf16 %v1727
    %v2064 = vunpack.c.h.s8.bf16 %v1728
    %v2065 = vunpack.c.l.s8.bf16 %v1729
    %v2066 = vunpack.c.l.s8.bf16 %v1730
    %v2067 = vunpack.c.l.s8.bf16 %v1731
    %v2068 = vunpack.c.l.s8.bf16 %v1732
    %v2069 = vunpack.c.l.s8.bf16 %v1733
    %v2070 = vunpack.c.l.s8.bf16 %v1734
    %v2071 = vunpack.c.l.s8.bf16 %v1735
    %v2072 = vunpack.c.l.s8.bf16 %v1736
    %v2073 = vunpack.c.h.s8.bf16 %v1729
    %v2074 = vunpack.c.h.s8.bf16 %v1730
    %v2075 = vunpack.c.h.s8.bf16 %v1731
    %v2076 = vunpack.c.h.s8.bf16 %v1732
    %v2077 = vunpack.c.h.s8.bf16 %v1733
    %v2078 = vunpack.c.h.s8.bf16 %v1734
    %v2079 = vunpack.c.h.s8.bf16 %v1735
    %v2080 = vunpack.c.h.s8.bf16 %v1736
    %v2081 = vunpack.c.l.s8.bf16 %v1737
    %v2082 = vunpack.c.l.s8.bf16 %v1738
    %v2083 = vunpack.c.l.s8.bf16 %v1739
    %v2084 = vunpack.c.l.s8.bf16 %v1740
    %v2085 = vunpack.c.l.s8.bf16 %v1741
    %v2086 = vunpack.c.l.s8.bf16 %v1742
    %v2087 = vunpack.c.l.s8.bf16 %v1743
    %v2088 = vunpack.c.l.s8.bf16 %v1744
    %v2089 = vunpack.c.h.s8.bf16 %v1737
    %v2090 = vunpack.c.h.s8.bf16 %v1738
    %v2091 = vunpack.c.h.s8.bf16 %v1739
    %v2092 = vunpack.c.h.s8.bf16 %v1740
    %v2093 = vunpack.c.h.s8.bf16 %v1741
    %v2094 = vunpack.c.h.s8.bf16 %v1742
    %v2095 = vunpack.c.h.s8.bf16 %v1743
    %v2096 = vunpack.c.h.s8.bf16 %v1744
    %v2097 = vunpack.c.l.s8.bf16 %v1745
    %v2098 = vunpack.c.l.s8.bf16 %v1746
    %v2099 = vunpack.c.l.s8.bf16 %v1747
    %v2100 = vunpack.c.l.s8.bf16 %v1748
    %v2101 = vunpack.c.l.s8.bf16 %v1749
    %v2102 = vunpack.c.l.s8.bf16 %v1750
    %v2103 = vunpack.c.l.s8.bf16 %v1751
    %v2104 = vunpack.c.l.s8.bf16 %v1752
    %v2105 = vunpack.c.h.s8.bf16 %v1745
    %v2106 = vunpack.c.h.s8.bf16 %v1746
    %v2107 = vunpack.c.h.s8.bf16 %v1747
    %v2108 = vunpack.c.h.s8.bf16 %v1748
    %v2109 = vunpack.c.h.s8.bf16 %v1749
    %v2110 = vunpack.c.h.s8.bf16 %v1750
    %v2111 = vunpack.c.h.s8.bf16 %v1751
    %v2112 = vunpack.c.h.s8.bf16 %v1752
    %v2113 = vunpack.c.l.s8.bf16 %v1753
    %v2114 = vunpack.c.l.s8.bf16 %v1754
    %v2115 = vunpack.c.l.s8.bf16 %v1755
    %v2116 = vunpack.c.l.s8.bf16 %v1756
    %v2117 = vunpack.c.l.s8.bf16 %v1757
    %v2118 = vunpack.c.l.s8.bf16 %v1758
    %v2119 = vunpack.c.l.s8.bf16 %v1759
    %v2120 = vunpack.c.l.s8.bf16 %v1760
    %v2121 = vunpack.c.h.s8.bf16 %v1753
    %v2122 = vunpack.c.h.s8.bf16 %v1754
    %v2123 = vunpack.c.h.s8.bf16 %v1755
    %v2124 = vunpack.c.h.s8.bf16 %v1756
    %v2125 = vunpack.c.h.s8.bf16 %v1757
    %v2126 = vunpack.c.h.s8.bf16 %v1758
    %v2127 = vunpack.c.h.s8.bf16 %v1759
    %v2128 = vunpack.c.h.s8.bf16 %v1760
    %v2129 = vunpack.c.l.s8.bf16 %v1761
    %v2130 = vunpack.c.l.s8.bf16 %v1762
    %v2131 = vunpack.c.l.s8.bf16 %v1763
    %v2132 = vunpack.c.l.s8.bf16 %v1764
    %v2133 = vunpack.c.l.s8.bf16 %v1765
    %v2134 = vunpack.c.l.s8.bf16 %v1766
    %v2135 = vunpack.c.l.s8.bf16 %v1767
    %v2136 = vunpack.c.l.s8.bf16 %v1768
    %v2137 = vunpack.c.h.s8.bf16 %v1761
    %v2138 = vunpack.c.h.s8.bf16 %v1762
    %v2139 = vunpack.c.h.s8.bf16 %v1763
    %v2140 = vunpack.c.h.s8.bf16 %v1764
    %v2141 = vunpack.c.h.s8.bf16 %v1765
    %v2142 = vunpack.c.h.s8.bf16 %v1766
    %v2143 = vunpack.c.h.s8.bf16 %v1767
    %v2144 = vunpack.c.h.s8.bf16 %v1768
    %v2145 = vunpack.c.l.s8.bf16 %v1769
    %v2146 = vunpack.c.l.s8.bf16 %v1770
    %v2147 = vunpack.c.l.s8.bf16 %v1771
    %v2148 = vunpack.c.l.s8.bf16 %v1772
    %v2149 = vunpack.c.l.s8.bf16 %v1773
    %v2150 = vunpack.c.l.s8.bf16 %v1774
    %v2151 = vunpack.c.l.s8.bf16 %v1775
    %v2152 = vunpack.c.l.s8.bf16 %v1776
    %v2153 = vunpack.c.h.s8.bf16 %v1769
    %v2154 = vunpack.c.h.s8.bf16 %v1770
    %v2155 = vunpack.c.h.s8.bf16 %v1771
    %v2156 = vunpack.c.h.s8.bf16 %v1772
    %v2157 = vunpack.c.h.s8.bf16 %v1773
    %v2158 = vunpack.c.h.s8.bf16 %v1774
    %v2159 = vunpack.c.h.s8.bf16 %v1775
    %v2160 = vunpack.c.h.s8.bf16 %v1776
    %v2161 = vunpack.c.l.s8.bf16 %v1777
    %v2162 = vunpack.c.l.s8.bf16 %v1778
    %v2163 = vunpack.c.l.s8.bf16 %v1779
    %v2164 = vunpack.c.l.s8.bf16 %v1780
    %v2165 = vunpack.c.l.s8.bf16 %v1781
    %v2166 = vunpack.c.l.s8.bf16 %v1782
    %v2167 = vunpack.c.l.s8.bf16 %v1783
    %v2168 = vunpack.c.l.s8.bf16 %v1784
    %v2169 = vunpack.c.h.s8.bf16 %v1777
    %v2170 = vunpack.c.h.s8.bf16 %v1778
    %v2171 = vunpack.c.h.s8.bf16 %v1779
    %v2172 = vunpack.c.h.s8.bf16 %v1780
    %v2173 = vunpack.c.h.s8.bf16 %v1781
    %v2174 = vunpack.c.h.s8.bf16 %v1782
    %v2175 = vunpack.c.h.s8.bf16 %v1783
    %v2176 = vunpack.c.h.s8.bf16 %v1784
    %v2177 = vunpack.c.l.s8.bf16 %v1785
    %v2178 = vunpack.c.l.s8.bf16 %v1786
    %v2179 = vunpack.c.l.s8.bf16 %v1787
    %v2180 = vunpack.c.l.s8.bf16 %v1788
    %v2181 = vunpack.c.l.s8.bf16 %v1789
    %v2182 = vunpack.c.l.s8.bf16 %v1790
    %v2183 = vunpack.c.l.s8.bf16 %v1791
    %v2184 = vunpack.c.l.s8.bf16 %v1792
    %v2185 = vunpack.c.h.s8.bf16 %v1785
    %v2186 = vunpack.c.h.s8.bf16 %v1786
    %v2187 = vunpack.c.h.s8.bf16 %v1787
    %v2188 = vunpack.c.h.s8.bf16 %v1788
    %v2189 = vunpack.c.h.s8.bf16 %v1789
    %v2190 = vunpack.c.h.s8.bf16 %v1790
    %v2191 = vunpack.c.h.s8.bf16 %v1791
    %v2192 = vunpack.c.h.s8.bf16 %v1792
    %v2193 = vunpack.c.l.s8.bf16 %v1793
    %v2194 = vunpack.c.l.s8.bf16 %v1794
    %v2195 = vunpack.c.l.s8.bf16 %v1795
    %v2196 = vunpack.c.l.s8.bf16 %v1796
    %v2197 = vunpack.c.l.s8.bf16 %v1797
    %v2198 = vunpack.c.l.s8.bf16 %v1798
    %v2199 = vunpack.c.l.s8.bf16 %v1799
    %v2200 = vunpack.c.l.s8.bf16 %v1800
    %v2201 = vunpack.c.h.s8.bf16 %v1793
    %v2202 = vunpack.c.h.s8.bf16 %v1794
    %v2203 = vunpack.c.h.s8.bf16 %v1795
    %v2204 = vunpack.c.h.s8.bf16 %v1796
    %v2205 = vunpack.c.h.s8.bf16 %v1797
    %v2206 = vunpack.c.h.s8.bf16 %v1798
    %v2207 = vunpack.c.h.s8.bf16 %v1799
    %v2208 = vunpack.c.h.s8.bf16 %v1800
    %v2209 = vunpack.c.l.s8.bf16 %v1801
    %v2210 = vunpack.c.l.s8.bf16 %v1802
    %v2211 = vunpack.c.l.s8.bf16 %v1803
    %v2212 = vunpack.c.l.s8.bf16 %v1804
    %v2213 = vunpack.c.l.s8.bf16 %v1805
    %v2214 = vunpack.c.l.s8.bf16 %v1806
    %v2215 = vunpack.c.l.s8.bf16 %v1807
    %v2216 = vunpack.c.l.s8.bf16 %v1808
    %v2217 = vunpack.c.h.s8.bf16 %v1801
    %v2218 = vunpack.c.h.s8.bf16 %v1802
    %v2219 = vunpack.c.h.s8.bf16 %v1803
    %v2220 = vunpack.c.h.s8.bf16 %v1804
    %v2221 = vunpack.c.h.s8.bf16 %v1805
    %v2222 = vunpack.c.h.s8.bf16 %v1806
    %v2223 = vunpack.c.h.s8.bf16 %v1807
    %v2224 = vunpack.c.h.s8.bf16 %v1808
    %v2225 = vunpack.c.l.s8.bf16 %v1809
    %v2226 = vunpack.c.l.s8.bf16 %v1810
    %v2227 = vunpack.c.l.s8.bf16 %v1811
    %v2228 = vunpack.c.l.s8.bf16 %v1812
    %v2229 = vunpack.c.l.s8.bf16 %v1813
    %v2230 = vunpack.c.l.s8.bf16 %v1814
    %v2231 = vunpack.c.l.s8.bf16 %v1815
    %v2232 = vunpack.c.l.s8.bf16 %v1816
    %v2233 = vunpack.c.h.s8.bf16 %v1809
    %v2234 = vunpack.c.h.s8.bf16 %v1810
    %v2235 = vunpack.c.h.s8.bf16 %v1811
    %v2236 = vunpack.c.h.s8.bf16 %v1812
    %v2237 = vunpack.c.h.s8.bf16 %v1813
    %v2238 = vunpack.c.h.s8.bf16 %v1814
    %v2239 = vunpack.c.h.s8.bf16 %v1815
    %v2240 = vunpack.c.h.s8.bf16 %v1816
    %v2241 = vunpack.c.l.s8.bf16 %v1817
    %v2242 = vunpack.c.l.s8.bf16 %v1818
    %v2243 = vunpack.c.l.s8.bf16 %v1819
    %v2244 = vunpack.c.l.s8.bf16 %v1820
    %v2245 = vunpack.c.l.s8.bf16 %v1821
    %v2246 = vunpack.c.l.s8.bf16 %v1822
    %v2247 = vunpack.c.l.s8.bf16 %v1823
    %v2248 = vunpack.c.l.s8.bf16 %v1824
    %v2249 = vunpack.c.h.s8.bf16 %v1817
    %v2250 = vunpack.c.h.s8.bf16 %v1818
    %v2251 = vunpack.c.h.s8.bf16 %v1819
    %v2252 = vunpack.c.h.s8.bf16 %v1820
    %v2253 = vunpack.c.h.s8.bf16 %v1821
    %v2254 = vunpack.c.h.s8.bf16 %v1822
    %v2255 = vunpack.c.h.s8.bf16 %v1823
    %v2256 = vunpack.c.h.s8.bf16 %v1824
    %v2257 = vunpack.c.l.s8.bf16 %v1825
    %v2258 = vunpack.c.l.s8.bf16 %v1826
    %v2259 = vunpack.c.l.s8.bf16 %v1827
    %v2260 = vunpack.c.l.s8.bf16 %v1828
    %v2261 = vunpack.c.l.s8.bf16 %v1829
    %v2262 = vunpack.c.l.s8.bf16 %v1830
    %v2263 = vunpack.c.l.s8.bf16 %v1831
    %v2264 = vunpack.c.l.s8.bf16 %v1832
    %v2265 = vunpack.c.h.s8.bf16 %v1825
    %v2266 = vunpack.c.h.s8.bf16 %v1826
    %v2267 = vunpack.c.h.s8.bf16 %v1827
    %v2268 = vunpack.c.h.s8.bf16 %v1828
    %v2269 = vunpack.c.h.s8.bf16 %v1829
    %v2270 = vunpack.c.h.s8.bf16 %v1830
    %v2271 = vunpack.c.h.s8.bf16 %v1831
    %v2272 = vunpack.c.h.s8.bf16 %v1832
    %v2273 = vunpack.c.l.s8.bf16 %v1833
    %v2274 = vunpack.c.l.s8.bf16 %v1834
    %v2275 = vunpack.c.l.s8.bf16 %v1835
    %v2276 = vunpack.c.l.s8.bf16 %v1836
    %v2277 = vunpack.c.l.s8.bf16 %v1837
    %v2278 = vunpack.c.l.s8.bf16 %v1838
    %v2279 = vunpack.c.l.s8.bf16 %v1839
    %v2280 = vunpack.c.l.s8.bf16 %v1840
    %v2281 = vunpack.c.h.s8.bf16 %v1833
    %v2282 = vunpack.c.h.s8.bf16 %v1834
    %v2283 = vunpack.c.h.s8.bf16 %v1835
    %v2284 = vunpack.c.h.s8.bf16 %v1836
    %v2285 = vunpack.c.h.s8.bf16 %v1837
    %v2286 = vunpack.c.h.s8.bf16 %v1838
    %v2287 = vunpack.c.h.s8.bf16 %v1839
    %v2288 = vunpack.c.h.s8.bf16 %v1840
    %v2289 = vunpack.c.l.s8.bf16 %v1841
    %v2290 = vunpack.c.l.s8.bf16 %v1842
    %v2291 = vunpack.c.l.s8.bf16 %v1843
    %v2292 = vunpack.c.l.s8.bf16 %v1844
    %v2293 = vunpack.c.l.s8.bf16 %v1845
    %v2294 = vunpack.c.l.s8.bf16 %v1846
    %v2295 = vunpack.c.l.s8.bf16 %v1847
    %v2296 = vunpack.c.l.s8.bf16 %v1848
    %v2297 = vunpack.c.h.s8.bf16 %v1841
    %v2298 = vunpack.c.h.s8.bf16 %v1842
    %v2299 = vunpack.c.h.s8.bf16 %v1843
    %v2300 = vunpack.c.h.s8.bf16 %v1844
    %v2301 = vunpack.c.h.s8.bf16 %v1845
    %v2302 = vunpack.c.h.s8.bf16 %v1846
    %v2303 = vunpack.c.h.s8.bf16 %v1847
    %v2304 = vunpack.c.h.s8.bf16 %v1848
    %v2305 = vunpack.c.l.s8.bf16 %v1849
    %v2306 = vunpack.c.l.s8.bf16 %v1850
    %v2307 = vunpack.c.l.s8.bf16 %v1851
    %v2308 = vunpack.c.l.s8.bf16 %v1852
    %v2309 = vunpack.c.l.s8.bf16 %v1853
    %v2310 = vunpack.c.l.s8.bf16 %v1854
    %v2311 = vunpack.c.l.s8.bf16 %v1855
    %v2312 = vunpack.c.l.s8.bf16 %v1856
    %v2313 = vunpack.c.h.s8.bf16 %v1849
    %v2314 = vunpack.c.h.s8.bf16 %v1850
    %v2315 = vunpack.c.h.s8.bf16 %v1851
    %v2316 = vunpack.c.h.s8.bf16 %v1852
    %v2317 = vunpack.c.h.s8.bf16 %v1853
    %v2318 = vunpack.c.h.s8.bf16 %v1854
    %v2319 = vunpack.c.h.s8.bf16 %v1855
    %v2320 = vunpack.c.h.s8.bf16 %v1856
    %v2321 = vunpack.c.l.s8.bf16 %v1857
    %v2322 = vunpack.c.l.s8.bf16 %v1858
    %v2323 = vunpack.c.l.s8.bf16 %v1859
    %v2324 = vunpack.c.l.s8.bf16 %v1860
    %v2325 = vunpack.c.l.s8.bf16 %v1861
    %v2326 = vunpack.c.l.s8.bf16 %v1862
    %v2327 = vunpack.c.l.s8.bf16 %v1863
    %v2328 = vunpack.c.l.s8.bf16 %v1864
    %v2329 = vunpack.c.h.s8.bf16 %v1857
    %v2330 = vunpack.c.h.s8.bf16 %v1858
    %v2331 = vunpack.c.h.s8.bf16 %v1859
    %v2332 = vunpack.c.h.s8.bf16 %v1860
    %v2333 = vunpack.c.h.s8.bf16 %v1861
    %v2334 = vunpack.c.h.s8.bf16 %v1862
    %v2335 = vunpack.c.h.s8.bf16 %v1863
    %v2336 = vunpack.c.h.s8.bf16 %v1864
    %v2337 = vunpack.c.l.s8.bf16 %v1865
    %v2338 = vunpack.c.l.s8.bf16 %v1866
    %v2339 = vunpack.c.l.s8.bf16 %v1867
    %v2340 = vunpack.c.l.s8.bf16 %v1868
    %v2341 = vunpack.c.l.s8.bf16 %v1869
    %v2342 = vunpack.c.l.s8.bf16 %v1870
    %v2343 = vunpack.c.l.s8.bf16 %v1871
    %v2344 = vunpack.c.l.s8.bf16 %v1872
    %v2345 = vunpack.c.h.s8.bf16 %v1865
    %v2346 = vunpack.c.h.s8.bf16 %v1866
    %v2347 = vunpack.c.h.s8.bf16 %v1867
    %v2348 = vunpack.c.h.s8.bf16 %v1868
    %v2349 = vunpack.c.h.s8.bf16 %v1869
    %v2350 = vunpack.c.h.s8.bf16 %v1870
    %v2351 = vunpack.c.h.s8.bf16 %v1871
    %v2352 = vunpack.c.h.s8.bf16 %v1872
    %v2353 = vunpack.c.l.s8.bf16 %v1873
    %v2354 = vunpack.c.l.s8.bf16 %v1874
    %v2355 = vunpack.c.l.s8.bf16 %v1875
    %v2356 = vunpack.c.l.s8.bf16 %v1876
    %v2357 = vunpack.c.l.s8.bf16 %v1877
    %v2358 = vunpack.c.l.s8.bf16 %v1878
    %v2359 = vunpack.c.l.s8.bf16 %v1879
    %v2360 = vunpack.c.l.s8.bf16 %v1880
    %v2361 = vunpack.c.h.s8.bf16 %v1873
    %v2362 = vunpack.c.h.s8.bf16 %v1874
    %v2363 = vunpack.c.h.s8.bf16 %v1875
    %v2364 = vunpack.c.h.s8.bf16 %v1876
    %v2365 = vunpack.c.h.s8.bf16 %v1877
    %v2366 = vunpack.c.h.s8.bf16 %v1878
    %v2367 = vunpack.c.h.s8.bf16 %v1879
    %v2368 = vunpack.c.h.s8.bf16 %v1880
    %v2369 = vunpack.c.l.s8.bf16 %v1881
    %v2370 = vunpack.c.l.s8.bf16 %v1882
    %v2371 = vunpack.c.l.s8.bf16 %v1883
    %v2372 = vunpack.c.l.s8.bf16 %v1884
    %v2373 = vunpack.c.l.s8.bf16 %v1885
    %v2374 = vunpack.c.l.s8.bf16 %v1886
    %v2375 = vunpack.c.l.s8.bf16 %v1887
    %v2376 = vunpack.c.l.s8.bf16 %v1888
    %v2377 = vunpack.c.h.s8.bf16 %v1881
    %v2378 = vunpack.c.h.s8.bf16 %v1882
    %v2379 = vunpack.c.h.s8.bf16 %v1883
    %v2380 = vunpack.c.h.s8.bf16 %v1884
    %v2381 = vunpack.c.h.s8.bf16 %v1885
    %v2382 = vunpack.c.h.s8.bf16 %v1886
    %v2383 = vunpack.c.h.s8.bf16 %v1887
    %v2384 = vunpack.c.h.s8.bf16 %v1888
    %v2385 = vunpack.c.l.s8.bf16 %v1889
    %v2386 = vunpack.c.l.s8.bf16 %v1890
    %v2387 = vunpack.c.l.s8.bf16 %v1891
    %v2388 = vunpack.c.l.s8.bf16 %v1892
    %v2389 = vunpack.c.l.s8.bf16 %v1893
    %v2390 = vunpack.c.l.s8.bf16 %v1894
    %v2391 = vunpack.c.l.s8.bf16 %v1895
    %v2392 = vunpack.c.l.s8.bf16 %v1896
    %v2393 = vunpack.c.h.s8.bf16 %v1889
    %v2394 = vunpack.c.h.s8.bf16 %v1890
    %v2395 = vunpack.c.h.s8.bf16 %v1891
    %v2396 = vunpack.c.h.s8.bf16 %v1892
    %v2397 = vunpack.c.h.s8.bf16 %v1893
    %v2398 = vunpack.c.h.s8.bf16 %v1894
    %v2399 = vunpack.c.h.s8.bf16 %v1895
    %v2400 = vunpack.c.h.s8.bf16 %v1896
    %v2401 = vunpack.c.l.s8.bf16 %v1897
    %v2402 = vunpack.c.l.s8.bf16 %v1898
    %v2403 = vunpack.c.l.s8.bf16 %v1899
    %v2404 = vunpack.c.l.s8.bf16 %v1900
    %v2405 = vunpack.c.l.s8.bf16 %v1901
    %v2406 = vunpack.c.l.s8.bf16 %v1902
    %v2407 = vunpack.c.l.s8.bf16 %v1903
    %v2408 = vunpack.c.l.s8.bf16 %v1904
    %v2409 = vunpack.c.h.s8.bf16 %v1897
    %v2410 = vunpack.c.h.s8.bf16 %v1898
    %v2411 = vunpack.c.h.s8.bf16 %v1899
    %v2412 = vunpack.c.h.s8.bf16 %v1900
    %v2413 = vunpack.c.h.s8.bf16 %v1901
    %v2414 = vunpack.c.h.s8.bf16 %v1902
    %v2415 = vunpack.c.h.s8.bf16 %v1903
    %v2416 = vunpack.c.h.s8.bf16 %v1904
    %v2417 = vld [vmem:[#allocation2] sm:$0xff]
    %v2418 = vld [vmem:[#allocation2 + $0x8] sm:$0xff]
    %v2419 = vld [vmem:[#allocation2 + $0x10] sm:$0xff]
    %v2420 = vld [vmem:[#allocation2 + $0x18] sm:$0xff]
    %v2421 = vld [vmem:[#allocation2 + $0x20] sm:$0xff]
    %v2422 = vld [vmem:[#allocation2 + $0x28] sm:$0xff]
    %v2423 = vld [vmem:[#allocation2 + $0x30] sm:$0xff]
    %v2424 = vld [vmem:[#allocation2 + $0x38] sm:$0xff]
    %v2425 = vpack.c.bf16 %v1641, %v1641
    %v2426 = vpack.c.bf16 %v1642, %v1642
    %v2427 = vpack.c.bf16 %v1643, %v1643
    %v2428 = vpack.c.bf16 %v1644, %v1644
    %v2429 = vpack.c.bf16 %v1645, %v1645
    %v2430 = vpack.c.bf16 %v1646, %v1646
    %v2431 = vpack.c.bf16 %v1647, %v1647
    %v2432 = vpack.c.bf16 %v1648, %v1648
    %2433 = vmatprep.subr.bf16.mxu0 %v1906
    %2434 = vmatpush1.bf16.msra.mxu0 %v1905
    %2435 = vmatprep.subr.bf16.mxu0 %v1914
    %2436 = vmatpush1.bf16.msra.mxu0 %v1913
    %2437 = vmatprep.subr.bf16.mxu0 %v1922
    %2438 = vmatpush1.bf16.msra.mxu0 %v1921
    %2439 = vmatprep.subr.bf16.mxu0 %v1930
    %2440 = vmatpush1.bf16.msra.mxu0 %v1929
    %2441 = vmatprep.subr.bf16.mxu0 %v1938
    %2442 = vmatpush1.bf16.msra.mxu0 %v1937
    %2443 = vmatprep.subr.bf16.mxu0 %v1946
    %2444 = vmatpush1.bf16.msra.mxu0 %v1945
    %2445 = vmatprep.subr.bf16.mxu0 %v1954
    %2446 = vmatpush1.bf16.msra.mxu0 %v1953
    %2447 = vmatprep.subr.bf16.mxu0 %v1962
    %2448 = vmatpush1.bf16.msra.mxu0 %v1961
    %2449 = vmatprep.subr.bf16.mxu0 %v1970
    %2450 = vmatpush1.bf16.msra.mxu0 %v1969
    %2451 = vmatprep.subr.bf16.mxu0 %v1978
    %2452 = vmatpush1.bf16.msra.mxu0 %v1977
    %2453 = vmatprep.subr.bf16.mxu0 %v1986
    %2454 = vmatpush1.bf16.msra.mxu0 %v1985
    %2455 = vmatprep.subr.bf16.mxu0 %v1994
    %2456 = vmatpush1.bf16.msra.mxu0 %v1993
    %2457 = vmatprep.subr.bf16.mxu0 %v2002
    %2458 = vmatpush1.bf16.msra.mxu0 %v2001
    %2459 = vmatprep.subr.bf16.mxu0 %v2010
    %2460 = vmatpush1.bf16.msra.mxu0 %v2009
    %2461 = vmatprep.subr.bf16.mxu0 %v2018
    %2462 = vmatpush1.bf16.msra.mxu0 %v2017
    %2463 = vmatprep.subr.bf16.mxu0 %v2026
    %2464 = vmatpush1.bf16.msra.mxu0 %v2025
    %2465 = vmatprep.mubr.bf16.mxu0 %v2426
    %2466 = vmatmul.mubr.bf16.gmra.mrb[0].mxu0 %v2425
    %v2467 = vpop.f32.mrb[0].mxu0
    %v2468 = vadd.f32 0.0, %v2467
    %v2469 = vpop.f32.mrb[0].mxu0
    %v2470 = vadd.f32 0.0, %v2469
    %v2471 = vpop.f32.mrb[0].mxu0
    %v2472 = vpop.f32.mrb[0].mxu0
    %2473 = vdwg.mxu0
    %2474 = vmatprep.subr.bf16.mxu0 %v2034
    %2475 = vmatpush1.bf16.msra.mxu0 %v2033
    %2476 = vmatprep.subr.bf16.mxu0 %v2042
    %2477 = vmatpush1.bf16.msra.mxu0 %v2041
    %2478 = vmatprep.subr.bf16.mxu0 %v2050
    %2479 = vmatpush1.bf16.msra.mxu0 %v2049
    %2480 = vmatprep.subr.bf16.mxu0 %v2058
    %2481 = vmatpush1.bf16.msra.mxu0 %v2057
    %2482 = vmatprep.subr.bf16.mxu0 %v2066
    %2483 = vmatpush1.bf16.msra.mxu0 %v2065
    %2484 = vmatprep.subr.bf16.mxu0 %v2074
    %2485 = vmatpush1.bf16.msra.mxu0 %v2073
    %2486 = vmatprep.subr.bf16.mxu0 %v2082
    %2487 = vmatpush1.bf16.msra.mxu0 %v2081
    %2488 = vmatprep.subr.bf16.mxu0 %v2090
    %2489 = vmatpush1.bf16.msra.mxu0 %v2089
    %2490 = vmatprep.subr.bf16.mxu0 %v2098
    %2491 = vmatpush1.bf16.msra.mxu0 %v2097
    %2492 = vmatprep.subr.bf16.mxu0 %v2106
    %2493 = vmatpush1.bf16.msra.mxu0 %v2105
    %2494 = vmatprep.subr.bf16.mxu0 %v2114
    %2495 = vmatpush1.bf16.msra.mxu0 %v2113
    %2496 = vmatprep.subr.bf16.mxu0 %v2122
    %2497 = vmatpush1.bf16.msra.mxu0 %v2121
    %2498 = vmatprep.subr.bf16.mxu0 %v2130
    %2499 = vmatpush1.bf16.msra.mxu0 %v2129
    %2500 = vmatprep.subr.bf16.mxu0 %v2138
    %2501 = vmatpush1.bf16.msra.mxu0 %v2137
    %2502 = vmatprep.subr.bf16.mxu0 %v2146
    %2503 = vmatpush1.bf16.msra.mxu0 %v2145
    %2504 = vmatprep.subr.bf16.mxu0 %v2154
    %2505 = vmatpush1.bf16.msra.mxu0 %v2153
    %2506 = vmatprep.mubr.bf16.mxu0 %v2428
    %2507 = vmatmul.mubr.bf16.gmra.mrb[0].mxu0 %v2427
    %v2508 = vpop.f32.mrb[0].mxu0
    %v2509 = vadd.f32 %v2468, %v2508
    %v2510 = vpop.f32.mrb[0].mxu0
    %v2511 = vadd.f32 %v2470, %v2510
    %v2512 = vpop.f32.mrb[0].mxu0
    %v2513 = vpop.f32.mrb[0].mxu0
    %2514 = vdwg.mxu0
    %2515 = vmatprep.subr.bf16.mxu0 %v2162
    %2516 = vmatpush1.bf16.msra.mxu0 %v2161
    %2517 = vmatprep.subr.bf16.mxu0 %v2170
    %2518 = vmatpush1.bf16.msra.mxu0 %v2169
    %2519 = vmatprep.subr.bf16.mxu0 %v2178
    %2520 = vmatpush1.bf16.msra.mxu0 %v2177
    %2521 = vmatprep.subr.bf16.mxu0 %v2186
    %2522 = vmatpush1.bf16.msra.mxu0 %v2185
    %2523 = vmatprep.subr.bf16.mxu0 %v2194
    %2524 = vmatpush1.bf16.msra.mxu0 %v2193
    %2525 = vmatprep.subr.bf16.mxu0 %v2202
    %2526 = vmatpush1.bf16.msra.mxu0 %v2201
    %2527 = vmatprep.subr.bf16.mxu0 %v2210
    %2528 = vmatpush1.bf16.msra.mxu0 %v2209
    %2529 = vmatprep.subr.bf16.mxu0 %v2218
    %2530 = vmatpush1.bf16.msra.mxu0 %v2217
    %2531 = vmatprep.subr.bf16.mxu0 %v2226
    %2532 = vmatpush1.bf16.msra.mxu0 %v2225
    %2533 = vmatprep.subr.bf16.mxu0 %v2234
    %2534 = vmatpush1.bf16.msra.mxu0 %v2233
    %2535 = vmatprep.subr.bf16.mxu0 %v2242
    %2536 = vmatpush1.bf16.msra.mxu0 %v2241
    %2537 = vmatprep.subr.bf16.mxu0 %v2250
    %2538 = vmatpush1.bf16.msra.mxu0 %v2249
    %2539 = vmatprep.subr.bf16.mxu0 %v2258
    %2540 = vmatpush1.bf16.msra.mxu0 %v2257
    %2541 = vmatprep.subr.bf16.mxu0 %v2266
    %2542 = vmatpush1.bf16.msra.mxu0 %v2265
    %2543 = vmatprep.subr.bf16.mxu0 %v2274
    %2544 = vmatpush1.bf16.msra.mxu0 %v2273
    %2545 = vmatprep.subr.bf16.mxu0 %v2282
    %2546 = vmatpush1.bf16.msra.mxu0 %v2281
    %2547 = vmatprep.mubr.bf16.mxu0 %v2430
    %2548 = vmatmul.mubr.bf16.gmra.mrb[0].mxu0 %v2429
    %v2549 = vpop.f32.mrb[0].mxu0
    %v2550 = vadd.f32 %v2509, %v2549
    %v2551 = vpop.f32.mrb[0].mxu0
    %v2552 = vadd.f32 %v2511, %v2551
    %v2553 = vpop.f32.mrb[0].mxu0
    %v2554 = vpop.f32.mrb[0].mxu0
    %2555 = vdwg.mxu0
    %2556 = vmatprep.subr.bf16.mxu0 %v2290
    %2557 = vmatpush1.bf16.msra.mxu0 %v2289
    %2558 = vmatprep.subr.bf16.mxu0 %v2298
    %2559 = vmatpush1.bf16.msra.mxu0 %v2297
    %2560 = vmatprep.subr.bf16.mxu0 %v2306
    %2561 = vmatpush1.bf16.msra.mxu0 %v2305
    %2562 = vmatprep.subr.bf16.mxu0 %v2314
    %2563 = vmatpush1.bf16.msra.mxu0 %v2313
    %2564 = vmatprep.subr.bf16.mxu0 %v2322
    %2565 = vmatpush1.bf16.msra.mxu0 %v2321
    %2566 = vmatprep.subr.bf16.mxu0 %v2330
    %2567 = vmatpush1.bf16.msra.mxu0 %v2329
    %2568 = vmatprep.subr.bf16.mxu0 %v2338
    %2569 = vmatpush1.bf16.msra.mxu0 %v2337
    %2570 = vmatprep.subr.bf16.mxu0 %v2346
    %2571 = vmatpush1.bf16.msra.mxu0 %v2345
    %2572 = vmatprep.subr.bf16.mxu0 %v2354
    %2573 = vmatpush1.bf16.msra.mxu0 %v2353
    %2574 = vmatprep.subr.bf16.mxu0 %v2362
    %2575 = vmatpush1.bf16.msra.mxu0 %v2361
    %2576 = vmatprep.subr.bf16.mxu0 %v2370
    %2577 = vmatpush1.bf16.msra.mxu0 %v2369
    %2578 = vmatprep.subr.bf16.mxu0 %v2378
    %2579 = vmatpush1.bf16.msra.mxu0 %v2377
    %2580 = vmatprep.subr.bf16.mxu0 %v2386
    %2581 = vmatpush1.bf16.msra.mxu0 %v2385
    %2582 = vmatprep.subr.bf16.mxu0 %v2394
    %2583 = vmatpush1.bf16.msra.mxu0 %v2393
    %2584 = vmatprep.subr.bf16.mxu0 %v2402
    %2585 = vmatpush1.bf16.msra.mxu0 %v2401
    %2586 = vmatprep.subr.bf16.mxu0 %v2410
    %2587 = vmatpush1.bf16.msra.mxu0 %v2409
    %2588 = vmatprep.mubr.bf16.mxu0 %v2432
    %2589 = vmatmul.mubr.bf16.gmra.mrb[0].mxu0 %v2431
    %v2590 = vpop.f32.mrb[0].mxu0
    %v2591 = vadd.f32 %v2550, %v2590
    %v2592 = vpop.f32.mrb[0].mxu0
    %v2593 = vadd.f32 %v2552, %v2592
    %v2594 = vpop.f32.mrb[0].mxu0
    %v2595 = vpop.f32.mrb[0].mxu0
    %2596 = vdwg.mxu0
    %2597 = vmatprep.subr.bf16.mxu0 %v1908
    %2598 = vmatpush1.bf16.msra.mxu0 %v1907
    %2599 = vmatprep.subr.bf16.mxu0 %v1916
    %2600 = vmatpush1.bf16.msra.mxu0 %v1915
    %2601 = vmatprep.subr.bf16.mxu0 %v1924
    %2602 = vmatpush1.bf16.msra.mxu0 %v1923
    %2603 = vmatprep.subr.bf16.mxu0 %v1932
    %2604 = vmatpush1.bf16.msra.mxu0 %v1931
    %2605 = vmatprep.subr.bf16.mxu0 %v1940
    %2606 = vmatpush1.bf16.msra.mxu0 %v1939
    %2607 = vmatprep.subr.bf16.mxu0 %v1948
    %2608 = vmatpush1.bf16.msra.mxu0 %v1947
    %2609 = vmatprep.subr.bf16.mxu0 %v1956
    %2610 = vmatpush1.bf16.msra.mxu0 %v1955
    %2611 = vmatprep.subr.bf16.mxu0 %v1964
    %2612 = vmatpush1.bf16.msra.mxu0 %v1963
    %2613 = vmatprep.subr.bf16.mxu0 %v1972
    %2614 = vmatpush1.bf16.msra.mxu0 %v1971
    %2615 = vmatprep.subr.bf16.mxu0 %v1980
    %2616 = vmatpush1.bf16.msra.mxu0 %v1979
    %2617 = vmatprep.subr.bf16.mxu0 %v1988
    %2618 = vmatpush1.bf16.msra.mxu0 %v1987
    %2619 = vmatprep.subr.bf16.mxu0 %v1996
    %2620 = vmatpush1.bf16.msra.mxu0 %v1995
    %2621 = vmatprep.subr.bf16.mxu0 %v2004
    %2622 = vmatpush1.bf16.msra.mxu0 %v2003
    %2623 = vmatprep.subr.bf16.mxu0 %v2012
    %2624 = vmatpush1.bf16.msra.mxu0 %v2011
    %2625 = vmatprep.subr.bf16.mxu0 %v2020
    %2626 = vmatpush1.bf16.msra.mxu0 %v2019
    %2627 = vmatprep.subr.bf16.mxu0 %v2028
    %2628 = vmatpush1.bf16.msra.mxu0 %v2027
    %2629 = vmatprep.mubr.bf16.mxu0 %v2426
    %2630 = vmatmul.mubr.bf16.gmra.mrb[0].mxu0 %v2425
    %v2631 = vpop.f32.mrb[0].mxu0
    %v2632 = vadd.f32 0.0, %v2631
    %v2633 = vpop.f32.mrb[0].mxu0
    %v2634 = vadd.f32 0.0, %v2633
    %v2635 = vpop.f32.mrb[0].mxu0
    %v2636 = vpop.f32.mrb[0].mxu0
    %2637 = vdwg.mxu0
    %2638 = vmatprep.subr.bf16.mxu0 %v2036
    %2639 = vmatpush1.bf16.msra.mxu0 %v2035
    %2640 = vmatprep.subr.bf16.mxu0 %v2044
    %2641 = vmatpush1.bf16.msra.mxu0 %v2043
    %2642 = vmatprep.subr.bf16.mxu0 %v2052
    %2643 = vmatpush1.bf16.msra.mxu0 %v2051
    %2644 = vmatprep.subr.bf16.mxu0 %v2060
    %2645 = vmatpush1.bf16.msra.mxu0 %v2059
    %2646 = vmatprep.subr.bf16.mxu0 %v2068
    %2647 = vmatpush1.bf16.msra.mxu0 %v2067
    %2648 = vmatprep.subr.bf16.mxu0 %v2076
    %2649 = vmatpush1.bf16.msra.mxu0 %v2075
    %2650 = vmatprep.subr.bf16.mxu0 %v2084
    %2651 = vmatpush1.bf16.msra.mxu0 %v2083
    %2652 = vmatprep.subr.bf16.mxu0 %v2092
    %2653 = vmatpush1.bf16.msra.mxu0 %v2091
    %2654 = vmatprep.subr.bf16.mxu0 %v2100
    %2655 = vmatpush1.bf16.msra.mxu0 %v2099
    %2656 = vmatprep.subr.bf16.mxu0 %v2108
    %2657 = vmatpush1.bf16.msra.mxu0 %v2107
    %2658 = vmatprep.subr.bf16.mxu0 %v2116
    %2659 = vmatpush1.bf16.msra.mxu0 %v2115
    %2660 = vmatprep.subr.bf16.mxu0 %v2124
    %2661 = vmatpush1.bf16.msra.mxu0 %v2123
    %2662 = vmatprep.subr.bf16.mxu0 %v2132
    %2663 = vmatpush1.bf16.msra.mxu0 %v2131
    %2664 = vmatprep.subr.bf16.mxu0 %v2140
    %2665 = vmatpush1.bf16.msra.mxu0 %v2139
    %2666 = vmatprep.subr.bf16.mxu0 %v2148
    %2667 = vmatpush1.bf16.msra.mxu0 %v2147
    %2668 = vmatprep.subr.bf16.mxu0 %v2156
    %2669 = vmatpush1.bf16.msra.mxu0 %v2155
    %2670 = vmatprep.mubr.bf16.mxu0 %v2428
    %2671 = vmatmul.mubr.bf16.gmra.mrb[0].mxu0 %v2427
    %v2672 = vpop.f32.mrb[0].mxu0
    %v2673 = vadd.f32 %v2632, %v2672
    %v2674 = vpop.f32.mrb[0].mxu0
    %v2675 = vadd.f32 %v2634, %v2674
    %v2676 = vpop.f32.mrb[0].mxu0
    %v2677 = vpop.f32.mrb[0].mxu0
    %2678 = vdwg.mxu0
    %2679 = vmatprep.subr.bf16.mxu0 %v2164
    %2680 = vmatpush1.bf16.msra.mxu0 %v2163
    %2681 = vmatprep.subr.bf16.mxu0 %v2172
    %2682 = vmatpush1.bf16.msra.mxu0 %v2171
    %2683 = vmatprep.subr.bf16.mxu0 %v2180
    %2684 = vmatpush1.bf16.msra.mxu0 %v2179
    %2685 = vmatprep.subr.bf16.mxu0 %v2188
    %2686 = vmatpush1.bf16.msra.mxu0 %v2187
    %2687 = vmatprep.subr.bf16.mxu0 %v2196
    %2688 = vmatpush1.bf16.msra.mxu0 %v2195
    %2689 = vmatprep.subr.bf16.mxu0 %v2204
    %2690 = vmatpush1.bf16.msra.mxu0 %v2203
    %2691 = vmatprep.subr.bf16.mxu0 %v2212
    %2692 = vmatpush1.bf16.msra.mxu0 %v2211
    %2693 = vmatprep.subr.bf16.mxu0 %v2220
    %2694 = vmatpush1.bf16.msra.mxu0 %v2219
    %2695 = vmatprep.subr.bf16.mxu0 %v2228
    %2696 = vmatpush1.bf16.msra.mxu0 %v2227
    %2697 = vmatprep.subr.bf16.mxu0 %v2236
    %2698 = vmatpush1.bf16.msra.mxu0 %v2235
    %2699 = vmatprep.subr.bf16.mxu0 %v2244
    %2700 = vmatpush1.bf16.msra.mxu0 %v2243
    %2701 = vmatprep.subr.bf16.mxu0 %v2252
    %2702 = vmatpush1.bf16.msra.mxu0 %v2251
    %2703 = vmatprep.subr.bf16.mxu0 %v2260
    %2704 = vmatpush1.bf16.msra.mxu0 %v2259
    %2705 = vmatprep.subr.bf16.mxu0 %v2268
    %2706 = vmatpush1.bf16.msra.mxu0 %v2267
    %2707 = vmatprep.subr.bf16.mxu0 %v2276
    %2708 = vmatpush1.bf16.msra.mxu0 %v2275
    %2709 = vmatprep.subr.bf16.mxu0 %v2284
    %2710 = vmatpush1.bf16.msra.mxu0 %v2283
    %2711 = vmatprep.mubr.bf16.mxu0 %v2430
    %2712 = vmatmul.mubr.bf16.gmra.mrb[0].mxu0 %v2429
    %v2713 = vpop.f32.mrb[0].mxu0
    %v2714 = vadd.f32 %v2673, %v2713
    %v2715 = vpop.f32.mrb[0].mxu0
    %v2716 = vadd.f32 %v2675, %v2715
    %v2717 = vpop.f32.mrb[0].mxu0
    %v2718 = vpop.f32.mrb[0].mxu0
    %2719 = vdwg.mxu0
    %2720 = vmatprep.subr.bf16.mxu0 %v2292
    %2721 = vmatpush1.bf16.msra.mxu0 %v2291
    %2722 = vmatprep.subr.bf16.mxu0 %v2300
    %2723 = vmatpush1.bf16.msra.mxu0 %v2299
    %2724 = vmatprep.subr.bf16.mxu0 %v2308
    %2725 = vmatpush1.bf16.msra.mxu0 %v2307
    %2726 = vmatprep.subr.bf16.mxu0 %v2316
    %2727 = vmatpush1.bf16.msra.mxu0 %v2315
    %2728 = vmatprep.subr.bf16.mxu0 %v2324
    %2729 = vmatpush1.bf16.msra.mxu0 %v2323
    %2730 = vmatprep.subr.bf16.mxu0 %v2332
    %2731 = vmatpush1.bf16.msra.mxu0 %v2331
    %2732 = vmatprep.subr.bf16.mxu0 %v2340
    %2733 = vmatpush1.bf16.msra.mxu0 %v2339
    %2734 = vmatprep.subr.bf16.mxu0 %v2348
    %2735 = vmatpush1.bf16.msra.mxu0 %v2347
    %2736 = vmatprep.subr.bf16.mxu0 %v2356
    %2737 = vmatpush1.bf16.msra.mxu0 %v2355
    %2738 = vmatprep.subr.bf16.mxu0 %v2364
    %2739 = vmatpush1.bf16.msra.mxu0 %v2363
    %2740 = vmatprep.subr.bf16.mxu0 %v2372
    %2741 = vmatpush1.bf16.msra.mxu0 %v2371
    %2742 = vmatprep.subr.bf16.mxu0 %v2380
    %2743 = vmatpush1.bf16.msra.mxu0 %v2379
    %2744 = vmatprep.subr.bf16.mxu0 %v2388
    %2745 = vmatpush1.bf16.msra.mxu0 %v2387
    %2746 = vmatprep.subr.bf16.mxu0 %v2396
    %2747 = vmatpush1.bf16.msra.mxu0 %v2395
    %2748 = vmatprep.subr.bf16.mxu0 %v2404
    %2749 = vmatpush1.bf16.msra.mxu0 %v2403
    %2750 = vmatprep.subr.bf16.mxu0 %v2412
    %2751 = vmatpush1.bf16.msra.mxu0 %v2411
    %2752 = vmatprep.mubr.bf16.mxu0 %v2432
    %2753 = vmatmul.mubr.bf16.gmra.mrb[0].mxu0 %v2431
    %v2754 = vpop.f32.mrb[0].mxu0
    %v2755 = vadd.f32 %v2714, %v2754
    %v2756 = vpop.f32.mrb[0].mxu0
    %v2757 = vadd.f32 %v2716, %v2756
    %v2758 = vpop.f32.mrb[0].mxu0
    %v2759 = vpop.f32.mrb[0].mxu0
    %2760 = vdwg.mxu0
    %2761 = vmatprep.subr.bf16.mxu0 %v1910
    %2762 = vmatpush1.bf16.msra.mxu0 %v1909
    %2763 = vmatprep.subr.bf16.mxu0 %v1918
    %2764 = vmatpush1.bf16.msra.mxu0 %v1917
    %2765 = vmatprep.subr.bf16.mxu0 %v1926
    %2766 = vmatpush1.bf16.msra.mxu0 %v1925
    %2767 = vmatprep.subr.bf16.mxu0 %v1934
    %2768 = vmatpush1.bf16.msra.mxu0 %v1933
    %2769 = vmatprep.subr.bf16.mxu0 %v1942
    %2770 = vmatpush1.bf16.msra.mxu0 %v1941
    %2771 = vmatprep.subr.bf16.mxu0 %v1950
    %2772 = vmatpush1.bf16.msra.mxu0 %v1949
    %2773 = vmatprep.subr.bf16.mxu0 %v1958
    %2774 = vmatpush1.bf16.msra.mxu0 %v1957
    %2775 = vmatprep.subr.bf16.mxu0 %v1966
    %2776 = vmatpush1.bf16.msra.mxu0 %v1965
    %2777 = vmatprep.subr.bf16.mxu0 %v1974
    %2778 = vmatpush1.bf16.msra.mxu0 %v1973
    %2779 = vmatprep.subr.bf16.mxu0 %v1982
    %2780 = vmatpush1.bf16.msra.mxu0 %v1981
    %2781 = vmatprep.subr.bf16.mxu0 %v1990
    %2782 = vmatpush1.bf16.msra.mxu0 %v1989
    %2783 = vmatprep.subr.bf16.mxu0 %v1998
    %2784 = vmatpush1.bf16.msra.mxu0 %v1997
    %2785 = vmatprep.subr.bf16.mxu0 %v2006
    %2786 = vmatpush1.bf16.msra.mxu0 %v2005
    %2787 = vmatprep.subr.bf16.mxu0 %v2014
    %2788 = vmatpush1.bf16.msra.mxu0 %v2013
    %2789 = vmatprep.subr.bf16.mxu0 %v2022
    %2790 = vmatpush1.bf16.msra.mxu0 %v2021
    %2791 = vmatprep.subr.bf16.mxu0 %v2030
    %2792 = vmatpush1.bf16.msra.mxu0 %v2029
    %2793 = vmatprep.mubr.bf16.mxu0 %v2426
    %2794 = vmatmul.mubr.bf16.gmra.mrb[0].mxu0 %v2425
    %v2795 = vpop.f32.mrb[0].mxu0
    %v2796 = vadd.f32 0.0, %v2795
    %v2797 = vpop.f32.mrb[0].mxu0
    %v2798 = vadd.f32 0.0, %v2797
    %v2799 = vpop.f32.mrb[0].mxu0
    %v2800 = vpop.f32.mrb[0].mxu0
    %2801 = vdwg.mxu0
    %2802 = vmatprep.subr.bf16.mxu0 %v2038
    %2803 = vmatpush1.bf16.msra.mxu0 %v2037
    %2804 = vmatprep.subr.bf16.mxu0 %v2046
    %2805 = vmatpush1.bf16.msra.mxu0 %v2045
    %2806 = vmatprep.subr.bf16.mxu0 %v2054
    %2807 = vmatpush1.bf16.msra.mxu0 %v2053
    %2808 = vmatprep.subr.bf16.mxu0 %v2062
    %2809 = vmatpush1.bf16.msra.mxu0 %v2061
    %2810 = vmatprep.subr.bf16.mxu0 %v2070
    %2811 = vmatpush1.bf16.msra.mxu0 %v2069
    %2812 = vmatprep.subr.bf16.mxu0 %v2078
    %2813 = vmatpush1.bf16.msra.mxu0 %v2077
    %2814 = vmatprep.subr.bf16.mxu0 %v2086
    %2815 = vmatpush1.bf16.msra.mxu0 %v2085
    %2816 = vmatprep.subr.bf16.mxu0 %v2094
    %2817 = vmatpush1.bf16.msra.mxu0 %v2093
    %2818 = vmatprep.subr.bf16.mxu0 %v2102
    %2819 = vmatpush1.bf16.msra.mxu0 %v2101
    %2820 = vmatprep.subr.bf16.mxu0 %v2110
    %2821 = vmatpush1.bf16.msra.mxu0 %v2109
    %2822 = vmatprep.subr.bf16.mxu0 %v2118
    %2823 = vmatpush1.bf16.msra.mxu0 %v2117
    %2824 = vmatprep.subr.bf16.mxu0 %v2126
    %2825 = vmatpush1.bf16.msra.mxu0 %v2125
    %2826 = vmatprep.subr.bf16.mxu0 %v2134
    %2827 = vmatpush1.bf16.msra.mxu0 %v2133
    %2828 = vmatprep.subr.bf16.mxu0 %v2142
    %2829 = vmatpush1.bf16.msra.mxu0 %v2141
    %2830 = vmatprep.subr.bf16.mxu0 %v2150
    %2831 = vmatpush1.bf16.msra.mxu0 %v2149
    %2832 = vmatprep.subr.bf16.mxu0 %v2158
    %2833 = vmatpush1.bf16.msra.mxu0 %v2157
    %2834 = vmatprep.mubr.bf16.mxu0 %v2428
    %2835 = vmatmul.mubr.bf16.gmra.mrb[0].mxu0 %v2427
    %v2836 = vpop.f32.mrb[0].mxu0
    %v2837 = vadd.f32 %v2796, %v2836
    %v2838 = vpop.f32.mrb[0].mxu0
    %v2839 = vadd.f32 %v2798, %v2838
    %v2840 = vpop.f32.mrb[0].mxu0
    %v2841 = vpop.f32.mrb[0].mxu0
    %2842 = vdwg.mxu0
    %2843 = vmatprep.subr.bf16.mxu0 %v2166
    %2844 = vmatpush1.bf16.msra.mxu0 %v2165
    %2845 = vmatprep.subr.bf16.mxu0 %v2174
    %2846 = vmatpush1.bf16.msra.mxu0 %v2173
    %2847 = vmatprep.subr.bf16.mxu0 %v2182
    %2848 = vmatpush1.bf16.msra.mxu0 %v2181
    %2849 = vmatprep.subr.bf16.mxu0 %v2190
    %2850 = vmatpush1.bf16.msra.mxu0 %v2189
    %2851 = vmatprep.subr.bf16.mxu0 %v2198
    %2852 = vmatpush1.bf16.msra.mxu0 %v2197
    %2853 = vmatprep.subr.bf16.mxu0 %v2206
    %2854 = vmatpush1.bf16.msra.mxu0 %v2205
    %2855 = vmatprep.subr.bf16.mxu0 %v2214
    %2856 = vmatpush1.bf16.msra.mxu0 %v2213
    %2857 = vmatprep.subr.bf16.mxu0 %v2222
    %2858 = vmatpush1.bf16.msra.mxu0 %v2221
    %2859 = vmatprep.subr.bf16.mxu0 %v2230
    %2860 = vmatpush1.bf16.msra.mxu0 %v2229
    %2861 = vmatprep.subr.bf16.mxu0 %v2238
    %2862 = vmatpush1.bf16.msra.mxu0 %v2237
    %2863 = vmatprep.subr.bf16.mxu0 %v2246
    %2864 = vmatpush1.bf16.msra.mxu0 %v2245
    %2865 = vmatprep.subr.bf16.mxu0 %v2254
    %2866 = vmatpush1.bf16.msra.mxu0 %v2253
    %2867 = vmatprep.subr.bf16.mxu0 %v2262
    %2868 = vmatpush1.bf16.msra.mxu0 %v2261
    %2869 = vmatprep.subr.bf16.mxu0 %v2270
    %2870 = vmatpush1.bf16.msra.mxu0 %v2269
    %2871 = vmatprep.subr.bf16.mxu0 %v2278
    %2872 = vmatpush1.bf16.msra.mxu0 %v2277
    %2873 = vmatprep.subr.bf16.mxu0 %v2286
    %2874 = vmatpush1.bf16.msra.mxu0 %v2285
    %2875 = vmatprep.mubr.bf16.mxu0 %v2430
    %2876 = vmatmul.mubr.bf16.gmra.mrb[0].mxu0 %v2429
    %v2877 = vpop.f32.mrb[0].mxu0
    %v2878 = vadd.f32 %v2837, %v2877
    %v2879 = vpop.f32.mrb[0].mxu0
    %v2880 = vadd.f32 %v2839, %v2879
    %v2881 = vpop.f32.mrb[0].mxu0
    %v2882 = vpop.f32.mrb[0].mxu0
    %2883 = vdwg.mxu0
    %2884 = vmatprep.subr.bf16.mxu0 %v2294
    %2885 = vmatpush1.bf16.msra.mxu0 %v2293
    %2886 = vmatprep.subr.bf16.mxu0 %v2302
    %2887 = vmatpush1.bf16.msra.mxu0 %v2301
    %2888 = vmatprep.subr.bf16.mxu0 %v2310
    %2889 = vmatpush1.bf16.msra.mxu0 %v2309
    %2890 = vmatprep.subr.bf16.mxu0 %v2318
    %2891 = vmatpush1.bf16.msra.mxu0 %v2317
    %2892 = vmatprep.subr.bf16.mxu0 %v2326
    %2893 = vmatpush1.bf16.msra.mxu0 %v2325
    %2894 = vmatprep.subr.bf16.mxu0 %v2334
    %2895 = vmatpush1.bf16.msra.mxu0 %v2333
    %2896 = vmatprep.subr.bf16.mxu0 %v2342
    %2897 = vmatpush1.bf16.msra.mxu0 %v2341
    %2898 = vmatprep.subr.bf16.mxu0 %v2350
    %2899 = vmatpush1.bf16.msra.mxu0 %v2349
    %2900 = vmatprep.subr.bf16.mxu0 %v2358
    %2901 = vmatpush1.bf16.msra.mxu0 %v2357
    %2902 = vmatprep.subr.bf16.mxu0 %v2366
    %2903 = vmatpush1.bf16.msra.mxu0 %v2365
    %2904 = vmatprep.subr.bf16.mxu0 %v2374
    %2905 = vmatpush1.bf16.msra.mxu0 %v2373
    %2906 = vmatprep.subr.bf16.mxu0 %v2382
    %2907 = vmatpush1.bf16.msra.mxu0 %v2381
    %2908 = vmatprep.subr.bf16.mxu0 %v2390
    %2909 = vmatpush1.bf16.msra.mxu0 %v2389
    %2910 = vmatprep.subr.bf16.mxu0 %v2398
    %2911 = vmatpush1.bf16.msra.mxu0 %v2397
    %2912 = vmatprep.subr.bf16.mxu0 %v2406
    %2913 = vmatpush1.bf16.msra.mxu0 %v2405
    %2914 = vmatprep.subr.bf16.mxu0 %v2414
    %2915 = vmatpush1.bf16.msra.mxu0 %v2413
    %2916 = vmatprep.mubr.bf16.mxu0 %v2432
    %2917 = vmatmul.mubr.bf16.gmra.mrb[0].mxu0 %v2431
    %v2918 = vpop.f32.mrb[0].mxu0
    %v2919 = vadd.f32 %v2878, %v2918
    %v2920 = vpop.f32.mrb[0].mxu0
    %v2921 = vadd.f32 %v2880, %v2920
    %v2922 = vpop.f32.mrb[0].mxu0
    %v2923 = vpop.f32.mrb[0].mxu0
    %2924 = vdwg.mxu0
    %2925 = vmatprep.subr.bf16.mxu0 %v1912
    %2926 = vmatpush1.bf16.msra.mxu0 %v1911
    %2927 = vmatprep.subr.bf16.mxu0 %v1920
    %2928 = vmatpush1.bf16.msra.mxu0 %v1919
    %2929 = vmatprep.subr.bf16.mxu0 %v1928
    %2930 = vmatpush1.bf16.msra.mxu0 %v1927
    %2931 = vmatprep.subr.bf16.mxu0 %v1936
    %2932 = vmatpush1.bf16.msra.mxu0 %v1935
    %2933 = vmatprep.subr.bf16.mxu0 %v1944
    %2934 = vmatpush1.bf16.msra.mxu0 %v1943
    %2935 = vmatprep.subr.bf16.mxu0 %v1952
    %2936 = vmatpush1.bf16.msra.mxu0 %v1951
    %2937 = vmatprep.subr.bf16.mxu0 %v1960
    %2938 = vmatpush1.bf16.msra.mxu0 %v1959
    %2939 = vmatprep.subr.bf16.mxu0 %v1968
    %2940 = vmatpush1.bf16.msra.mxu0 %v1967
    %2941 = vmatprep.subr.bf16.mxu0 %v1976
    %2942 = vmatpush1.bf16.msra.mxu0 %v1975
    %2943 = vmatprep.subr.bf16.mxu0 %v1984
    %2944 = vmatpush1.bf16.msra.mxu0 %v1983
    %2945 = vmatprep.subr.bf16.mxu0 %v1992
    %2946 = vmatpush1.bf16.msra.mxu0 %v1991
    %2947 = vmatprep.subr.bf16.mxu0 %v2000
    %2948 = vmatpush1.bf16.msra.mxu0 %v1999
    %2949 = vmatprep.subr.bf16.mxu0 %v2008
    %2950 = vmatpush1.bf16.msra.mxu0 %v2007
    %2951 = vmatprep.subr.bf16.mxu0 %v2016
    %2952 = vmatpush1.bf16.msra.mxu0 %v2015
    %2953 = vmatprep.subr.bf16.mxu0 %v2024
    %2954 = vmatpush1.bf16.msra.mxu0 %v2023
    %2955 = vmatprep.subr.bf16.mxu0 %v2032
    %2956 = vmatpush1.bf16.msra.mxu0 %v2031
    %2957 = vmatprep.mubr.bf16.mxu0 %v2426
    %2958 = vmatmul.mubr.bf16.gmra.mrb[0].mxu0 %v2425
    %v2959 = vpop.f32.mrb[0].mxu0
    %v2960 = vadd.f32 0.0, %v2959
    %v2961 = vpop.f32.mrb[0].mxu0
    %v2962 = vadd.f32 0.0, %v2961
    %v2963 = vpop.f32.mrb[0].mxu0
    %v2964 = vpop.f32.mrb[0].mxu0
    %2965 = vdwg.mxu0
    %2966 = vmatprep.subr.bf16.mxu0 %v2040
    %2967 = vmatpush1.bf16.msra.mxu0 %v2039
    %2968 = vmatprep.subr.bf16.mxu0 %v2048
    %2969 = vmatpush1.bf16.msra.mxu0 %v2047
    %2970 = vmatprep.subr.bf16.mxu0 %v2056
    %2971 = vmatpush1.bf16.msra.mxu0 %v2055
    %2972 = vmatprep.subr.bf16.mxu0 %v2064
    %2973 = vmatpush1.bf16.msra.mxu0 %v2063
    %2974 = vmatprep.subr.bf16.mxu0 %v2072
    %2975 = vmatpush1.bf16.msra.mxu0 %v2071
    %2976 = vmatprep.subr.bf16.mxu0 %v2080
    %2977 = vmatpush1.bf16.msra.mxu0 %v2079
    %2978 = vmatprep.subr.bf16.mxu0 %v2088
    %2979 = vmatpush1.bf16.msra.mxu0 %v2087
    %2980 = vmatprep.subr.bf16.mxu0 %v2096
    %2981 = vmatpush1.bf16.msra.mxu0 %v2095
    %2982 = vmatprep.subr.bf16.mxu0 %v2104
    %2983 = vmatpush1.bf16.msra.mxu0 %v2103
    %2984 = vmatprep.subr.bf16.mxu0 %v2112
    %2985 = vmatpush1.bf16.msra.mxu0 %v2111
    %2986 = vmatprep.subr.bf16.mxu0 %v2120
    %2987 = vmatpush1.bf16.msra.mxu0 %v2119
    %2988 = vmatprep.subr.bf16.mxu0 %v2128
    %2989 = vmatpush1.bf16.msra.mxu0 %v2127
    %2990 = vmatprep.subr.bf16.mxu0 %v2136
    %2991 = vmatpush1.bf16.msra.mxu0 %v2135
    %2992 = vmatprep.subr.bf16.mxu0 %v2144
    %2993 = vmatpush1.bf16.msra.mxu0 %v2143
    %2994 = vmatprep.subr.bf16.mxu0 %v2152
    %2995 = vmatpush1.bf16.msra.mxu0 %v2151
    %2996 = vmatprep.subr.bf16.mxu0 %v2160
    %2997 = vmatpush1.bf16.msra.mxu0 %v2159
    %2998 = vmatprep.mubr.bf16.mxu0 %v2428
    %2999 = vmatmul.mubr.bf16.gmra.mrb[0].mxu0 %v2427
    %v3000 = vpop.f32.mrb[0].mxu0
    %v3001 = vadd.f32 %v2960, %v3000
    %v3002 = vpop.f32.mrb[0].mxu0
    %v3003 = vadd.f32 %v2962, %v3002
    %v3004 = vpop.f32.mrb[0].mxu0
    %v3005 = vpop.f32.mrb[0].mxu0
    %3006 = vdwg.mxu0
    %3007 = vmatprep.subr.bf16.mxu0 %v2168
    %3008 = vmatpush1.bf16.msra.mxu0 %v2167
    %3009 = vmatprep.subr.bf16.mxu0 %v2176
    %3010 = vmatpush1.bf16.msra.mxu0 %v2175
    %3011 = vmatprep.subr.bf16.mxu0 %v2184
    %3012 = vmatpush1.bf16.msra.mxu0 %v2183
    %3013 = vmatprep.subr.bf16.mxu0 %v2192
    %3014 = vmatpush1.bf16.msra.mxu0 %v2191
    %3015 = vmatprep.subr.bf16.mxu0 %v2200
    %3016 = vmatpush1.bf16.msra.mxu0 %v2199
    %3017 = vmatprep.subr.bf16.mxu0 %v2208
    %3018 = vmatpush1.bf16.msra.mxu0 %v2207
    %3019 = vmatprep.subr.bf16.mxu0 %v2216
    %3020 = vmatpush1.bf16.msra.mxu0 %v2215
    %3021 = vmatprep.subr.bf16.mxu0 %v2224
    %3022 = vmatpush1.bf16.msra.mxu0 %v2223
    %3023 = vmatprep.subr.bf16.mxu0 %v2232
    %3024 = vmatpush1.bf16.msra.mxu0 %v2231
    %3025 = vmatprep.subr.bf16.mxu0 %v2240
    %3026 = vmatpush1.bf16.msra.mxu0 %v2239
    %3027 = vmatprep.subr.bf16.mxu0 %v2248
    %3028 = vmatpush1.bf16.msra.mxu0 %v2247
    %3029 = vmatprep.subr.bf16.mxu0 %v2256
    %3030 = vmatpush1.bf16.msra.mxu0 %v2255
    %3031 = vmatprep.subr.bf16.mxu0 %v2264
    %3032 = vmatpush1.bf16.msra.mxu0 %v2263
    %3033 = vmatprep.subr.bf16.mxu0 %v2272
    %3034 = vmatpush1.bf16.msra.mxu0 %v2271
    %3035 = vmatprep.subr.bf16.mxu0 %v2280
    %3036 = vmatpush1.bf16.msra.mxu0 %v2279
    %3037 = vmatprep.subr.bf16.mxu0 %v2288
    %3038 = vmatpush1.bf16.msra.mxu0 %v2287
    %3039 = vmatprep.mubr.bf16.mxu0 %v2430
    %3040 = vmatmul.mubr.bf16.gmra.mrb[0].mxu0 %v2429
    %v3041 = vpop.f32.mrb[0].mxu0
    %v3042 = vadd.f32 %v3001, %v3041
    %v3043 = vpop.f32.mrb[0].mxu0
    %v3044 = vadd.f32 %v3003, %v3043
    %v3045 = vpop.f32.mrb[0].mxu0
    %v3046 = vpop.f32.mrb[0].mxu0
    %3047 = vdwg.mxu0
    %3048 = vmatprep.subr.bf16.mxu0 %v2296
    %3049 = vmatpush1.bf16.msra.mxu0 %v2295
    %3050 = vmatprep.subr.bf16.mxu0 %v2304
    %3051 = vmatpush1.bf16.msra.mxu0 %v2303
    %3052 = vmatprep.subr.bf16.mxu0 %v2312
    %3053 = vmatpush1.bf16.msra.mxu0 %v2311
    %3054 = vmatprep.subr.bf16.mxu0 %v2320
    %3055 = vmatpush1.bf16.msra.mxu0 %v2319
    %3056 = vmatprep.subr.bf16.mxu0 %v2328
    %3057 = vmatpush1.bf16.msra.mxu0 %v2327
    %3058 = vmatprep.subr.bf16.mxu0 %v2336
    %3059 = vmatpush1.bf16.msra.mxu0 %v2335
    %3060 = vmatprep.subr.bf16.mxu0 %v2344
    %3061 = vmatpush1.bf16.msra.mxu0 %v2343
    %3062 = vmatprep.subr.bf16.mxu0 %v2352
    %3063 = vmatpush1.bf16.msra.mxu0 %v2351
    %3064 = vmatprep.subr.bf16.mxu0 %v2360
    %3065 = vmatpush1.bf16.msra.mxu0 %v2359
    %3066 = vmatprep.subr.bf16.mxu0 %v2368
    %3067 = vmatpush1.bf16.msra.mxu0 %v2367
    %3068 = vmatprep.subr.bf16.mxu0 %v2376
    %3069 = vmatpush1.bf16.msra.mxu0 %v2375
    %3070 = vmatprep.subr.bf16.mxu0 %v2384
    %3071 = vmatpush1.bf16.msra.mxu0 %v2383
    %3072 = vmatprep.subr.bf16.mxu0 %v2392
    %3073 = vmatpush1.bf16.msra.mxu0 %v2391
    %3074 = vmatprep.subr.bf16.mxu0 %v2400
    %3075 = vmatpush1.bf16.msra.mxu0 %v2399
    %3076 = vmatprep.subr.bf16.mxu0 %v2408
    %3077 = vmatpush1.bf16.msra.mxu0 %v2407
    %3078 = vmatprep.subr.bf16.mxu0 %v2416
    %3079 = vmatpush1.bf16.msra.mxu0 %v2415
    %3080 = vmatprep.mubr.bf16.mxu0 %v2432
    %3081 = vmatmul.mubr.bf16.gmra.mrb[0].mxu0 %v2431
    %v3082 = vpop.f32.mrb[0].mxu0
    %v3083 = vadd.f32 %v3042, %v3082
    %v3084 = vpop.f32.mrb[0].mxu0
    %v3085 = vadd.f32 %v3044, %v3084
    %v3086 = vpop.f32.mrb[0].mxu0
    %v3087 = vpop.f32.mrb[0].mxu0
    %3088 = vdwg.mxu0
    %v3089 = vadd.f32 %v2417, %v2591
    %v3090 = vadd.f32 %v2418, %v2593
    %v3091 = vadd.f32 %v2419, %v2755
    %v3092 = vadd.f32 %v2420, %v2757
    %v3093 = vadd.f32 %v2421, %v2919
    %v3094 = vadd.f32 %v2422, %v2921
    %v3095 = vadd.f32 %v2423, %v3083
    %v3096 = vadd.f32 %v2424, %v3085
    %3097 = vst [vmem:[#allocation2] sm:$0xff] %v3089
    %3098 = vst [vmem:[#allocation2 + $0x8] sm:$0xff] %v3090
    %3099 = vst [vmem:[#allocation2 + $0x10] sm:$0xff] %v3091
    %3100 = vst [vmem:[#allocation2 + $0x18] sm:$0xff] %v3092
    %3101 = vst [vmem:[#allocation2 + $0x20] sm:$0xff] %v3093
    %3102 = vst [vmem:[#allocation2 + $0x28] sm:$0xff] %v3094
    %3103 = vst [vmem:[#allocation2 + $0x30] sm:$0xff] %v3095
    %3104 = vst [vmem:[#allocation2 + $0x38] sm:$0xff] %v3096
    // Predicated region
    $region54: #{mlp_forward.1} parent=1 // pred_check
      %p3105 = pneg %p62
    $region55: #{mlp_forward.1} parent=1 // pred_check_branch
      %3107 = sbr.rel (%p3105) target = $region57
    $region56: #{mlp_forward.1} parent=1 // pred_region
      %v3108 = vld [vmem:[#allocation2] sm:$0xff]
      %v3109 = vld [vmem:[#allocation2 + $0x8] sm:$0xff]
      %v3110 = vld [vmem:[#allocation2 + $0x10] sm:$0xff]
      %v3111 = vld [vmem:[#allocation2 + $0x18] sm:$0xff]
      %v3112 = vld [vmem:[#allocation2 + $0x20] sm:$0xff]
      %v3113 = vld [vmem:[#allocation2 + $0x28] sm:$0xff]
      %v3114 = vld [vmem:[#allocation2 + $0x30] sm:$0xff]
      %v3115 = vld [vmem:[#allocation2 + $0x38] sm:$0xff]
      %v3116 = vld [vmem:[%s5] sm:$0xff]
      %v3118 = vlaneseq
      %v3119 = vshrl.u32 %v3118, 7
      %v3120 = vsub.s32 0, %v3119
      %v3121 = vrot.slane %v3116, %v3120
      %v3122 = vlaneseq
      %v3123 = vshrl.u32 %v3122, 7
      %v3124 = vsub.s32 1, %v3123
      %v3125 = vrot.slane %v3116, %v3124
      %v3126 = vlaneseq
      %v3127 = vshrl.u32 %v3126, 7
      %v3128 = vsub.s32 2, %v3127
      %v3129 = vrot.slane %v3116, %v3128
      %v3130 = vlaneseq
      %v3131 = vshrl.u32 %v3130, 7
      %v3132 = vsub.s32 3, %v3131
      %v3133 = vrot.slane %v3116, %v3132
      %v3134 = vlaneseq
      %v3135 = vshrl.u32 %v3134, 7
      %v3136 = vsub.s32 4, %v3135
      %v3137 = vrot.slane %v3116, %v3136
      %v3138 = vlaneseq
      %v3139 = vshrl.u32 %v3138, 7
      %v3140 = vsub.s32 5, %v3139
      %v3141 = vrot.slane %v3116, %v3140
      %v3142 = vlaneseq
      %v3143 = vshrl.u32 %v3142, 7
      %v3144 = vsub.s32 6, %v3143
      %v3145 = vrot.slane %v3116, %v3144
      %v3146 = vlaneseq
      %v3147 = vshrl.u32 %v3146, 7
      %v3148 = vsub.s32 7, %v3147
      %v3149 = vrot.slane %v3116, %v3148
      %v3158 = vmul.f32 %v3108, %v3121
      %v3159 = vmul.f32 %v3109, %v3125
      %v3160 = vmul.f32 %v3110, %v3129
      %v3161 = vmul.f32 %v3111, %v3133
      %v3162 = vmul.f32 %v3112, %v3137
      %v3163 = vmul.f32 %v3113, %v3141
      %v3164 = vmul.f32 %v3114, %v3145
      %v3165 = vmul.f32 %v3115, %v3149
      %v3166 = vld [vmem:[%s6] sm:$0xff]
      %v3168 = vlaneseq
      %v3169 = vshrl.u32 %v3168, 7
      %v3170 = vsub.s32 0, %v3169
      %v3171 = vrot.slane %v3166, %v3170
      %v3172 = vlaneseq
      %v3173 = vshrl.u32 %v3172, 7
      %v3174 = vsub.s32 1, %v3173
      %v3175 = vrot.slane %v3166, %v3174
      %v3176 = vlaneseq
      %v3177 = vshrl.u32 %v3176, 7
      %v3178 = vsub.s32 2, %v3177
      %v3179 = vrot.slane %v3166, %v3178
      %v3180 = vlaneseq
      %v3181 = vshrl.u32 %v3180, 7
      %v3182 = vsub.s32 3, %v3181
      %v3183 = vrot.slane %v3166, %v3182
      %v3184 = vlaneseq
      %v3185 = vshrl.u32 %v3184, 7
      %v3186 = vsub.s32 4, %v3185
      %v3187 = vrot.slane %v3166, %v3186
      %v3188 = vlaneseq
      %v3189 = vshrl.u32 %v3188, 7
      %v3190 = vsub.s32 5, %v3189
      %v3191 = vrot.slane %v3166, %v3190
      %v3192 = vlaneseq
      %v3193 = vshrl.u32 %v3192, 7
      %v3194 = vsub.s32 6, %v3193
      %v3195 = vrot.slane %v3166, %v3194
      %v3196 = vlaneseq
      %v3197 = vshrl.u32 %v3196, 7
      %v3198 = vsub.s32 7, %v3197
      %v3199 = vrot.slane %v3166, %v3198
      %v3208 = vadd.f32 %v3158, %v3171
      %v3209 = vadd.f32 %v3159, %v3175
      %v3210 = vadd.f32 %v3160, %v3179
      %v3211 = vadd.f32 %v3161, %v3183
      %v3212 = vadd.f32 %v3162, %v3187
      %v3213 = vadd.f32 %v3163, %v3191
      %v3214 = vadd.f32 %v3164, %v3195
      %v3215 = vadd.f32 %v3165, %v3199
      %v3216 = vmax.f32 %v3208, 0.0
      %v3217 = vmax.f32 %v3209, 0.0
      %v3218 = vmax.f32 %v3210, 0.0
      %v3219 = vmax.f32 %v3211, 0.0
      %v3220 = vmax.f32 %v3212, 0.0
      %v3221 = vmax.f32 %v3213, 0.0
      %v3222 = vmax.f32 %v3214, 0.0
      %v3223 = vmax.f32 %v3215, 0.0
      %s3224 = smul.u32 2, 128
      %s3225 = smul.u32 %s3224, 4
      %s3226 = sshll.u32 %s3225, 4
      %3227 = dma.done [#allocation4], %s3226
      %v3228 = vld [vmem:[#allocation3] sm:$0xff]
      %v3229 = vld [vmem:[#allocation3 + $0x8] sm:$0xff]
      %v3230 = vld [vmem:[#allocation3 + $0x10] sm:$0xff]
      %v3231 = vld [vmem:[#allocation3 + $0x18] sm:$0xff]
      %v3232 = vld [vmem:[#allocation3 + $0x20] sm:$0xff]
      %v3233 = vld [vmem:[#allocation3 + $0x28] sm:$0xff]
      %v3234 = vld [vmem:[#allocation3 + $0x30] sm:$0xff]
      %v3235 = vld [vmem:[#allocation3 + $0x38] sm:$0xff]
      %v3236 = vld [vmem:[#allocation3 + $0x40] sm:$0xff]
      %v3237 = vld [vmem:[#allocation3 + $0x48] sm:$0xff]
      %v3238 = vld [vmem:[#allocation3 + $0x50] sm:$0xff]
      %v3239 = vld [vmem:[#allocation3 + $0x58] sm:$0xff]
      %v3240 = vld [vmem:[#allocation3 + $0x60] sm:$0xff]
      %v3241 = vld [vmem:[#allocation3 + $0x68] sm:$0xff]
      %v3242 = vld [vmem:[#allocation3 + $0x70] sm:$0xff]
      %v3243 = vld [vmem:[#allocation3 + $0x78] sm:$0xff]
      %v3244 = vld [vmem:[#allocation3 + $0x80] sm:$0xff]
      %v3245 = vld [vmem:[#allocation3 + $0x88] sm:$0xff]
      %v3246 = vld [vmem:[#allocation3 + $0x90] sm:$0xff]
      %v3247 = vld [vmem:[#allocation3 + $0x98] sm:$0xff]
      %v3248 = vld [vmem:[#allocation3 + $0xa0] sm:$0xff]
      %v3249 = vld [vmem:[#allocation3 + $0xa8] sm:$0xff]
      %v3250 = vld [vmem:[#allocation3 + $0xb0] sm:$0xff]
      %v3251 = vld [vmem:[#allocation3 + $0xb8] sm:$0xff]
      %v3252 = vld [vmem:[#allocation3 + $0xc0] sm:$0xff]
      %v3253 = vld [vmem:[#allocation3 + $0xc8] sm:$0xff]
      %v3254 = vld [vmem:[#allocation3 + $0xd0] sm:$0xff]
      %v3255 = vld [vmem:[#allocation3 + $0xd8] sm:$0xff]
      %v3256 = vld [vmem:[#allocation3 + $0xe0] sm:$0xff]
      %v3257 = vld [vmem:[#allocation3 + $0xe8] sm:$0xff]
      %v3258 = vld [vmem:[#allocation3 + $0xf0] sm:$0xff]
      %v3259 = vld [vmem:[#allocation3 + $0xf8] sm:$0xff]
      %v3260 = vld [vmem:[#allocation3 + $0x100] sm:$0xff]
      %v3261 = vld [vmem:[#allocation3 + $0x108] sm:$0xff]
      %v3262 = vld [vmem:[#allocation3 + $0x110] sm:$0xff]
      %v3263 = vld [vmem:[#allocation3 + $0x118] sm:$0xff]
      %v3264 = vld [vmem:[#allocation3 + $0x120] sm:$0xff]
      %v3265 = vld [vmem:[#allocation3 + $0x128] sm:$0xff]
      %v3266 = vld [vmem:[#allocation3 + $0x130] sm:$0xff]
      %v3267 = vld [vmem:[#allocation3 + $0x138] sm:$0xff]
      %v3268 = vld [vmem:[#allocation3 + $0x140] sm:$0xff]
      %v3269 = vld [vmem:[#allocation3 + $0x148] sm:$0xff]
      %v3270 = vld [vmem:[#allocation3 + $0x150] sm:$0xff]
      %v3271 = vld [vmem:[#allocation3 + $0x158] sm:$0xff]
      %v3272 = vld [vmem:[#allocation3 + $0x160] sm:$0xff]
      %v3273 = vld [vmem:[#allocation3 + $0x168] sm:$0xff]
      %v3274 = vld [vmem:[#allocation3 + $0x170] sm:$0xff]
      %v3275 = vld [vmem:[#allocation3 + $0x178] sm:$0xff]
      %v3276 = vld [vmem:[#allocation3 + $0x180] sm:$0xff]
      %v3277 = vld [vmem:[#allocation3 + $0x188] sm:$0xff]
      %v3278 = vld [vmem:[#allocation3 + $0x190] sm:$0xff]
      %v3279 = vld [vmem:[#allocation3 + $0x198] sm:$0xff]
      %v3280 = vld [vmem:[#allocation3 + $0x1a0] sm:$0xff]
      %v3281 = vld [vmem:[#allocation3 + $0x1a8] sm:$0xff]
      %v3282 = vld [vmem:[#allocation3 + $0x1b0] sm:$0xff]
      %v3283 = vld [vmem:[#allocation3 + $0x1b8] sm:$0xff]
      %v3284 = vld [vmem:[#allocation3 + $0x1c0] sm:$0xff]
      %v3285 = vld [vmem:[#allocation3 + $0x1c8] sm:$0xff]
      %v3286 = vld [vmem:[#allocation3 + $0x1d0] sm:$0xff]
      %v3287 = vld [vmem:[#allocation3 + $0x1d8] sm:$0xff]
      %v3288 = vld [vmem:[#allocation3 + $0x1e0] sm:$0xff]
      %v3289 = vld [vmem:[#allocation3 + $0x1e8] sm:$0xff]
      %v3290 = vld [vmem:[#allocation3 + $0x1f0] sm:$0xff]
      %v3291 = vld [vmem:[#allocation3 + $0x1f8] sm:$0xff]
      %v3292 = vld [vmem:[#allocation3 + $0x200] sm:$0xff]
      %v3293 = vld [vmem:[#allocation3 + $0x208] sm:$0xff]
      %v3294 = vld [vmem:[#allocation3 + $0x210] sm:$0xff]
      %v3295 = vld [vmem:[#allocation3 + $0x218] sm:$0xff]
      %v3296 = vld [vmem:[#allocation3 + $0x220] sm:$0xff]
      %v3297 = vld [vmem:[#allocation3 + $0x228] sm:$0xff]
      %v3298 = vld [vmem:[#allocation3 + $0x230] sm:$0xff]
      %v3299 = vld [vmem:[#allocation3 + $0x238] sm:$0xff]
      %v3300 = vld [vmem:[#allocation3 + $0x240] sm:$0xff]
      %v3301 = vld [vmem:[#allocation3 + $0x248] sm:$0xff]
      %v3302 = vld [vmem:[#allocation3 + $0x250] sm:$0xff]
      %v3303 = vld [vmem:[#allocation3 + $0x258] sm:$0xff]
      %v3304 = vld [vmem:[#allocation3 + $0x260] sm:$0xff]
      %v3305 = vld [vmem:[#allocation3 + $0x268] sm:$0xff]
      %v3306 = vld [vmem:[#allocation3 + $0x270] sm:$0xff]
      %v3307 = vld [vmem:[#allocation3 + $0x278] sm:$0xff]
      %v3308 = vld [vmem:[#allocation3 + $0x280] sm:$0xff]
      %v3309 = vld [vmem:[#allocation3 + $0x288] sm:$0xff]
      %v3310 = vld [vmem:[#allocation3 + $0x290] sm:$0xff]
      %v3311 = vld [vmem:[#allocation3 + $0x298] sm:$0xff]
      %v3312 = vld [vmem:[#allocation3 + $0x2a0] sm:$0xff]
      %v3313 = vld [vmem:[#allocation3 + $0x2a8] sm:$0xff]
      %v3314 = vld [vmem:[#allocation3 + $0x2b0] sm:$0xff]
      %v3315 = vld [vmem:[#allocation3 + $0x2b8] sm:$0xff]
      %v3316 = vld [vmem:[#allocation3 + $0x2c0] sm:$0xff]
      %v3317 = vld [vmem:[#allocation3 + $0x2c8] sm:$0xff]
      %v3318 = vld [vmem:[#allocation3 + $0x2d0] sm:$0xff]
      %v3319 = vld [vmem:[#allocation3 + $0x2d8] sm:$0xff]
      %v3320 = vld [vmem:[#allocation3 + $0x2e0] sm:$0xff]
      %v3321 = vld [vmem:[#allocation3 + $0x2e8] sm:$0xff]
      %v3322 = vld [vmem:[#allocation3 + $0x2f0] sm:$0xff]
      %v3323 = vld [vmem:[#allocation3 + $0x2f8] sm:$0xff]
      %v3324 = vld [vmem:[#allocation3 + $0x300] sm:$0xff]
      %v3325 = vld [vmem:[#allocation3 + $0x308] sm:$0xff]
      %v3326 = vld [vmem:[#allocation3 + $0x310] sm:$0xff]
      %v3327 = vld [vmem:[#allocation3 + $0x318] sm:$0xff]
      %v3328 = vld [vmem:[#allocation3 + $0x320] sm:$0xff]
      %v3329 = vld [vmem:[#allocation3 + $0x328] sm:$0xff]
      %v3330 = vld [vmem:[#allocation3 + $0x330] sm:$0xff]
      %v3331 = vld [vmem:[#allocation3 + $0x338] sm:$0xff]
      %v3332 = vld [vmem:[#allocation3 + $0x340] sm:$0xff]
      %v3333 = vld [vmem:[#allocation3 + $0x348] sm:$0xff]
      %v3334 = vld [vmem:[#allocation3 + $0x350] sm:$0xff]
      %v3335 = vld [vmem:[#allocation3 + $0x358] sm:$0xff]
      %v3336 = vld [vmem:[#allocation3 + $0x360] sm:$0xff]
      %v3337 = vld [vmem:[#allocation3 + $0x368] sm:$0xff]
      %v3338 = vld [vmem:[#allocation3 + $0x370] sm:$0xff]
      %v3339 = vld [vmem:[#allocation3 + $0x378] sm:$0xff]
      %v3340 = vld [vmem:[#allocation3 + $0x380] sm:$0xff]
      %v3341 = vld [vmem:[#allocation3 + $0x388] sm:$0xff]
      %v3342 = vld [vmem:[#allocation3 + $0x390] sm:$0xff]
      %v3343 = vld [vmem:[#allocation3 + $0x398] sm:$0xff]
      %v3344 = vld [vmem:[#allocation3 + $0x3a0] sm:$0xff]
      %v3345 = vld [vmem:[#allocation3 + $0x3a8] sm:$0xff]
      %v3346 = vld [vmem:[#allocation3 + $0x3b0] sm:$0xff]
      %v3347 = vld [vmem:[#allocation3 + $0x3b8] sm:$0xff]
      %v3348 = vld [vmem:[#allocation3 + $0x3c0] sm:$0xff]
      %v3349 = vld [vmem:[#allocation3 + $0x3c8] sm:$0xff]
      %v3350 = vld [vmem:[#allocation3 + $0x3d0] sm:$0xff]
      %v3351 = vld [vmem:[#allocation3 + $0x3d8] sm:$0xff]
      %v3352 = vld [vmem:[#allocation3 + $0x3e0] sm:$0xff]
      %v3353 = vld [vmem:[#allocation3 + $0x3e8] sm:$0xff]
      %v3354 = vld [vmem:[#allocation3 + $0x3f0] sm:$0xff]
      %v3355 = vld [vmem:[#allocation3 + $0x3f8] sm:$0xff]
      %v3356 = vunpack.c.l.s8.bf16 %v3228
      %v3357 = vunpack.c.l.s8.bf16 %v3229
      %v3358 = vunpack.c.l.s8.bf16 %v3230
      %v3359 = vunpack.c.l.s8.bf16 %v3231
      %v3360 = vunpack.c.h.s8.bf16 %v3228
      %v3361 = vunpack.c.h.s8.bf16 %v3229
      %v3362 = vunpack.c.h.s8.bf16 %v3230
      %v3363 = vunpack.c.h.s8.bf16 %v3231
      %v3364 = vunpack.c.l.s8.bf16 %v3232
      %v3365 = vunpack.c.l.s8.bf16 %v3233
      %v3366 = vunpack.c.l.s8.bf16 %v3234
      %v3367 = vunpack.c.l.s8.bf16 %v3235
      %v3368 = vunpack.c.h.s8.bf16 %v3232
      %v3369 = vunpack.c.h.s8.bf16 %v3233
      %v3370 = vunpack.c.h.s8.bf16 %v3234
      %v3371 = vunpack.c.h.s8.bf16 %v3235
      %v3372 = vunpack.c.l.s8.bf16 %v3236
      %v3373 = vunpack.c.l.s8.bf16 %v3237
      %v3374 = vunpack.c.l.s8.bf16 %v3238
      %v3375 = vunpack.c.l.s8.bf16 %v3239
      %v3376 = vunpack.c.h.s8.bf16 %v3236
      %v3377 = vunpack.c.h.s8.bf16 %v3237
      %v3378 = vunpack.c.h.s8.bf16 %v3238
      %v3379 = vunpack.c.h.s8.bf16 %v3239
      %v3380 = vunpack.c.l.s8.bf16 %v3240
      %v3381 = vunpack.c.l.s8.bf16 %v3241
      %v3382 = vunpack.c.l.s8.bf16 %v3242
      %v3383 = vunpack.c.l.s8.bf16 %v3243
      %v3384 = vunpack.c.h.s8.bf16 %v3240
      %v3385 = vunpack.c.h.s8.bf16 %v3241
      %v3386 = vunpack.c.h.s8.bf16 %v3242
      %v3387 = vunpack.c.h.s8.bf16 %v3243
      %v3388 = vunpack.c.l.s8.bf16 %v3244
      %v3389 = vunpack.c.l.s8.bf16 %v3245
      %v3390 = vunpack.c.l.s8.bf16 %v3246
      %v3391 = vunpack.c.l.s8.bf16 %v3247
      %v3392 = vunpack.c.h.s8.bf16 %v3244
      %v3393 = vunpack.c.h.s8.bf16 %v3245
      %v3394 = vunpack.c.h.s8.bf16 %v3246
      %v3395 = vunpack.c.h.s8.bf16 %v3247
      %v3396 = vunpack.c.l.s8.bf16 %v3248
      %v3397 = vunpack.c.l.s8.bf16 %v3249
      %v3398 = vunpack.c.l.s8.bf16 %v3250
      %v3399 = vunpack.c.l.s8.bf16 %v3251
      %v3400 = vunpack.c.h.s8.bf16 %v3248
      %v3401 = vunpack.c.h.s8.bf16 %v3249
      %v3402 = vunpack.c.h.s8.bf16 %v3250
      %v3403 = vunpack.c.h.s8.bf16 %v3251
      %v3404 = vunpack.c.l.s8.bf16 %v3252
      %v3405 = vunpack.c.l.s8.bf16 %v3253
      %v3406 = vunpack.c.l.s8.bf16 %v3254
      %v3407 = vunpack.c.l.s8.bf16 %v3255
      %v3408 = vunpack.c.h.s8.bf16 %v3252
      %v3409 = vunpack.c.h.s8.bf16 %v3253
      %v3410 = vunpack.c.h.s8.bf16 %v3254
      %v3411 = vunpack.c.h.s8.bf16 %v3255
      %v3412 = vunpack.c.l.s8.bf16 %v3256
      %v3413 = vunpack.c.l.s8.bf16 %v3257
      %v3414 = vunpack.c.l.s8.bf16 %v3258
      %v3415 = vunpack.c.l.s8.bf16 %v3259
      %v3416 = vunpack.c.h.s8.bf16 %v3256
      %v3417 = vunpack.c.h.s8.bf16 %v3257
      %v3418 = vunpack.c.h.s8.bf16 %v3258
      %v3419 = vunpack.c.h.s8.bf16 %v3259
      %v3420 = vunpack.c.l.s8.bf16 %v3260
      %v3421 = vunpack.c.l.s8.bf16 %v3261
      %v3422 = vunpack.c.l.s8.bf16 %v3262
      %v3423 = vunpack.c.l.s8.bf16 %v3263
      %v3424 = vunpack.c.h.s8.bf16 %v3260
      %v3425 = vunpack.c.h.s8.bf16 %v3261
      %v3426 = vunpack.c.h.s8.bf16 %v3262
      %v3427 = vunpack.c.h.s8.bf16 %v3263
      %v3428 = vunpack.c.l.s8.bf16 %v3264
      %v3429 = vunpack.c.l.s8.bf16 %v3265
      %v3430 = vunpack.c.l.s8.bf16 %v3266
      %v3431 = vunpack.c.l.s8.bf16 %v3267
      %v3432 = vunpack.c.h.s8.bf16 %v3264
      %v3433 = vunpack.c.h.s8.bf16 %v3265
      %v3434 = vunpack.c.h.s8.bf16 %v3266
      %v3435 = vunpack.c.h.s8.bf16 %v3267
      %v3436 = vunpack.c.l.s8.bf16 %v3268
      %v3437 = vunpack.c.l.s8.bf16 %v3269
      %v3438 = vunpack.c.l.s8.bf16 %v3270
      %v3439 = vunpack.c.l.s8.bf16 %v3271
      %v3440 = vunpack.c.h.s8.bf16 %v3268
      %v3441 = vunpack.c.h.s8.bf16 %v3269
      %v3442 = vunpack.c.h.s8.bf16 %v3270
      %v3443 = vunpack.c.h.s8.bf16 %v3271
      %v3444 = vunpack.c.l.s8.bf16 %v3272
      %v3445 = vunpack.c.l.s8.bf16 %v3273
      %v3446 = vunpack.c.l.s8.bf16 %v3274
      %v3447 = vunpack.c.l.s8.bf16 %v3275
      %v3448 = vunpack.c.h.s8.bf16 %v3272
      %v3449 = vunpack.c.h.s8.bf16 %v3273
      %v3450 = vunpack.c.h.s8.bf16 %v3274
      %v3451 = vunpack.c.h.s8.bf16 %v3275
      %v3452 = vunpack.c.l.s8.bf16 %v3276
      %v3453 = vunpack.c.l.s8.bf16 %v3277
      %v3454 = vunpack.c.l.s8.bf16 %v3278
      %v3455 = vunpack.c.l.s8.bf16 %v3279
      %v3456 = vunpack.c.h.s8.bf16 %v3276
      %v3457 = vunpack.c.h.s8.bf16 %v3277
      %v3458 = vunpack.c.h.s8.bf16 %v3278
      %v3459 = vunpack.c.h.s8.bf16 %v3279
      %v3460 = vunpack.c.l.s8.bf16 %v3280
      %v3461 = vunpack.c.l.s8.bf16 %v3281
      %v3462 = vunpack.c.l.s8.bf16 %v3282
      %v3463 = vunpack.c.l.s8.bf16 %v3283
      %v3464 = vunpack.c.h.s8.bf16 %v3280
      %v3465 = vunpack.c.h.s8.bf16 %v3281
      %v3466 = vunpack.c.h.s8.bf16 %v3282
      %v3467 = vunpack.c.h.s8.bf16 %v3283
      %v3468 = vunpack.c.l.s8.bf16 %v3284
      %v3469 = vunpack.c.l.s8.bf16 %v3285
      %v3470 = vunpack.c.l.s8.bf16 %v3286
      %v3471 = vunpack.c.l.s8.bf16 %v3287
      %v3472 = vunpack.c.h.s8.bf16 %v3284
      %v3473 = vunpack.c.h.s8.bf16 %v3285
      %v3474 = vunpack.c.h.s8.bf16 %v3286
      %v3475 = vunpack.c.h.s8.bf16 %v3287
      %v3476 = vunpack.c.l.s8.bf16 %v3288
      %v3477 = vunpack.c.l.s8.bf16 %v3289
      %v3478 = vunpack.c.l.s8.bf16 %v3290
      %v3479 = vunpack.c.l.s8.bf16 %v3291
      %v3480 = vunpack.c.h.s8.bf16 %v3288
      %v3481 = vunpack.c.h.s8.bf16 %v3289
      %v3482 = vunpack.c.h.s8.bf16 %v3290
      %v3483 = vunpack.c.h.s8.bf16 %v3291
      %v3484 = vunpack.c.l.s8.bf16 %v3292
      %v3485 = vunpack.c.l.s8.bf16 %v3293
      %v3486 = vunpack.c.l.s8.bf16 %v3294
      %v3487 = vunpack.c.l.s8.bf16 %v3295
      %v3488 = vunpack.c.h.s8.bf16 %v3292
      %v3489 = vunpack.c.h.s8.bf16 %v3293
      %v3490 = vunpack.c.h.s8.bf16 %v3294
      %v3491 = vunpack.c.h.s8.bf16 %v3295
      %v3492 = vunpack.c.l.s8.bf16 %v3296
      %v3493 = vunpack.c.l.s8.bf16 %v3297
      %v3494 = vunpack.c.l.s8.bf16 %v3298
      %v3495 = vunpack.c.l.s8.bf16 %v3299
      %v3496 = vunpack.c.h.s8.bf16 %v3296
      %v3497 = vunpack.c.h.s8.bf16 %v3297
      %v3498 = vunpack.c.h.s8.bf16 %v3298
      %v3499 = vunpack.c.h.s8.bf16 %v3299
      %v3500 = vunpack.c.l.s8.bf16 %v3300
      %v3501 = vunpack.c.l.s8.bf16 %v3301
      %v3502 = vunpack.c.l.s8.bf16 %v3302
      %v3503 = vunpack.c.l.s8.bf16 %v3303
      %v3504 = vunpack.c.h.s8.bf16 %v3300
      %v3505 = vunpack.c.h.s8.bf16 %v3301
      %v3506 = vunpack.c.h.s8.bf16 %v3302
      %v3507 = vunpack.c.h.s8.bf16 %v3303
      %v3508 = vunpack.c.l.s8.bf16 %v3304
      %v3509 = vunpack.c.l.s8.bf16 %v3305
      %v3510 = vunpack.c.l.s8.bf16 %v3306
      %v3511 = vunpack.c.l.s8.bf16 %v3307
      %v3512 = vunpack.c.h.s8.bf16 %v3304
      %v3513 = vunpack.c.h.s8.bf16 %v3305
      %v3514 = vunpack.c.h.s8.bf16 %v3306
      %v3515 = vunpack.c.h.s8.bf16 %v3307
      %v3516 = vunpack.c.l.s8.bf16 %v3308
      %v3517 = vunpack.c.l.s8.bf16 %v3309
      %v3518 = vunpack.c.l.s8.bf16 %v3310
      %v3519 = vunpack.c.l.s8.bf16 %v3311
      %v3520 = vunpack.c.h.s8.bf16 %v3308
      %v3521 = vunpack.c.h.s8.bf16 %v3309
      %v3522 = vunpack.c.h.s8.bf16 %v3310
      %v3523 = vunpack.c.h.s8.bf16 %v3311
      %v3524 = vunpack.c.l.s8.bf16 %v3312
      %v3525 = vunpack.c.l.s8.bf16 %v3313
      %v3526 = vunpack.c.l.s8.bf16 %v3314
      %v3527 = vunpack.c.l.s8.bf16 %v3315
      %v3528 = vunpack.c.h.s8.bf16 %v3312
      %v3529 = vunpack.c.h.s8.bf16 %v3313
      %v3530 = vunpack.c.h.s8.bf16 %v3314
      %v3531 = vunpack.c.h.s8.bf16 %v3315
      %v3532 = vunpack.c.l.s8.bf16 %v3316
      %v3533 = vunpack.c.l.s8.bf16 %v3317
      %v3534 = vunpack.c.l.s8.bf16 %v3318
      %v3535 = vunpack.c.l.s8.bf16 %v3319
      %v3536 = vunpack.c.h.s8.bf16 %v3316
      %v3537 = vunpack.c.h.s8.bf16 %v3317
      %v3538 = vunpack.c.h.s8.bf16 %v3318
      %v3539 = vunpack.c.h.s8.bf16 %v3319
      %v3540 = vunpack.c.l.s8.bf16 %v3320
      %v3541 = vunpack.c.l.s8.bf16 %v3321
      %v3542 = vunpack.c.l.s8.bf16 %v3322
      %v3543 = vunpack.c.l.s8.bf16 %v3323
      %v3544 = vunpack.c.h.s8.bf16 %v3320
      %v3545 = vunpack.c.h.s8.bf16 %v3321
      %v3546 = vunpack.c.h.s8.bf16 %v3322
      %v3547 = vunpack.c.h.s8.bf16 %v3323
      %v3548 = vunpack.c.l.s8.bf16 %v3324
      %v3549 = vunpack.c.l.s8.bf16 %v3325
      %v3550 = vunpack.c.l.s8.bf16 %v3326
      %v3551 = vunpack.c.l.s8.bf16 %v3327
      %v3552 = vunpack.c.h.s8.bf16 %v3324
      %v3553 = vunpack.c.h.s8.bf16 %v3325
      %v3554 = vunpack.c.h.s8.bf16 %v3326
      %v3555 = vunpack.c.h.s8.bf16 %v3327
      %v3556 = vunpack.c.l.s8.bf16 %v3328
      %v3557 = vunpack.c.l.s8.bf16 %v3329
      %v3558 = vunpack.c.l.s8.bf16 %v3330
      %v3559 = vunpack.c.l.s8.bf16 %v3331
      %v3560 = vunpack.c.h.s8.bf16 %v3328
      %v3561 = vunpack.c.h.s8.bf16 %v3329
      %v3562 = vunpack.c.h.s8.bf16 %v3330
      %v3563 = vunpack.c.h.s8.bf16 %v3331
      %v3564 = vunpack.c.l.s8.bf16 %v3332
      %v3565 = vunpack.c.l.s8.bf16 %v3333
      %v3566 = vunpack.c.l.s8.bf16 %v3334
      %v3567 = vunpack.c.l.s8.bf16 %v3335
      %v3568 = vunpack.c.h.s8.bf16 %v3332
      %v3569 = vunpack.c.h.s8.bf16 %v3333
      %v3570 = vunpack.c.h.s8.bf16 %v3334
      %v3571 = vunpack.c.h.s8.bf16 %v3335
      %v3572 = vunpack.c.l.s8.bf16 %v3336
      %v3573 = vunpack.c.l.s8.bf16 %v3337
      %v3574 = vunpack.c.l.s8.bf16 %v3338
      %v3575 = vunpack.c.l.s8.bf16 %v3339
      %v3576 = vunpack.c.h.s8.bf16 %v3336
      %v3577 = vunpack.c.h.s8.bf16 %v3337
      %v3578 = vunpack.c.h.s8.bf16 %v3338
      %v3579 = vunpack.c.h.s8.bf16 %v3339
      %v3580 = vunpack.c.l.s8.bf16 %v3340
      %v3581 = vunpack.c.l.s8.bf16 %v3341
      %v3582 = vunpack.c.l.s8.bf16 %v3342
      %v3583 = vunpack.c.l.s8.bf16 %v3343
      %v3584 = vunpack.c.h.s8.bf16 %v3340
      %v3585 = vunpack.c.h.s8.bf16 %v3341
      %v3586 = vunpack.c.h.s8.bf16 %v3342
      %v3587 = vunpack.c.h.s8.bf16 %v3343
      %v3588 = vunpack.c.l.s8.bf16 %v3344
      %v3589 = vunpack.c.l.s8.bf16 %v3345
      %v3590 = vunpack.c.l.s8.bf16 %v3346
      %v3591 = vunpack.c.l.s8.bf16 %v3347
      %v3592 = vunpack.c.h.s8.bf16 %v3344
      %v3593 = vunpack.c.h.s8.bf16 %v3345
      %v3594 = vunpack.c.h.s8.bf16 %v3346
      %v3595 = vunpack.c.h.s8.bf16 %v3347
      %v3596 = vunpack.c.l.s8.bf16 %v3348
      %v3597 = vunpack.c.l.s8.bf16 %v3349
      %v3598 = vunpack.c.l.s8.bf16 %v3350
      %v3599 = vunpack.c.l.s8.bf16 %v3351
      %v3600 = vunpack.c.h.s8.bf16 %v3348
      %v3601 = vunpack.c.h.s8.bf16 %v3349
      %v3602 = vunpack.c.h.s8.bf16 %v3350
      %v3603 = vunpack.c.h.s8.bf16 %v3351
      %v3604 = vunpack.c.l.s8.bf16 %v3352
      %v3605 = vunpack.c.l.s8.bf16 %v3353
      %v3606 = vunpack.c.l.s8.bf16 %v3354
      %v3607 = vunpack.c.l.s8.bf16 %v3355
      %v3608 = vunpack.c.h.s8.bf16 %v3352
      %v3609 = vunpack.c.h.s8.bf16 %v3353
      %v3610 = vunpack.c.h.s8.bf16 %v3354
      %v3611 = vunpack.c.h.s8.bf16 %v3355
      %v3612 = vpack.c.bf16 %v3216, %v3216
      %v3613 = vpack.c.bf16 %v3217, %v3217
      %v3614 = vpack.c.bf16 %v3218, %v3218
      %v3615 = vpack.c.bf16 %v3219, %v3219
      %v3616 = vpack.c.bf16 %v3220, %v3220
      %v3617 = vpack.c.bf16 %v3221, %v3221
      %v3618 = vpack.c.bf16 %v3222, %v3222
      %v3619 = vpack.c.bf16 %v3223, %v3223
      %3620 = vmatprep.subr.bf16.mxu0 %v3357
      %3621 = vmatpush1.bf16.msra.mxu0 %v3356
      %3622 = vmatprep.subr.bf16.mxu0 %v3361
      %3623 = vmatpush1.bf16.msra.mxu0 %v3360
      %3624 = vmatprep.subr.bf16.mxu0 %v3365
      %3625 = vmatpush1.bf16.msra.mxu0 %v3364
      %3626 = vmatprep.subr.bf16.mxu0 %v3369
      %3627 = vmatpush1.bf16.msra.mxu0 %v3368
      %3628 = vmatprep.subr.bf16.mxu0 %v3373
      %3629 = vmatpush1.bf16.msra.mxu0 %v3372
      %3630 = vmatprep.subr.bf16.mxu0 %v3377
      %3631 = vmatpush1.bf16.msra.mxu0 %v3376
      %3632 = vmatprep.subr.bf16.mxu0 %v3381
      %3633 = vmatpush1.bf16.msra.mxu0 %v3380
      %3634 = vmatprep.subr.bf16.mxu0 %v3385
      %3635 = vmatpush1.bf16.msra.mxu0 %v3384
      %3636 = vmatprep.subr.bf16.mxu0 %v3389
      %3637 = vmatpush1.bf16.msra.mxu0 %v3388
      %3638 = vmatprep.subr.bf16.mxu0 %v3393
      %3639 = vmatpush1.bf16.msra.mxu0 %v3392
      %3640 = vmatprep.subr.bf16.mxu0 %v3397
      %3641 = vmatpush1.bf16.msra.mxu0 %v3396
      %3642 = vmatprep.subr.bf16.mxu0 %v3401
      %3643 = vmatpush1.bf16.msra.mxu0 %v3400
      %3644 = vmatprep.subr.bf16.mxu0 %v3405
      %3645 = vmatpush1.bf16.msra.mxu0 %v3404
      %3646 = vmatprep.subr.bf16.mxu0 %v3409
      %3647 = vmatpush1.bf16.msra.mxu0 %v3408
      %3648 = vmatprep.subr.bf16.mxu0 %v3413
      %3649 = vmatpush1.bf16.msra.mxu0 %v3412
      %3650 = vmatprep.subr.bf16.mxu0 %v3417
      %3651 = vmatpush1.bf16.msra.mxu0 %v3416
      %3652 = vmatprep.mubr.bf16.mxu0 %v3613
      %3653 = vmatmul.mubr.bf16.gmra.mrb[0].mxu0 %v3612
      %v3654 = vpop.f32.mrb[0].mxu0
      %v3655 = vadd.f32 0.0, %v3654
      %v3656 = vpop.f32.mrb[0].mxu0
      %v3657 = vadd.f32 0.0, %v3656
      %v3658 = vpop.f32.mrb[0].mxu0
      %v3659 = vpop.f32.mrb[0].mxu0
      %3660 = vdwg.mxu0
      %3661 = vmatprep.subr.bf16.mxu0 %v3421
      %3662 = vmatpush1.bf16.msra.mxu0 %v3420
      %3663 = vmatprep.subr.bf16.mxu0 %v3425
      %3664 = vmatpush1.bf16.msra.mxu0 %v3424
      %3665 = vmatprep.subr.bf16.mxu0 %v3429
      %3666 = vmatpush1.bf16.msra.mxu0 %v3428
      %3667 = vmatprep.subr.bf16.mxu0 %v3433
      %3668 = vmatpush1.bf16.msra.mxu0 %v3432
      %3669 = vmatprep.subr.bf16.mxu0 %v3437
      %3670 = vmatpush1.bf16.msra.mxu0 %v3436
      %3671 = vmatprep.subr.bf16.mxu0 %v3441
      %3672 = vmatpush1.bf16.msra.mxu0 %v3440
      %3673 = vmatprep.subr.bf16.mxu0 %v3445
      %3674 = vmatpush1.bf16.msra.mxu0 %v3444
      %3675 = vmatprep.subr.bf16.mxu0 %v3449
      %3676 = vmatpush1.bf16.msra.mxu0 %v3448
      %3677 = vmatprep.subr.bf16.mxu0 %v3453
      %3678 = vmatpush1.bf16.msra.mxu0 %v3452
      %3679 = vmatprep.subr.bf16.mxu0 %v3457
      %3680 = vmatpush1.bf16.msra.mxu0 %v3456
      %3681 = vmatprep.subr.bf16.mxu0 %v3461
      %3682 = vmatpush1.bf16.msra.mxu0 %v3460
      %3683 = vmatprep.subr.bf16.mxu0 %v3465
      %3684 = vmatpush1.bf16.msra.mxu0 %v3464
      %3685 = vmatprep.subr.bf16.mxu0 %v3469
      %3686 = vmatpush1.bf16.msra.mxu0 %v3468
      %3687 = vmatprep.subr.bf16.mxu0 %v3473
      %3688 = vmatpush1.bf16.msra.mxu0 %v3472
      %3689 = vmatprep.subr.bf16.mxu0 %v3477
      %3690 = vmatpush1.bf16.msra.mxu0 %v3476
      %3691 = vmatprep.subr.bf16.mxu0 %v3481
      %3692 = vmatpush1.bf16.msra.mxu0 %v3480
      %3693 = vmatprep.mubr.bf16.mxu0 %v3615
      %3694 = vmatmul.mubr.bf16.gmra.mrb[0].mxu0 %v3614
      %v3695 = vpop.f32.mrb[0].mxu0
      %v3696 = vadd.f32 %v3655, %v3695
      %v3697 = vpop.f32.mrb[0].mxu0
      %v3698 = vadd.f32 %v3657, %v3697
      %v3699 = vpop.f32.mrb[0].mxu0
      %v3700 = vpop.f32.mrb[0].mxu0
      %3701 = vdwg.mxu0
      %3702 = vmatprep.subr.bf16.mxu0 %v3485
      %3703 = vmatpush1.bf16.msra.mxu0 %v3484
      %3704 = vmatprep.subr.bf16.mxu0 %v3489
      %3705 = vmatpush1.bf16.msra.mxu0 %v3488
      %3706 = vmatprep.subr.bf16.mxu0 %v3493
      %3707 = vmatpush1.bf16.msra.mxu0 %v3492
      %3708 = vmatprep.subr.bf16.mxu0 %v3497
      %3709 = vmatpush1.bf16.msra.mxu0 %v3496
      %3710 = vmatprep.subr.bf16.mxu0 %v3501
      %3711 = vmatpush1.bf16.msra.mxu0 %v3500
      %3712 = vmatprep.subr.bf16.mxu0 %v3505
      %3713 = vmatpush1.bf16.msra.mxu0 %v3504
      %3714 = vmatprep.subr.bf16.mxu0 %v3509
      %3715 = vmatpush1.bf16.msra.mxu0 %v3508
      %3716 = vmatprep.subr.bf16.mxu0 %v3513
      %3717 = vmatpush1.bf16.msra.mxu0 %v3512
      %3718 = vmatprep.subr.bf16.mxu0 %v3517
      %3719 = vmatpush1.bf16.msra.mxu0 %v3516
      %3720 = vmatprep.subr.bf16.mxu0 %v3521
      %3721 = vmatpush1.bf16.msra.mxu0 %v3520
      %3722 = vmatprep.subr.bf16.mxu0 %v3525
      %3723 = vmatpush1.bf16.msra.mxu0 %v3524
      %3724 = vmatprep.subr.bf16.mxu0 %v3529
      %3725 = vmatpush1.bf16.msra.mxu0 %v3528
      %3726 = vmatprep.subr.bf16.mxu0 %v3533
      %3727 = vmatpush1.bf16.msra.mxu0 %v3532
      %3728 = vmatprep.subr.bf16.mxu0 %v3537
      %3729 = vmatpush1.bf16.msra.mxu0 %v3536
      %3730 = vmatprep.subr.bf16.mxu0 %v3541
      %3731 = vmatpush1.bf16.msra.mxu0 %v3540
      %3732 = vmatprep.subr.bf16.mxu0 %v3545
      %3733 = vmatpush1.bf16.msra.mxu0 %v3544
      %3734 = vmatprep.mubr.bf16.mxu0 %v3617
      %3735 = vmatmul.mubr.bf16.gmra.mrb[0].mxu0 %v3616
      %v3736 = vpop.f32.mrb[0].mxu0
      %v3737 = vadd.f32 %v3696, %v3736
      %v3738 = vpop.f32.mrb[0].mxu0
      %v3739 = vadd.f32 %v3698, %v3738
      %v3740 = vpop.f32.mrb[0].mxu0
      %v3741 = vpop.f32.mrb[0].mxu0
      %3742 = vdwg.mxu0
      %3743 = vmatprep.subr.bf16.mxu0 %v3549
      %3744 = vmatpush1.bf16.msra.mxu0 %v3548
      %3745 = vmatprep.subr.bf16.mxu0 %v3553
      %3746 = vmatpush1.bf16.msra.mxu0 %v3552
      %3747 = vmatprep.subr.bf16.mxu0 %v3557
      %3748 = vmatpush1.bf16.msra.mxu0 %v3556
      %3749 = vmatprep.subr.bf16.mxu0 %v3561
      %3750 = vmatpush1.bf16.msra.mxu0 %v3560
      %3751 = vmatprep.subr.bf16.mxu0 %v3565
      %3752 = vmatpush1.bf16.msra.mxu0 %v3564
      %3753 = vmatprep.subr.bf16.mxu0 %v3569
      %3754 = vmatpush1.bf16.msra.mxu0 %v3568
      %3755 = vmatprep.subr.bf16.mxu0 %v3573
      %3756 = vmatpush1.bf16.msra.mxu0 %v3572
      %3757 = vmatprep.subr.bf16.mxu0 %v3577
      %3758 = vmatpush1.bf16.msra.mxu0 %v3576
      %3759 = vmatprep.subr.bf16.mxu0 %v3581
      %3760 = vmatpush1.bf16.msra.mxu0 %v3580
      %3761 = vmatprep.subr.bf16.mxu0 %v3585
      %3762 = vmatpush1.bf16.msra.mxu0 %v3584
      %3763 = vmatprep.subr.bf16.mxu0 %v3589
      %3764 = vmatpush1.bf16.msra.mxu0 %v3588
      %3765 = vmatprep.subr.bf16.mxu0 %v3593
      %3766 = vmatpush1.bf16.msra.mxu0 %v3592
      %3767 = vmatprep.subr.bf16.mxu0 %v3597
      %3768 = vmatpush1.bf16.msra.mxu0 %v3596
      %3769 = vmatprep.subr.bf16.mxu0 %v3601
      %3770 = vmatpush1.bf16.msra.mxu0 %v3600
      %3771 = vmatprep.subr.bf16.mxu0 %v3605
      %3772 = vmatpush1.bf16.msra.mxu0 %v3604
      %3773 = vmatprep.subr.bf16.mxu0 %v3609
      %3774 = vmatpush1.bf16.msra.mxu0 %v3608
      %3775 = vmatprep.mubr.bf16.mxu0 %v3619
      %3776 = vmatmul.mubr.bf16.gmra.mrb[0].mxu0 %v3618
      %v3777 = vpop.f32.mrb[0].mxu0
      %v3778 = vadd.f32 %v3737, %v3777
      %v3779 = vpop.f32.mrb[0].mxu0
      %v3780 = vadd.f32 %v3739, %v3779
      %v3781 = vpop.f32.mrb[0].mxu0
      %v3782 = vpop.f32.mrb[0].mxu0
      %3783 = vdwg.mxu0
      %3784 = vmatprep.subr.bf16.mxu0 %v3359
      %3785 = vmatpush1.bf16.msra.mxu0 %v3358
      %3786 = vmatprep.subr.bf16.mxu0 %v3363
      %3787 = vmatpush1.bf16.msra.mxu0 %v3362
      %3788 = vmatprep.subr.bf16.mxu0 %v3367
      %3789 = vmatpush1.bf16.msra.mxu0 %v3366
      %3790 = vmatprep.subr.bf16.mxu0 %v3371
      %3791 = vmatpush1.bf16.msra.mxu0 %v3370
      %3792 = vmatprep.subr.bf16.mxu0 %v3375
      %3793 = vmatpush1.bf16.msra.mxu0 %v3374
      %3794 = vmatprep.subr.bf16.mxu0 %v3379
      %3795 = vmatpush1.bf16.msra.mxu0 %v3378
      %3796 = vmatprep.subr.bf16.mxu0 %v3383
      %3797 = vmatpush1.bf16.msra.mxu0 %v3382
      %3798 = vmatprep.subr.bf16.mxu0 %v3387
      %3799 = vmatpush1.bf16.msra.mxu0 %v3386
      %3800 = vmatprep.subr.bf16.mxu0 %v3391
      %3801 = vmatpush1.bf16.msra.mxu0 %v3390
      %3802 = vmatprep.subr.bf16.mxu0 %v3395
      %3803 = vmatpush1.bf16.msra.mxu0 %v3394
      %3804 = vmatprep.subr.bf16.mxu0 %v3399
      %3805 = vmatpush1.bf16.msra.mxu0 %v3398
      %3806 = vmatprep.subr.bf16.mxu0 %v3403
      %3807 = vmatpush1.bf16.msra.mxu0 %v3402
      %3808 = vmatprep.subr.bf16.mxu0 %v3407
      %3809 = vmatpush1.bf16.msra.mxu0 %v3406
      %3810 = vmatprep.subr.bf16.mxu0 %v3411
      %3811 = vmatpush1.bf16.msra.mxu0 %v3410
      %3812 = vmatprep.subr.bf16.mxu0 %v3415
      %3813 = vmatpush1.bf16.msra.mxu0 %v3414
      %3814 = vmatprep.subr.bf16.mxu0 %v3419
      %3815 = vmatpush1.bf16.msra.mxu0 %v3418
      %3816 = vmatprep.mubr.bf16.mxu0 %v3613
      %3817 = vmatmul.mubr.bf16.gmra.mrb[0].mxu0 %v3612
      %v3818 = vpop.f32.mrb[0].mxu0
      %v3819 = vadd.f32 0.0, %v3818
      %v3820 = vpop.f32.mrb[0].mxu0
      %v3821 = vadd.f32 0.0, %v3820
      %v3822 = vpop.f32.mrb[0].mxu0
      %v3823 = vpop.f32.mrb[0].mxu0
      %3824 = vdwg.mxu0
      %3825 = vmatprep.subr.bf16.mxu0 %v3423
      %3826 = vmatpush1.bf16.msra.mxu0 %v3422
      %3827 = vmatprep.subr.bf16.mxu0 %v3427
      %3828 = vmatpush1.bf16.msra.mxu0 %v3426
      %3829 = vmatprep.subr.bf16.mxu0 %v3431
      %3830 = vmatpush1.bf16.msra.mxu0 %v3430
      %3831 = vmatprep.subr.bf16.mxu0 %v3435
      %3832 = vmatpush1.bf16.msra.mxu0 %v3434
      %3833 = vmatprep.subr.bf16.mxu0 %v3439
      %3834 = vmatpush1.bf16.msra.mxu0 %v3438
      %3835 = vmatprep.subr.bf16.mxu0 %v3443
      %3836 = vmatpush1.bf16.msra.mxu0 %v3442
      %3837 = vmatprep.subr.bf16.mxu0 %v3447
      %3838 = vmatpush1.bf16.msra.mxu0 %v3446
      %3839 = vmatprep.subr.bf16.mxu0 %v3451
      %3840 = vmatpush1.bf16.msra.mxu0 %v3450
      %3841 = vmatprep.subr.bf16.mxu0 %v3455
      %3842 = vmatpush1.bf16.msra.mxu0 %v3454
      %3843 = vmatprep.subr.bf16.mxu0 %v3459
      %3844 = vmatpush1.bf16.msra.mxu0 %v3458
      %3845 = vmatprep.subr.bf16.mxu0 %v3463
      %3846 = vmatpush1.bf16.msra.mxu0 %v3462
      %3847 = vmatprep.subr.bf16.mxu0 %v3467
      %3848 = vmatpush1.bf16.msra.mxu0 %v3466
      %3849 = vmatprep.subr.bf16.mxu0 %v3471
      %3850 = vmatpush1.bf16.msra.mxu0 %v3470
      %3851 = vmatprep.subr.bf16.mxu0 %v3475
      %3852 = vmatpush1.bf16.msra.mxu0 %v3474
      %3853 = vmatprep.subr.bf16.mxu0 %v3479
      %3854 = vmatpush1.bf16.msra.mxu0 %v3478
      %3855 = vmatprep.subr.bf16.mxu0 %v3483
      %3856 = vmatpush1.bf16.msra.mxu0 %v3482
      %3857 = vmatprep.mubr.bf16.mxu0 %v3615
      %3858 = vmatmul.mubr.bf16.gmra.mrb[0].mxu0 %v3614
      %v3859 = vpop.f32.mrb[0].mxu0
      %v3860 = vadd.f32 %v3819, %v3859
      %v3861 = vpop.f32.mrb[0].mxu0
      %v3862 = vadd.f32 %v3821, %v3861
      %v3863 = vpop.f32.mrb[0].mxu0
      %v3864 = vpop.f32.mrb[0].mxu0
      %3865 = vdwg.mxu0
      %3866 = vmatprep.subr.bf16.mxu0 %v3487
      %3867 = vmatpush1.bf16.msra.mxu0 %v3486
      %3868 = vmatprep.subr.bf16.mxu0 %v3491
      %3869 = vmatpush1.bf16.msra.mxu0 %v3490
      %3870 = vmatprep.subr.bf16.mxu0 %v3495
      %3871 = vmatpush1.bf16.msra.mxu0 %v3494
      %3872 = vmatprep.subr.bf16.mxu0 %v3499
      %3873 = vmatpush1.bf16.msra.mxu0 %v3498
      %3874 = vmatprep.subr.bf16.mxu0 %v3503
      %3875 = vmatpush1.bf16.msra.mxu0 %v3502
      %3876 = vmatprep.subr.bf16.mxu0 %v3507
      %3877 = vmatpush1.bf16.msra.mxu0 %v3506
      %3878 = vmatprep.subr.bf16.mxu0 %v3511
      %3879 = vmatpush1.bf16.msra.mxu0 %v3510
      %3880 = vmatprep.subr.bf16.mxu0 %v3515
      %3881 = vmatpush1.bf16.msra.mxu0 %v3514
      %3882 = vmatprep.subr.bf16.mxu0 %v3519
      %3883 = vmatpush1.bf16.msra.mxu0 %v3518
      %3884 = vmatprep.subr.bf16.mxu0 %v3523
      %3885 = vmatpush1.bf16.msra.mxu0 %v3522
      %3886 = vmatprep.subr.bf16.mxu0 %v3527
      %3887 = vmatpush1.bf16.msra.mxu0 %v3526
      %3888 = vmatprep.subr.bf16.mxu0 %v3531
      %3889 = vmatpush1.bf16.msra.mxu0 %v3530
      %3890 = vmatprep.subr.bf16.mxu0 %v3535
      %3891 = vmatpush1.bf16.msra.mxu0 %v3534
      %3892 = vmatprep.subr.bf16.mxu0 %v3539
      %3893 = vmatpush1.bf16.msra.mxu0 %v3538
      %3894 = vmatprep.subr.bf16.mxu0 %v3543
      %3895 = vmatpush1.bf16.msra.mxu0 %v3542
      %3896 = vmatprep.subr.bf16.mxu0 %v3547
      %3897 = vmatpush1.bf16.msra.mxu0 %v3546
      %3898 = vmatprep.mubr.bf16.mxu0 %v3617
      %3899 = vmatmul.mubr.bf16.gmra.mrb[0].mxu0 %v3616
      %v3900 = vpop.f32.mrb[0].mxu0
      %v3901 = vadd.f32 %v3860, %v3900
      %v3902 = vpop.f32.mrb[0].mxu0
      %v3903 = vadd.f32 %v3862, %v3902
      %v3904 = vpop.f32.mrb[0].mxu0
      %v3905 = vpop.f32.mrb[0].mxu0
      %3906 = vdwg.mxu0
      %3907 = vmatprep.subr.bf16.mxu0 %v3551
      %3908 = vmatpush1.bf16.msra.mxu0 %v3550
      %3909 = vmatprep.subr.bf16.mxu0 %v3555
      %3910 = vmatpush1.bf16.msra.mxu0 %v3554
      %3911 = vmatprep.subr.bf16.mxu0 %v3559
      %3912 = vmatpush1.bf16.msra.mxu0 %v3558
      %3913 = vmatprep.subr.bf16.mxu0 %v3563
      %3914 = vmatpush1.bf16.msra.mxu0 %v3562
      %3915 = vmatprep.subr.bf16.mxu0 %v3567
      %3916 = vmatpush1.bf16.msra.mxu0 %v3566
      %3917 = vmatprep.subr.bf16.mxu0 %v3571
      %3918 = vmatpush1.bf16.msra.mxu0 %v3570
      %3919 = vmatprep.subr.bf16.mxu0 %v3575
      %3920 = vmatpush1.bf16.msra.mxu0 %v3574
      %3921 = vmatprep.subr.bf16.mxu0 %v3579
      %3922 = vmatpush1.bf16.msra.mxu0 %v3578
      %3923 = vmatprep.subr.bf16.mxu0 %v3583
      %3924 = vmatpush1.bf16.msra.mxu0 %v3582
      %3925 = vmatprep.subr.bf16.mxu0 %v3587
      %3926 = vmatpush1.bf16.msra.mxu0 %v3586
      %3927 = vmatprep.subr.bf16.mxu0 %v3591
      %3928 = vmatpush1.bf16.msra.mxu0 %v3590
      %3929 = vmatprep.subr.bf16.mxu0 %v3595
      %3930 = vmatpush1.bf16.msra.mxu0 %v3594
      %3931 = vmatprep.subr.bf16.mxu0 %v3599
      %3932 = vmatpush1.bf16.msra.mxu0 %v3598
      %3933 = vmatprep.subr.bf16.mxu0 %v3603
      %3934 = vmatpush1.bf16.msra.mxu0 %v3602
      %3935 = vmatprep.subr.bf16.mxu0 %v3607
      %3936 = vmatpush1.bf16.msra.mxu0 %v3606
      %3937 = vmatprep.subr.bf16.mxu0 %v3611
      %3938 = vmatpush1.bf16.msra.mxu0 %v3610
      %3939 = vmatprep.mubr.bf16.mxu0 %v3619
      %3940 = vmatmul.mubr.bf16.gmra.mrb[0].mxu0 %v3618
      %v3941 = vpop.f32.mrb[0].mxu0
      %v3942 = vadd.f32 %v3901, %v3941
      %v3943 = vpop.f32.mrb[0].mxu0
      %v3944 = vadd.f32 %v3903, %v3943
      %v3945 = vpop.f32.mrb[0].mxu0
      %v3946 = vpop.f32.mrb[0].mxu0
      %3947 = vdwg.mxu0
      %v3948 = vld [vmem:[%s8] sm:$0xf]
      %v3950 = vlaneseq
      %v3951 = vshrl.u32 %v3950, 7
      %v3952 = vsub.s32 0, %v3951
      %v3953 = vrot.slane %v3948, %v3952
      %v3954 = vlaneseq
      %v3955 = vshrl.u32 %v3954, 7
      %v3956 = vsub.s32 1, %v3955
      %v3957 = vrot.slane %v3948, %v3956
      %v3958 = vlaneseq
      %v3959 = vshrl.u32 %v3958, 7
      %v3960 = vsub.s32 2, %v3959
      %v3961 = vrot.slane %v3948, %v3960
      %v3962 = vlaneseq
      %v3963 = vshrl.u32 %v3962, 7
      %v3964 = vsub.s32 3, %v3963
      %v3965 = vrot.slane %v3948, %v3964
      %v3970 = vmul.f32 %v3778, %v3953
      %v3971 = vmul.f32 %v3780, %v3957
      %v3972 = vmul.f32 %v3942, %v3961
      %v3973 = vmul.f32 %v3944, %v3965
      %v3974 = vld [vmem:[%s9] sm:$0xf]
      %v3976 = vlaneseq
      %v3977 = vshrl.u32 %v3976, 7
      %v3978 = vsub.s32 0, %v3977
      %v3979 = vrot.slane %v3974, %v3978
      %v3980 = vlaneseq
      %v3981 = vshrl.u32 %v3980, 7
      %v3982 = vsub.s32 1, %v3981
      %v3983 = vrot.slane %v3974, %v3982
      %v3984 = vlaneseq
      %v3985 = vshrl.u32 %v3984, 7
      %v3986 = vsub.s32 2, %v3985
      %v3987 = vrot.slane %v3974, %v3986
      %v3988 = vlaneseq
      %v3989 = vshrl.u32 %v3988, 7
      %v3990 = vsub.s32 3, %v3989
      %v3991 = vrot.slane %v3974, %v3990
      %v3996 = vadd.f32 %v3970, %v3979
      %v3997 = vadd.f32 %v3971, %v3983
      %v3998 = vadd.f32 %v3972, %v3987
      %v3999 = vadd.f32 %v3973, %v3991
      %v4000 = vxor.u32 %v3996, 2147483648
      %v4001 = vxor.u32 %v3997, 2147483648
      %v4002 = vxor.u32 %v3998, 2147483648
      %v4003 = vxor.u32 %v3999, 2147483648
      %v4004 = vmul.f32 %v4000, 1.442695
      %v4005 = vpow.pop %v4004
      %v4006 = vmul.f32 %v4001, 1.442695
      %v4007 = vpow.pop %v4006
      %v4008 = vmul.f32 %v4002, 1.442695
      %v4009 = vpow.pop %v4008
      %v4010 = vmul.f32 %v4003, 1.442695
      %v4011 = vpow.pop %v4010
      %v4012 = vadd.f32 %v4005, 1.0
      %v4013 = vadd.f32 %v4007, 1.0
      %v4014 = vadd.f32 %v4009, 1.0
      %v4015 = vadd.f32 %v4011, 1.0
      %v4016 = vrcp.pop %v4012
      %v4017 = vmul.f32 1.0, %v4016
      %v4018 = vrcp.pop %v4013
      %v4019 = vmul.f32 1.0, %v4018
      %v4020 = vrcp.pop %v4014
      %v4021 = vmul.f32 1.0, %v4020
      %v4022 = vrcp.pop %v4015
      %v4023 = vmul.f32 1.0, %v4022
      %4024 = vst [vmem:[#allocation10] sm:$0xff] %v4017
      %4025 = vst [vmem:[#allocation10 + $0x8] sm:$0xff] %v4019
      %4026 = vst [vmem:[#allocation10 + $0x10] sm:$0xff] %v4021
      %4027 = vst [vmem:[#allocation10 + $0x18] sm:$0xff] %v4023
    $region57: #{mlp_forward.1} parent=1 // pred_fallthru
      _
    // Predicated region
    $region58: #{mlp_forward.1} parent=1 // pred_check
      _
    $region59: #{mlp_forward.1} parent=1 // pred_check_branch
      %4029 = sbr.rel (0) target = $region61
    $region60: #{mlp_forward.1} parent=1 // pred_region
      %s4031 = ssub.s32 512, 512
      %4032 = vsyncadd [#allocation7], %s4031
      %s4034 = sshll.u32 [#allocation10], 4
      %s4035 = int_to_ptr.vmem [resolvable:$true] %s4034
      %4037 = dma.vmem_to_hbm [thread:$0]  %s4035, 512, %s10, [#allocation7]
    $region61: #{mlp_forward.1} parent=1 // pred_fallthru
      _
    // Predicated region
    $region62: #{mlp_forward.1} parent=1 // pred_check
      _
    $region63: #{mlp_forward.1} parent=1 // pred_check_branch
      %4039 = sbr.rel (0) target = $region65
    $region64: #{mlp_forward.1} parent=1 // pred_region
      %4040 = dma.done [#allocation7], 512
    $region65: #{mlp_forward.1} parent=1 // pred_fallthru
      _
    %4041 = vsyncpa [#allocation6], 1
    %4042 = vsyncpa [#allocation9], 1
    %4043 = vsyncpa [#allocation7], 1
  %4044 = vsyncmov [#allocation4]
  %s4045 = vpop.sfrf %4044
  %p4046 = scmp.eq.s32.totalorder %s4045, 0
  %p4047 = pneg %p4046
  %4049 = shalt.err (%p4047)

</llo_original>
